<compile_context>
chip_gen: v7x
topology: tpu7x:2x2x1
jax: 0.10.0
libtpu: 0.0.40
codegen_flags: <defaults>
</compile_context>

<pallas_src>
import jax
import jax.numpy as jnp
from jax.experimental import pallas as pl
from jax.experimental.pallas import tpu as pltpu

_LANE = 128      # lane tile (last dim)
_SUBLANE = 8     # sublane tile for f32 (second-to-last dim)


def _round_up(x, m):
    return (x + m - 1) // m * m


def _pick_chunk(T, cap=16):
    """Largest divisor of T that is <= cap (timesteps per grid step)."""
    for c in range(min(T, cap), 0, -1):
        if T % c == 0:
            return c
    return 1


# ----------------------------------------------------------------------------
# Pallas kernels
# ----------------------------------------------------------------------------
def _lstm_chunk_body(x_ref, wi_ref, wh_ref, b_ref, h_scr, c_scr, xp_scr, out_ref):
    """Run one chunk of timesteps of the LSTM recurrence.

    x_ref:  (T_CHUNK * Bp, Dp)    flat time-major input chunk
    wi_ref: (Dp, 4*Hp)            input weights (pre-transposed, gate-blocked)
    wh_ref: (Hp, 4*Hp)            recurrent weights
    b_ref:  (1, 4*Hp)             b_ih + b_hh (gate-blocked, padded lanes zero)
    h_scr/c_scr: (Bp, Hp)         recurrent state, persists across grid steps
    xp_scr: (T_CHUNK * Bp, 4*Hp)  precomputed input projection for the chunk
    out_ref: (T_CHUNK * Bp, Hp) or None  per-timestep hidden-state output
    Returns the hidden state after the last timestep of the chunk.
    """
    Bp, Hp = h_scr.shape
    tc = x_ref.shape[0] // Bp

    @pl.when(pl.program_id(0) == 0)
    def _():
        h_scr[...] = jnp.zeros_like(h_scr)
        c_scr[...] = jnp.zeros_like(c_scr)

    # One big MXU GEMM for the whole chunk -- off the serial critical path.
    xp_scr[...] = (jnp.dot(x_ref[...], wi_ref[...],
                           preferred_element_type=jnp.float32) + b_ref[...])

    h = h_scr[...]
    c = c_scr[...]
    for t in range(tc):                       # static unroll over the chunk
        r0 = t * Bp
        gates = xp_scr[r0:r0 + Bp, :] + jnp.dot(
            h, wh_ref[...], preferred_element_type=jnp.float32)
        # Gate slices are exact 128-lane tiles (Hp is a multiple of 128).
        i_g = jax.nn.sigmoid(gates[:, 0 * Hp:1 * Hp])
        f_g = jax.nn.sigmoid(gates[:, 1 * Hp:2 * Hp])
        g_g = jnp.tanh(gates[:, 2 * Hp:3 * Hp])
        o_g = jax.nn.sigmoid(gates[:, 3 * Hp:4 * Hp])
        c = f_g * c + i_g * g_g
        h = o_g * jnp.tanh(c)
        if out_ref is not None:
            out_ref[r0:r0 + Bp, :] = h        # lane-dense (8, Hp) store

    h_scr[...] = h
    c_scr[...] = c
    return h


def lstm_seq_kernel(x_ref, wi_ref, wh_ref, b_ref, out_ref, h_scr, c_scr, xp_scr):
    """Intermediate LSTM layer: writes the full hidden-state sequence."""
    _lstm_chunk_body(x_ref, wi_ref, wh_ref, b_ref, h_scr, c_scr, xp_scr, out_ref)


def lstm_fc_kernel(x_ref, wi_ref, wh_ref, b_ref, wfc_ref, bfc_ref, out_ref,
                   h_scr, c_scr, xp_scr):
    """Last LSTM layer with the final Linear fused on the last timestep."""
    h = _lstm_chunk_body(x_ref, wi_ref, wh_ref, b_ref, h_scr, c_scr, xp_scr, None)

    @pl.when(pl.program_id(0) == pl.num_programs(0) - 1)
    def _():
        out_ref[...] = (jnp.dot(h, wfc_ref[...],
                                preferred_element_type=jnp.float32)
                        + bfc_ref[...])


# ----------------------------------------------------------------------------
# pallas_call wrappers
# ----------------------------------------------------------------------------
def _lstm_seq_layer(seq, wi, wh, b, Bp, t_chunk):
    """seq: (T*Bp, Dp) flat time-major. Returns (T*Bp, Hp)."""
    rows, Dp = seq.shape
    T = rows // Bp
    Hp = wh.shape[0]
    rows_per_step = t_chunk * Bp
    return pl.pallas_call(
        lstm_seq_kernel,
        out_shape=jax.ShapeDtypeStruct((T * Bp, Hp), jnp.float32),
        grid_spec=pltpu.PrefetchScalarGridSpec(
            num_scalar_prefetch=0,
            grid=(T // t_chunk,),
            in_specs=[
                pl.BlockSpec((rows_per_step, Dp), lambda c: (c, 0)),
                pl.BlockSpec((Dp, 4 * Hp), lambda c: (0, 0)),
                pl.BlockSpec((Hp, 4 * Hp), lambda c: (0, 0)),
                pl.BlockSpec((1, 4 * Hp), lambda c: (0, 0)),
            ],
            out_specs=pl.BlockSpec((rows_per_step, Hp), lambda c: (c, 0)),
            scratch_shapes=[
                pltpu.VMEM((Bp, Hp), jnp.float32),             # h state
                pltpu.VMEM((Bp, Hp), jnp.float32),             # c state
                pltpu.VMEM((rows_per_step, 4 * Hp), jnp.float32),  # x-projection
            ],
        ),
        compiler_params=pltpu.CompilerParams(
            dimension_semantics=("arbitrary",)),   # time is a true recurrence
    )(seq, wi, wh, b)


def _lstm_fc_layer(seq, wi, wh, b, wfc, bfc, Bp, t_chunk):
    """Last layer + fused FC. seq: (T*Bp, Dp). Returns (Bp, Op)."""
    rows, Dp = seq.shape
    T = rows // Bp
    Hp = wh.shape[0]
    Op = wfc.shape[1]
    rows_per_step = t_chunk * Bp
    return pl.pallas_call(
        lstm_fc_kernel,
        out_shape=jax.ShapeDtypeStruct((Bp, Op), jnp.float32),
        grid_spec=pltpu.PrefetchScalarGridSpec(
            num_scalar_prefetch=0,
            grid=(T // t_chunk,),
            in_specs=[
                pl.BlockSpec((rows_per_step, Dp), lambda c: (c, 0)),
                pl.BlockSpec((Dp, 4 * Hp), lambda c: (0, 0)),
                pl.BlockSpec((Hp, 4 * Hp), lambda c: (0, 0)),
                pl.BlockSpec((1, 4 * Hp), lambda c: (0, 0)),
                pl.BlockSpec((Hp, Op), lambda c: (0, 0)),
                pl.BlockSpec((1, Op), lambda c: (0, 0)),
            ],
            out_specs=pl.BlockSpec((Bp, Op), lambda c: (0, 0)),
            scratch_shapes=[
                pltpu.VMEM((Bp, Hp), jnp.float32),
                pltpu.VMEM((Bp, Hp), jnp.float32),
                pltpu.VMEM((rows_per_step, 4 * Hp), jnp.float32),
            ],
        ),
        compiler_params=pltpu.CompilerParams(
            dimension_semantics=("arbitrary",)),
    )(seq, wi, wh, b, wfc, bfc)


def _pad_lstm_params(w_ih, w_hh, b_ih, b_hh, d_in_p, Hp):
    """PyTorch (4H, D)/(4H, H)/(4H,) params -> padded, transposed, gate-blocked."""
    fourH, D = w_ih.shape
    H = fourH // 4
    wi = jnp.zeros((4, Hp, d_in_p), jnp.float32)
    wi = wi.at[:, :H, :D].set(w_ih.reshape(4, H, D).astype(jnp.float32))
    wi = wi.reshape(4 * Hp, d_in_p).T                       # (d_in_p, 4*Hp)

    wh = jnp.zeros((4, Hp, Hp), jnp.float32)
    wh = wh.at[:, :H, :H].set(w_hh.reshape(4, H, H).astype(jnp.float32))
    wh = wh.reshape(4 * Hp, Hp).T                           # (Hp, 4*Hp)

    b = jnp.zeros((4, Hp), jnp.float32)
    b = b.at[:, :H].set((b_ih + b_hh).reshape(4, H).astype(jnp.float32))
    b = b.reshape(1, 4 * Hp)
    return wi, wh, b


@jax.jit
def lstm_model_forward(x_btd, lstm_params, w_fc, b_fc):
    """Full LSTMModel forward. x_btd: (B, T, input_size) like PyTorch batch_first."""
    x = x_btd.astype(jnp.float32)
    B, T, D = x.shape
    H = lstm_params[0][1].shape[1]
    O = w_fc.shape[0]

    Bp = _round_up(B, _SUBLANE)
    Dp = _round_up(D, _LANE)
    Hp = _round_up(H, _LANE)
    Op = _round_up(O, _LANE)
    t_chunk = _pick_chunk(T)

    # batch_first -> time-major, pad to the (8, 128) tile, flatten to 2-D
    # (lane/sublane-dense layout kept across all layers).
    x_tm = jnp.transpose(x, (1, 0, 2))                       # (T, B, D)
    x_tm = jnp.pad(x_tm, ((0, 0), (0, Bp - B), (0, Dp - D)))
    seq = x_tm.reshape(T * Bp, Dp)

    # FC weights: padded & transposed (Hp, Op), zero-padded rows/cols.
    wfc = jnp.zeros((Hp, Op), jnp.float32).at[:H, :O].set(
        jnp.transpose(w_fc).astype(jnp.float32))
    bfc = jnp.zeros((1, Op), jnp.float32).at[0, :O].set(b_fc.astype(jnp.float32))

    n_layers = len(lstm_params)
    out = None
    for li, (w_ih, w_hh, b_ih, b_hh) in enumerate(lstm_params):
        d_in_p = Dp if li == 0 else Hp
        wi, wh, b = _pad_lstm_params(w_ih, w_hh, b_ih, b_hh, d_in_p, Hp)
        if li == n_layers - 1:
            out = _lstm_fc_layer(seq, wi, wh, b, wfc, bfc, Bp, t_chunk)
        else:
            seq = _lstm_seq_layer(seq, wi, wh, b, Bp, t_chunk)
    return out[:B, :O]


# ----------------------------------------------------------------------------
# Pure-JAX reference (mirrors torch.nn.LSTM / nn.Linear semantics)
# ----------------------------------------------------------------------------
def lstm_model_ref(x_btd, lstm_params, w_fc, b_fc):
    hp = jax.lax.Precision.HIGHEST
    inp = x_btd.astype(jnp.float32)
    B = inp.shape[0]
    for (w_ih, w_hh, b_ih, b_hh) in lstm_params:
        H = w_hh.shape[1]

        def step(carry, x_t, w_ih=w_ih, w_hh=w_hh, b_ih=b_ih, b_hh=b_hh):
            h, c = carry
            gates = (jnp.dot(x_t, w_ih.T, precision=hp)
                     + jnp.dot(h, w_hh.T, precision=hp) + b_ih + b_hh)
            i, f, g, o = jnp.split(gates, 4, axis=-1)
            i = jax.nn.sigmoid(i); f = jax.nn.sigmoid(f)
            g = jnp.tanh(g); o = jax.nn.sigmoid(o)
            c = f * c + i * g
            h = o * jnp.tanh(c)
            return (h, c), h

        init = (jnp.zeros((B, H), jnp.float32), jnp.zeros((B, H), jnp.float32))
        _, hs = jax.lax.scan(step, init, jnp.swapaxes(inp, 0, 1))
        inp = jnp.swapaxes(hs, 0, 1)
    return jnp.dot(inp[:, -1, :], w_fc.T, precision=hp) + b_fc


# ----------------------------------------------------------------------------
# Parameter init (PyTorch shapes / U(-1/sqrt(H), 1/sqrt(H)))
# ----------------------------------------------------------------------------
def init_params(key, input_size, hidden_size, output_size, num_layers):
    k = 1.0 / jnp.sqrt(hidden_size)
    lstm_params = []
    for layer in range(num_layers):
        d_in = input_size if layer == 0 else hidden_size
        key, k1, k2, k3, k4 = jax.random.split(key, 5)
        w_ih = jax.random.uniform(k1, (4 * hidden_size, d_in), jnp.float32, -k, k)
        w_hh = jax.random.uniform(k2, (4 * hidden_size, hidden_size), jnp.float32, -k, k)
        b_ih = jax.random.uniform(k3, (4 * hidden_size,), jnp.float32, -k, k)
        b_hh = jax.random.uniform(k4, (4 * hidden_size,), jnp.float32, -k, k)
        lstm_params.append((w_ih, w_hh, b_ih, b_hh))
    key, k5, k6 = jax.random.split(key, 3)
    w_fc = jax.random.uniform(k5, (output_size, hidden_size), jnp.float32, -k, k)
    b_fc = jax.random.uniform(k6, (output_size,), jnp.float32, -k, k)
    return lstm_params, w_fc, b_fc


if __name__ == "__main__":
    batch, seq_len = 2, 8
    input_size, hidden_size, output_size, num_layers = 16, 32, 4, 2

    key = jax.random.PRNGKey(0)
    key, kx = jax.random.split(key)
    x = jax.random.normal(kx, (batch, seq_len, input_size), jnp.float32)

    lstm_params, w_fc, b_fc = init_params(
        key, input_size, hidden_size, output_size, num_layers)

    out = lstm_model_forward(x, lstm_params, w_fc, b_fc)
    out = jax.block_until_ready(out)

    ref = lstm_model_ref(x, lstm_params, w_fc, b_fc)
    assert out.shape == (batch, output_size)
    assert jnp.allclose(out, ref, rtol=1e-4, atol=1e-5), (
        f"mismatch vs reference, max abs diff {jnp.max(jnp.abs(out - ref))}")

    print("KERNEL_OK")
</pallas_src>

<mosaic_0001>
module attributes {stable_mosaic.version = 11 : i64} {
  func.func @lstm_seq_kernel(%arg0: i32, %arg1: memref<64x128xf32, #tpu.memory_space<vmem>>, %arg2: memref<128x512xf32, #tpu.memory_space<vmem>>, %arg3: memref<128x512xf32, #tpu.memory_space<vmem>>, %arg4: memref<1x512xf32, #tpu.memory_space<vmem>>, %arg5: memref<64x128xf32, #tpu.memory_space<vmem>>, %arg6: memref<8x128xf32, #tpu.memory_space<vmem>>, %arg7: memref<8x128xf32, #tpu.memory_space<vmem>>, %arg8: memref<64x512xf32, #tpu.memory_space<vmem>>) attributes {dimension_semantics = [#tpu.dimension_semantics<arbitrary>], iteration_bounds = array<i64: 1>, scalar_prefetch = 0 : i64, scratch_operands = 3 : i64, tpu.core_type = #tpu.core_type<tc>, window_params = [{transform_indices = @transform_0, window_bounds = array<i64: 64, 128>}, {pipeline_mode = #tpu.pipeline_mode<synchronous>, transform_indices = @transform_1, window_bounds = array<i64: 128, 512>}, {pipeline_mode = #tpu.pipeline_mode<synchronous>, transform_indices = @transform_2, window_bounds = array<i64: 128, 512>}, {pipeline_mode = #tpu.pipeline_mode<synchronous>, transform_indices = @transform_3, window_bounds = array<i64: 1, 512>}, {transform_indices = @transform_4, window_bounds = array<i64: 64, 128>}]} {
    %c0_i32 = arith.constant 0 : i32
    %0 = arith.cmpi eq, %arg0, %c0_i32 : i32
    %1 = arith.extui %0 : i1 to i32
    %c0_i32_0 = arith.constant 0 : i32
    %2 = arith.cmpi ne, %1, %c0_i32_0 : i32
    scf.if %2 {
      %cst_89 = arith.constant 0.000000e+00 : f32
      %254 = vector.broadcast %cst_89 : f32 to vector<8x128xf32>
      %c0_90 = arith.constant 0 : index
      %c0_91 = arith.constant 0 : index
      %255 = vector.load %arg6[%c0_90, %c0_91] : memref<8x128xf32, #tpu.memory_space<vmem>>, vector<8x128xf32>
      tpu.vector_store %arg6[%c0_90, %c0_91], %254 {strides = array<i32>} : memref<8x128xf32, #tpu.memory_space<vmem>>, vector<8x128xf32>,
      %cst_92 = arith.constant 0.000000e+00 : f32
      %256 = vector.broadcast %cst_92 : f32 to vector<8x128xf32>
      %c0_93 = arith.constant 0 : index
      %c0_94 = arith.constant 0 : index
      %257 = vector.load %arg7[%c0_93, %c0_94] : memref<8x128xf32, #tpu.memory_space<vmem>>, vector<8x128xf32>
      tpu.vector_store %arg7[%c0_93, %c0_94], %256 {strides = array<i32>} : memref<8x128xf32, #tpu.memory_space<vmem>>, vector<8x128xf32>,
    } else {
    }
    %c0 = arith.constant 0 : index
    %c0_1 = arith.constant 0 : index
    %3 = vector.load %arg1[%c0, %c0_1] : memref<64x128xf32, #tpu.memory_space<vmem>>, vector<64x128xf32>
    %c0_2 = arith.constant 0 : index
    %c0_3 = arith.constant 0 : index
    %4 = vector.load %arg2[%c0_2, %c0_3] : memref<128x512xf32, #tpu.memory_space<vmem>>, vector<128x512xf32>
    %cst = arith.constant dense<0.000000e+00> : vector<64x512xf32>
    %5 = tpu.matmul %3, %4, %cst {dimension_numbers = #tpu.dot_dimension_numbers<[1], [0], [0], [1], [0, 0, 1, 1], [], []>} : vector<64x128xf32>, vector<128x512xf32>, vector<64x512xf32> -> vector<64x512xf32>
    %c0_4 = arith.constant 0 : index
    %c0_5 = arith.constant 0 : index
    %6 = vector.load %arg4[%c0_4, %c0_5] : memref<1x512xf32, #tpu.memory_space<vmem>>, vector<1x512xf32>
    %7 = vector.broadcast %6 : vector<1x512xf32> to vector<64x512xf32>
    %8 = arith.addf %5, %7 : vector<64x512xf32>
    %c0_6 = arith.constant 0 : index
    %c0_7 = arith.constant 0 : index
    %9 = vector.load %arg8[%c0_6, %c0_7] : memref<64x512xf32, #tpu.memory_space<vmem>>, vector<64x512xf32>
    tpu.vector_store %arg8[%c0_6, %c0_7], %8 {strides = array<i32>} : memref<64x512xf32, #tpu.memory_space<vmem>>, vector<64x512xf32>,
    %c0_8 = arith.constant 0 : index
    %c0_9 = arith.constant 0 : index
    %10 = vector.load %arg6[%c0_8, %c0_9] : memref<8x128xf32, #tpu.memory_space<vmem>>, vector<8x128xf32>
    %c0_10 = arith.constant 0 : index
    %c0_11 = arith.constant 0 : index
    %11 = vector.load %arg7[%c0_10, %c0_11] : memref<8x128xf32, #tpu.memory_space<vmem>>, vector<8x128xf32>
    %c0_12 = arith.constant 0 : index
    %c0_13 = arith.constant 0 : index
    %12 = vector.load %arg8[%c0_12, %c0_13] : memref<64x512xf32, #tpu.memory_space<vmem>>, vector<8x512xf32>
    %c0_14 = arith.constant 0 : index
    %c0_15 = arith.constant 0 : index
    %13 = vector.load %arg3[%c0_14, %c0_15] : memref<128x512xf32, #tpu.memory_space<vmem>>, vector<128x512xf32>
    %cst_16 = arith.constant dense<0.000000e+00> : vector<8x512xf32>
    %14 = tpu.matmul %10, %13, %cst_16 {dimension_numbers = #tpu.dot_dimension_numbers<[1], [0], [0], [1], [0, 0, 1, 1], [], []>} : vector<8x128xf32>, vector<128x512xf32>, vector<8x512xf32> -> vector<8x512xf32>
    %15 = arith.addf %12, %14 : vector<8x512xf32>
    %16 = vector.extract_strided_slice %15 {offsets = [0, 0], sizes = [8, 128], strides = [1, 1]} : vector<8x512xf32> to vector<8x128xf32>
    %17 = arith.negf %16 : vector<8x128xf32>
    %18 = math.exp %17 : vector<8x128xf32>
    %cst_17 = arith.constant 1.000000e+00 : f32
    %19 = vector.broadcast %cst_17 : f32 to vector<8x128xf32>
    %20 = arith.addf %19, %18 : vector<8x128xf32>
    %21 = arith.divf %19, %20 : vector<8x128xf32>
    %22 = vector.extract_strided_slice %15 {offsets = [0, 128], sizes = [8, 128], strides = [1, 1]} : vector<8x512xf32> to vector<8x128xf32>
    %23 = arith.negf %22 : vector<8x128xf32>
    %24 = math.exp %23 : vector<8x128xf32>
    %cst_18 = arith.constant 1.000000e+00 : f32
    %25 = vector.broadcast %cst_18 : f32 to vector<8x128xf32>
    %26 = arith.addf %25, %24 : vector<8x128xf32>
    %27 = arith.divf %25, %26 : vector<8x128xf32>
    %28 = vector.extract_strided_slice %15 {offsets = [0, 256], sizes = [8, 128], strides = [1, 1]} : vector<8x512xf32> to vector<8x128xf32>
    %29 = math.tanh %28 : vector<8x128xf32>
    %30 = vector.extract_strided_slice %15 {offsets = [0, 384], sizes = [8, 128], strides = [1, 1]} : vector<8x512xf32> to vector<8x128xf32>
    %31 = arith.negf %30 : vector<8x128xf32>
    %32 = math.exp %31 : vector<8x128xf32>
    %cst_19 = arith.constant 1.000000e+00 : f32
    %33 = vector.broadcast %cst_19 : f32 to vector<8x128xf32>
    %34 = arith.addf %33, %32 : vector<8x128xf32>
    %35 = arith.divf %33, %34 : vector<8x128xf32>
    %36 = arith.mulf %27, %11 : vector<8x128xf32>
    %37 = arith.mulf %21, %29 : vector<8x128xf32>
    %38 = arith.addf %36, %37 : vector<8x128xf32>
    %39 = math.tanh %38 : vector<8x128xf32>
    %40 = arith.mulf %35, %39 : vector<8x128xf32>
    %c0_20 = arith.constant 0 : index
    %c0_21 = arith.constant 0 : index
    %41 = vector.load %arg5[%c0_20, %c0_21] : memref<64x128xf32, #tpu.memory_space<vmem>>, vector<8x128xf32>
    tpu.vector_store %arg5[%c0_20, %c0_21], %40 {strides = array<i32>} : memref<64x128xf32, #tpu.memory_space<vmem>>, vector<8x128xf32>,
    %c8 = arith.constant 8 : index
    %c0_22 = arith.constant 0 : index
    %42 = vector.load %arg8[%c8, %c0_22] : memref<64x512xf32, #tpu.memory_space<vmem>>, vector<8x512xf32>
    %c0_23 = arith.constant 0 : index
    %c0_24 = arith.constant 0 : index
    %43 = vector.load %arg3[%c0_23, %c0_24] : memref<128x512xf32, #tpu.memory_space<vmem>>, vector<128x512xf32>
    %cst_25 = arith.constant dense<0.000000e+00> : vector<8x512xf32>
    %44 = tpu.matmul %40, %43, %cst_25 {dimension_numbers = #tpu.dot_dimension_numbers<[1], [0], [0], [1], [0, 0, 1, 1], [], []>} : vector<8x128xf32>, vector<128x512xf32>, vector<8x512xf32> -> vector<8x512xf32>
    %45 = arith.addf %42, %44 : vector<8x512xf32>
    %46 = vector.extract_strided_slice %45 {offsets = [0, 0], sizes = [8, 128], strides = [1, 1]} : vector<8x512xf32> to vector<8x128xf32>
    %47 = arith.negf %46 : vector<8x128xf32>
    %48 = math.exp %47 : vector<8x128xf32>
    %cst_26 = arith.constant 1.000000e+00 : f32
    %49 = vector.broadcast %cst_26 : f32 to vector<8x128xf32>
    %50 = arith.addf %49, %48 : vector<8x128xf32>
    %51 = arith.divf %49, %50 : vector<8x128xf32>
    %52 = vector.extract_strided_slice %45 {offsets = [0, 128], sizes = [8, 128], strides = [1, 1]} : vector<8x512xf32> to vector<8x128xf32>
    %53 = arith.negf %52 : vector<8x128xf32>
    %54 = math.exp %53 : vector<8x128xf32>
    %cst_27 = arith.constant 1.000000e+00 : f32
    %55 = vector.broadcast %cst_27 : f32 to vector<8x128xf32>
    %56 = arith.addf %55, %54 : vector<8x128xf32>
    %57 = arith.divf %55, %56 : vector<8x128xf32>
    %58 = vector.extract_strided_slice %45 {offsets = [0, 256], sizes = [8, 128], strides = [1, 1]} : vector<8x512xf32> to vector<8x128xf32>
    %59 = math.tanh %58 : vector<8x128xf32>
    %60 = vector.extract_strided_slice %45 {offsets = [0, 384], sizes = [8, 128], strides = [1, 1]} : vector<8x512xf32> to vector<8x128xf32>
    %61 = arith.negf %60 : vector<8x128xf32>
    %62 = math.exp %61 : vector<8x128xf32>
    %cst_28 = arith.constant 1.000000e+00 : f32
    %63 = vector.broadcast %cst_28 : f32 to vector<8x128xf32>
    %64 = arith.addf %63, %62 : vector<8x128xf32>
    %65 = arith.divf %63, %64 : vector<8x128xf32>
    %66 = arith.mulf %57, %38 : vector<8x128xf32>
    %67 = arith.mulf %51, %59 : vector<8x128xf32>
    %68 = arith.addf %66, %67 : vector<8x128xf32>
    %69 = math.tanh %68 : vector<8x128xf32>
    %70 = arith.mulf %65, %69 : vector<8x128xf32>
    %c8_29 = arith.constant 8 : index
    %c0_30 = arith.constant 0 : index
    %71 = vector.load %arg5[%c8_29, %c0_30] : memref<64x128xf32, #tpu.memory_space<vmem>>, vector<8x128xf32>
    tpu.vector_store %arg5[%c8_29, %c0_30], %70 {strides = array<i32>} : memref<64x128xf32, #tpu.memory_space<vmem>>, vector<8x128xf32>,
    %c16 = arith.constant 16 : index
    %c0_31 = arith.constant 0 : index
    %72 = vector.load %arg8[%c16, %c0_31] : memref<64x512xf32, #tpu.memory_space<vmem>>, vector<8x512xf32>
    %c0_32 = arith.constant 0 : index
    %c0_33 = arith.constant 0 : index
    %73 = vector.load %arg3[%c0_32, %c0_33] : memref<128x512xf32, #tpu.memory_space<vmem>>, vector<128x512xf32>
    %cst_34 = arith.constant dense<0.000000e+00> : vector<8x512xf32>
    %74 = tpu.matmul %70, %73, %cst_34 {dimension_numbers = #tpu.dot_dimension_numbers<[1], [0], [0], [1], [0, 0, 1, 1], [], []>} : vector<8x128xf32>, vector<128x512xf32>, vector<8x512xf32> -> vector<8x512xf32>
    %75 = arith.addf %72, %74 : vector<8x512xf32>
    %76 = vector.extract_strided_slice %75 {offsets = [0, 0], sizes = [8, 128], strides = [1, 1]} : vector<8x512xf32> to vector<8x128xf32>
    %77 = arith.negf %76 : vector<8x128xf32>
    %78 = math.exp %77 : vector<8x128xf32>
    %cst_35 = arith.constant 1.000000e+00 : f32
    %79 = vector.broadcast %cst_35 : f32 to vector<8x128xf32>
    %80 = arith.addf %79, %78 : vector<8x128xf32>
    %81 = arith.divf %79, %80 : vector<8x128xf32>
    %82 = vector.extract_strided_slice %75 {offsets = [0, 128], sizes = [8, 128], strides = [1, 1]} : vector<8x512xf32> to vector<8x128xf32>
    %83 = arith.negf %82 : vector<8x128xf32>
    %84 = math.exp %83 : vector<8x128xf32>
    %cst_36 = arith.constant 1.000000e+00 : f32
    %85 = vector.broadcast %cst_36 : f32 to vector<8x128xf32>
    %86 = arith.addf %85, %84 : vector<8x128xf32>
    %87 = arith.divf %85, %86 : vector<8x128xf32>
    %88 = vector.extract_strided_slice %75 {offsets = [0, 256], sizes = [8, 128], strides = [1, 1]} : vector<8x512xf32> to vector<8x128xf32>
    %89 = math.tanh %88 : vector<8x128xf32>
    %90 = vector.extract_strided_slice %75 {offsets = [0, 384], sizes = [8, 128], strides = [1, 1]} : vector<8x512xf32> to vector<8x128xf32>
    %91 = arith.negf %90 : vector<8x128xf32>
    %92 = math.exp %91 : vector<8x128xf32>
    %cst_37 = arith.constant 1.000000e+00 : f32
    %93 = vector.broadcast %cst_37 : f32 to vector<8x128xf32>
    %94 = arith.addf %93, %92 : vector<8x128xf32>
    %95 = arith.divf %93, %94 : vector<8x128xf32>
    %96 = arith.mulf %87, %68 : vector<8x128xf32>
    %97 = arith.mulf %81, %89 : vector<8x128xf32>
    %98 = arith.addf %96, %97 : vector<8x128xf32>
    %99 = math.tanh %98 : vector<8x128xf32>
    %100 = arith.mulf %95, %99 : vector<8x128xf32>
    %c16_38 = arith.constant 16 : index
    %c0_39 = arith.constant 0 : index
    %101 = vector.load %arg5[%c16_38, %c0_39] : memref<64x128xf32, #tpu.memory_space<vmem>>, vector<8x128xf32>
    tpu.vector_store %arg5[%c16_38, %c0_39], %100 {strides = array<i32>} : memref<64x128xf32, #tpu.memory_space<vmem>>, vector<8x128xf32>,
    %c24 = arith.constant 24 : index
    %c0_40 = arith.constant 0 : index
    %102 = vector.load %arg8[%c24, %c0_40] : memref<64x512xf32, #tpu.memory_space<vmem>>, vector<8x512xf32>
    %c0_41 = arith.constant 0 : index
    %c0_42 = arith.constant 0 : index
    %103 = vector.load %arg3[%c0_41, %c0_42] : memref<128x512xf32, #tpu.memory_space<vmem>>, vector<128x512xf32>
    %cst_43 = arith.constant dense<0.000000e+00> : vector<8x512xf32>
    %104 = tpu.matmul %100, %103, %cst_43 {dimension_numbers = #tpu.dot_dimension_numbers<[1], [0], [0], [1], [0, 0, 1, 1], [], []>} : vector<8x128xf32>, vector<128x512xf32>, vector<8x512xf32> -> vector<8x512xf32>
    %105 = arith.addf %102, %104 : vector<8x512xf32>
    %106 = vector.extract_strided_slice %105 {offsets = [0, 0], sizes = [8, 128], strides = [1, 1]} : vector<8x512xf32> to vector<8x128xf32>
    %107 = arith.negf %106 : vector<8x128xf32>
    %108 = math.exp %107 : vector<8x128xf32>
    %cst_44 = arith.constant 1.000000e+00 : f32
    %109 = vector.broadcast %cst_44 : f32 to vector<8x128xf32>
    %110 = arith.addf %109, %108 : vector<8x128xf32>
    %111 = arith.divf %109, %110 : vector<8x128xf32>
    %112 = vector.extract_strided_slice %105 {offsets = [0, 128], sizes = [8, 128], strides = [1, 1]} : vector<8x512xf32> to vector<8x128xf32>
    %113 = arith.negf %112 : vector<8x128xf32>
    %114 = math.exp %113 : vector<8x128xf32>
    %cst_45 = arith.constant 1.000000e+00 : f32
    %115 = vector.broadcast %cst_45 : f32 to vector<8x128xf32>
    %116 = arith.addf %115, %114 : vector<8x128xf32>
    %117 = arith.divf %115, %116 : vector<8x128xf32>
    %118 = vector.extract_strided_slice %105 {offsets = [0, 256], sizes = [8, 128], strides = [1, 1]} : vector<8x512xf32> to vector<8x128xf32>
    %119 = math.tanh %118 : vector<8x128xf32>
    %120 = vector.extract_strided_slice %105 {offsets = [0, 384], sizes = [8, 128], strides = [1, 1]} : vector<8x512xf32> to vector<8x128xf32>
    %121 = arith.negf %120 : vector<8x128xf32>
    %122 = math.exp %121 : vector<8x128xf32>
    %cst_46 = arith.constant 1.000000e+00 : f32
    %123 = vector.broadcast %cst_46 : f32 to vector<8x128xf32>
    %124 = arith.addf %123, %122 : vector<8x128xf32>
    %125 = arith.divf %123, %124 : vector<8x128xf32>
    %126 = arith.mulf %117, %98 : vector<8x128xf32>
    %127 = arith.mulf %111, %119 : vector<8x128xf32>
    %128 = arith.addf %126, %127 : vector<8x128xf32>
    %129 = math.tanh %128 : vector<8x128xf32>
    %130 = arith.mulf %125, %129 : vector<8x128xf32>
    %c24_47 = arith.constant 24 : index
    %c0_48 = arith.constant 0 : index
    %131 = vector.load %arg5[%c24_47, %c0_48] : memref<64x128xf32, #tpu.memory_space<vmem>>, vector<8x128xf32>
    tpu.vector_store %arg5[%c24_47, %c0_48], %130 {strides = array<i32>} : memref<64x128xf32, #tpu.memory_space<vmem>>, vector<8x128xf32>,
    %c32 = arith.constant 32 : index
    %c0_49 = arith.constant 0 : index
    %132 = vector.load %arg8[%c32, %c0_49] : memref<64x512xf32, #tpu.memory_space<vmem>>, vector<8x512xf32>
    %c0_50 = arith.constant 0 : index
    %c0_51 = arith.constant 0 : index
    %133 = vector.load %arg3[%c0_50, %c0_51] : memref<128x512xf32, #tpu.memory_space<vmem>>, vector<128x512xf32>
    %cst_52 = arith.constant dense<0.000000e+00> : vector<8x512xf32>
    %134 = tpu.matmul %130, %133, %cst_52 {dimension_numbers = #tpu.dot_dimension_numbers<[1], [0], [0], [1], [0, 0, 1, 1], [], []>} : vector<8x128xf32>, vector<128x512xf32>, vector<8x512xf32> -> vector<8x512xf32>
    %135 = arith.addf %132, %134 : vector<8x512xf32>
    %136 = vector.extract_strided_slice %135 {offsets = [0, 0], sizes = [8, 128], strides = [1, 1]} : vector<8x512xf32> to vector<8x128xf32>
    %137 = arith.negf %136 : vector<8x128xf32>
    %138 = math.exp %137 : vector<8x128xf32>
    %cst_53 = arith.constant 1.000000e+00 : f32
    %139 = vector.broadcast %cst_53 : f32 to vector<8x128xf32>
    %140 = arith.addf %139, %138 : vector<8x128xf32>
    %141 = arith.divf %139, %140 : vector<8x128xf32>
    %142 = vector.extract_strided_slice %135 {offsets = [0, 128], sizes = [8, 128], strides = [1, 1]} : vector<8x512xf32> to vector<8x128xf32>
    %143 = arith.negf %142 : vector<8x128xf32>
    %144 = math.exp %143 : vector<8x128xf32>
    %cst_54 = arith.constant 1.000000e+00 : f32
    %145 = vector.broadcast %cst_54 : f32 to vector<8x128xf32>
    %146 = arith.addf %145, %144 : vector<8x128xf32>
    %147 = arith.divf %145, %146 : vector<8x128xf32>
    %148 = vector.extract_strided_slice %135 {offsets = [0, 256], sizes = [8, 128], strides = [1, 1]} : vector<8x512xf32> to vector<8x128xf32>
    %149 = math.tanh %148 : vector<8x128xf32>
    %150 = vector.extract_strided_slice %135 {offsets = [0, 384], sizes = [8, 128], strides = [1, 1]} : vector<8x512xf32> to vector<8x128xf32>
    %151 = arith.negf %150 : vector<8x128xf32>
    %152 = math.exp %151 : vector<8x128xf32>
    %cst_55 = arith.constant 1.000000e+00 : f32
    %153 = vector.broadcast %cst_55 : f32 to vector<8x128xf32>
    %154 = arith.addf %153, %152 : vector<8x128xf32>
    %155 = arith.divf %153, %154 : vector<8x128xf32>
    %156 = arith.mulf %147, %128 : vector<8x128xf32>
    %157 = arith.mulf %141, %149 : vector<8x128xf32>
    %158 = arith.addf %156, %157 : vector<8x128xf32>
    %159 = math.tanh %158 : vector<8x128xf32>
    %160 = arith.mulf %155, %159 : vector<8x128xf32>
    %c32_56 = arith.constant 32 : index
    %c0_57 = arith.constant 0 : index
    %161 = vector.load %arg5[%c32_56, %c0_57] : memref<64x128xf32, #tpu.memory_space<vmem>>, vector<8x128xf32>
    tpu.vector_store %arg5[%c32_56, %c0_57], %160 {strides = array<i32>} : memref<64x128xf32, #tpu.memory_space<vmem>>, vector<8x128xf32>,
    %c40 = arith.constant 40 : index
    %c0_58 = arith.constant 0 : index
    %162 = vector.load %arg8[%c40, %c0_58] : memref<64x512xf32, #tpu.memory_space<vmem>>, vector<8x512xf32>
    %c0_59 = arith.constant 0 : index
    %c0_60 = arith.constant 0 : index
    %163 = vector.load %arg3[%c0_59, %c0_60] : memref<128x512xf32, #tpu.memory_space<vmem>>, vector<128x512xf32>
    %cst_61 = arith.constant dense<0.000000e+00> : vector<8x512xf32>
    %164 = tpu.matmul %160, %163, %cst_61 {dimension_numbers = #tpu.dot_dimension_numbers<[1], [0], [0], [1], [0, 0, 1, 1], [], []>} : vector<8x128xf32>, vector<128x512xf32>, vector<8x512xf32> -> vector<8x512xf32>
    %165 = arith.addf %162, %164 : vector<8x512xf32>
    %166 = vector.extract_strided_slice %165 {offsets = [0, 0], sizes = [8, 128], strides = [1, 1]} : vector<8x512xf32> to vector<8x128xf32>
    %167 = arith.negf %166 : vector<8x128xf32>
    %168 = math.exp %167 : vector<8x128xf32>
    %cst_62 = arith.constant 1.000000e+00 : f32
    %169 = vector.broadcast %cst_62 : f32 to vector<8x128xf32>
    %170 = arith.addf %169, %168 : vector<8x128xf32>
    %171 = arith.divf %169, %170 : vector<8x128xf32>
    %172 = vector.extract_strided_slice %165 {offsets = [0, 128], sizes = [8, 128], strides = [1, 1]} : vector<8x512xf32> to vector<8x128xf32>
    %173 = arith.negf %172 : vector<8x128xf32>
    %174 = math.exp %173 : vector<8x128xf32>
    %cst_63 = arith.constant 1.000000e+00 : f32
    %175 = vector.broadcast %cst_63 : f32 to vector<8x128xf32>
    %176 = arith.addf %175, %174 : vector<8x128xf32>
    %177 = arith.divf %175, %176 : vector<8x128xf32>
    %178 = vector.extract_strided_slice %165 {offsets = [0, 256], sizes = [8, 128], strides = [1, 1]} : vector<8x512xf32> to vector<8x128xf32>
    %179 = math.tanh %178 : vector<8x128xf32>
    %180 = vector.extract_strided_slice %165 {offsets = [0, 384], sizes = [8, 128], strides = [1, 1]} : vector<8x512xf32> to vector<8x128xf32>
    %181 = arith.negf %180 : vector<8x128xf32>
    %182 = math.exp %181 : vector<8x128xf32>
    %cst_64 = arith.constant 1.000000e+00 : f32
    %183 = vector.broadcast %cst_64 : f32 to vector<8x128xf32>
    %184 = arith.addf %183, %182 : vector<8x128xf32>
    %185 = arith.divf %183, %184 : vector<8x128xf32>
    %186 = arith.mulf %177, %158 : vector<8x128xf32>
    %187 = arith.mulf %171, %179 : vector<8x128xf32>
    %188 = arith.addf %186, %187 : vector<8x128xf32>
    %189 = math.tanh %188 : vector<8x128xf32>
    %190 = arith.mulf %185, %189 : vector<8x128xf32>
    %c40_65 = arith.constant 40 : index
    %c0_66 = arith.constant 0 : index
    %191 = vector.load %arg5[%c40_65, %c0_66] : memref<64x128xf32, #tpu.memory_space<vmem>>, vector<8x128xf32>
    tpu.vector_store %arg5[%c40_65, %c0_66], %190 {strides = array<i32>} : memref<64x128xf32, #tpu.memory_space<vmem>>, vector<8x128xf32>,
    %c48 = arith.constant 48 : index
    %c0_67 = arith.constant 0 : index
    %192 = vector.load %arg8[%c48, %c0_67] : memref<64x512xf32, #tpu.memory_space<vmem>>, vector<8x512xf32>
    %c0_68 = arith.constant 0 : index
    %c0_69 = arith.constant 0 : index
    %193 = vector.load %arg3[%c0_68, %c0_69] : memref<128x512xf32, #tpu.memory_space<vmem>>, vector<128x512xf32>
    %cst_70 = arith.constant dense<0.000000e+00> : vector<8x512xf32>
    %194 = tpu.matmul %190, %193, %cst_70 {dimension_numbers = #tpu.dot_dimension_numbers<[1], [0], [0], [1], [0, 0, 1, 1], [], []>} : vector<8x128xf32>, vector<128x512xf32>, vector<8x512xf32> -> vector<8x512xf32>
    %195 = arith.addf %192, %194 : vector<8x512xf32>
    %196 = vector.extract_strided_slice %195 {offsets = [0, 0], sizes = [8, 128], strides = [1, 1]} : vector<8x512xf32> to vector<8x128xf32>
    %197 = arith.negf %196 : vector<8x128xf32>
    %198 = math.exp %197 : vector<8x128xf32>
    %cst_71 = arith.constant 1.000000e+00 : f32
    %199 = vector.broadcast %cst_71 : f32 to vector<8x128xf32>
    %200 = arith.addf %199, %198 : vector<8x128xf32>
    %201 = arith.divf %199, %200 : vector<8x128xf32>
    %202 = vector.extract_strided_slice %195 {offsets = [0, 128], sizes = [8, 128], strides = [1, 1]} : vector<8x512xf32> to vector<8x128xf32>
    %203 = arith.negf %202 : vector<8x128xf32>
    %204 = math.exp %203 : vector<8x128xf32>
    %cst_72 = arith.constant 1.000000e+00 : f32
    %205 = vector.broadcast %cst_72 : f32 to vector<8x128xf32>
    %206 = arith.addf %205, %204 : vector<8x128xf32>
    %207 = arith.divf %205, %206 : vector<8x128xf32>
    %208 = vector.extract_strided_slice %195 {offsets = [0, 256], sizes = [8, 128], strides = [1, 1]} : vector<8x512xf32> to vector<8x128xf32>
    %209 = math.tanh %208 : vector<8x128xf32>
    %210 = vector.extract_strided_slice %195 {offsets = [0, 384], sizes = [8, 128], strides = [1, 1]} : vector<8x512xf32> to vector<8x128xf32>
    %211 = arith.negf %210 : vector<8x128xf32>
    %212 = math.exp %211 : vector<8x128xf32>
    %cst_73 = arith.constant 1.000000e+00 : f32
    %213 = vector.broadcast %cst_73 : f32 to vector<8x128xf32>
    %214 = arith.addf %213, %212 : vector<8x128xf32>
    %215 = arith.divf %213, %214 : vector<8x128xf32>
    %216 = arith.mulf %207, %188 : vector<8x128xf32>
    %217 = arith.mulf %201, %209 : vector<8x128xf32>
    %218 = arith.addf %216, %217 : vector<8x128xf32>
    %219 = math.tanh %218 : vector<8x128xf32>
    %220 = arith.mulf %215, %219 : vector<8x128xf32>
    %c48_74 = arith.constant 48 : index
    %c0_75 = arith.constant 0 : index
    %221 = vector.load %arg5[%c48_74, %c0_75] : memref<64x128xf32, #tpu.memory_space<vmem>>, vector<8x128xf32>
    tpu.vector_store %arg5[%c48_74, %c0_75], %220 {strides = array<i32>} : memref<64x128xf32, #tpu.memory_space<vmem>>, vector<8x128xf32>,
    %c56 = arith.constant 56 : index
    %c0_76 = arith.constant 0 : index
    %222 = vector.load %arg8[%c56, %c0_76] : memref<64x512xf32, #tpu.memory_space<vmem>>, vector<8x512xf32>
    %c0_77 = arith.constant 0 : index
    %c0_78 = arith.constant 0 : index
    %223 = vector.load %arg3[%c0_77, %c0_78] : memref<128x512xf32, #tpu.memory_space<vmem>>, vector<128x512xf32>
    %cst_79 = arith.constant dense<0.000000e+00> : vector<8x512xf32>
    %224 = tpu.matmul %220, %223, %cst_79 {dimension_numbers = #tpu.dot_dimension_numbers<[1], [0], [0], [1], [0, 0, 1, 1], [], []>} : vector<8x128xf32>, vector<128x512xf32>, vector<8x512xf32> -> vector<8x512xf32>
    %225 = arith.addf %222, %224 : vector<8x512xf32>
    %226 = vector.extract_strided_slice %225 {offsets = [0, 0], sizes = [8, 128], strides = [1, 1]} : vector<8x512xf32> to vector<8x128xf32>
    %227 = arith.negf %226 : vector<8x128xf32>
    %228 = math.exp %227 : vector<8x128xf32>
    %cst_80 = arith.constant 1.000000e+00 : f32
    %229 = vector.broadcast %cst_80 : f32 to vector<8x128xf32>
    %230 = arith.addf %229, %228 : vector<8x128xf32>
    %231 = arith.divf %229, %230 : vector<8x128xf32>
    %232 = vector.extract_strided_slice %225 {offsets = [0, 128], sizes = [8, 128], strides = [1, 1]} : vector<8x512xf32> to vector<8x128xf32>
    %233 = arith.negf %232 : vector<8x128xf32>
    %234 = math.exp %233 : vector<8x128xf32>
    %cst_81 = arith.constant 1.000000e+00 : f32
    %235 = vector.broadcast %cst_81 : f32 to vector<8x128xf32>
    %236 = arith.addf %235, %234 : vector<8x128xf32>
    %237 = arith.divf %235, %236 : vector<8x128xf32>
    %238 = vector.extract_strided_slice %225 {offsets = [0, 256], sizes = [8, 128], strides = [1, 1]} : vector<8x512xf32> to vector<8x128xf32>
    %239 = math.tanh %238 : vector<8x128xf32>
    %240 = vector.extract_strided_slice %225 {offsets = [0, 384], sizes = [8, 128], strides = [1, 1]} : vector<8x512xf32> to vector<8x128xf32>
    %241 = arith.negf %240 : vector<8x128xf32>
    %242 = math.exp %241 : vector<8x128xf32>
    %cst_82 = arith.constant 1.000000e+00 : f32
    %243 = vector.broadcast %cst_82 : f32 to vector<8x128xf32>
    %244 = arith.addf %243, %242 : vector<8x128xf32>
    %245 = arith.divf %243, %244 : vector<8x128xf32>
    %246 = arith.mulf %237, %218 : vector<8x128xf32>
    %247 = arith.mulf %231, %239 : vector<8x128xf32>
    %248 = arith.addf %246, %247 : vector<8x128xf32>
    %249 = math.tanh %248 : vector<8x128xf32>
    %250 = arith.mulf %245, %249 : vector<8x128xf32>
    %c56_83 = arith.constant 56 : index
    %c0_84 = arith.constant 0 : index
    %251 = vector.load %arg5[%c56_83, %c0_84] : memref<64x128xf32, #tpu.memory_space<vmem>>, vector<8x128xf32>
    tpu.vector_store %arg5[%c56_83, %c0_84], %250 {strides = array<i32>} : memref<64x128xf32, #tpu.memory_space<vmem>>, vector<8x128xf32>,
    %c0_85 = arith.constant 0 : index
    %c0_86 = arith.constant 0 : index
    %252 = vector.load %arg6[%c0_85, %c0_86] : memref<8x128xf32, #tpu.memory_space<vmem>>, vector<8x128xf32>
    tpu.vector_store %arg6[%c0_85, %c0_86], %250 {strides = array<i32>} : memref<8x128xf32, #tpu.memory_space<vmem>>, vector<8x128xf32>,
    %c0_87 = arith.constant 0 : index
    %c0_88 = arith.constant 0 : index
    %253 = vector.load %arg7[%c0_87, %c0_88] : memref<8x128xf32, #tpu.memory_space<vmem>>, vector<8x128xf32>
    tpu.vector_store %arg7[%c0_87, %c0_88], %248 {strides = array<i32>} : memref<8x128xf32, #tpu.memory_space<vmem>>, vector<8x128xf32>,
    return
  }
  func.func @transform_0(%arg0: i32) -> (i32, i32) {
    %c0_i32 = arith.constant 0 : i32
    %c0_i32_0 = arith.constant 0 : i32
    return %arg0, %c0_i32 : i32, i32
  }
  func.func @transform_1(%arg0: i32) -> (i32, i32) {
    %c0_i32 = arith.constant 0 : i32
    %c0_i32_0 = arith.constant 0 : i32
    %c0_i32_1 = arith.constant 0 : i32
    return %c0_i32, %c0_i32_0 : i32, i32
  }
  func.func @transform_2(%arg0: i32) -> (i32, i32) {
    %c0_i32 = arith.constant 0 : i32
    %c0_i32_0 = arith.constant 0 : i32
    %c0_i32_1 = arith.constant 0 : i32
    return %c0_i32, %c0_i32_0 : i32, i32
  }
  func.func @transform_3(%arg0: i32) -> (i32, i32) {
    %c0_i32 = arith.constant 0 : i32
    %c0_i32_0 = arith.constant 0 : i32
    %c0_i32_1 = arith.constant 0 : i32
    return %c0_i32, %c0_i32_0 : i32, i32
  }
  func.func @transform_4(%arg0: i32) -> (i32, i32) {
    %c0_i32 = arith.constant 0 : i32
    %c0_i32_0 = arith.constant 0 : i32
    return %arg0, %c0_i32 : i32, i32
  }
}

module attributes {stable_mosaic.version = 11 : i64} {
  func.func @lstm_fc_kernel(%arg0: i32, %arg1: memref<64x128xf32, #tpu.memory_space<vmem>>, %arg2: memref<128x512xf32, #tpu.memory_space<vmem>>, %arg3: memref<128x512xf32, #tpu.memory_space<vmem>>, %arg4: memref<1x512xf32, #tpu.memory_space<vmem>>, %arg5: memref<128x128xf32, #tpu.memory_space<vmem>>, %arg6: memref<1x128xf32, #tpu.memory_space<vmem>>, %arg7: memref<8x128xf32, #tpu.memory_space<vmem>>, %arg8: memref<8x128xf32, #tpu.memory_space<vmem>>, %arg9: memref<8x128xf32, #tpu.memory_space<vmem>>, %arg10: memref<64x512xf32, #tpu.memory_space<vmem>>) attributes {dimension_semantics = [#tpu.dimension_semantics<arbitrary>], iteration_bounds = array<i64: 1>, scalar_prefetch = 0 : i64, scratch_operands = 3 : i64, tpu.core_type = #tpu.core_type<tc>, window_params = [{transform_indices = @transform_0, window_bounds = array<i64: 64, 128>}, {pipeline_mode = #tpu.pipeline_mode<synchronous>, transform_indices = @transform_1, window_bounds = array<i64: 128, 512>}, {pipeline_mode = #tpu.pipeline_mode<synchronous>, transform_indices = @transform_2, window_bounds = array<i64: 128, 512>}, {pipeline_mode = #tpu.pipeline_mode<synchronous>, transform_indices = @transform_3, window_bounds = array<i64: 1, 512>}, {pipeline_mode = #tpu.pipeline_mode<synchronous>, transform_indices = @transform_4, window_bounds = array<i64: 128, 128>}, {pipeline_mode = #tpu.pipeline_mode<synchronous>, transform_indices = @transform_5, window_bounds = array<i64: 1, 128>}, {pipeline_mode = #tpu.pipeline_mode<synchronous>, transform_indices = @transform_6, window_bounds = array<i64: 8, 128>}]} {
    %c0_i32 = arith.constant 0 : i32
    %0 = arith.cmpi eq, %arg0, %c0_i32 : i32
    %1 = arith.extui %0 : i1 to i32
    %c0_i32_0 = arith.constant 0 : i32
    %2 = arith.cmpi ne, %1, %c0_i32_0 : i32
    scf.if %2 {
      %cst_75 = arith.constant 0.000000e+00 : f32
      %249 = vector.broadcast %cst_75 : f32 to vector<8x128xf32>
      %c0_76 = arith.constant 0 : index
      %c0_77 = arith.constant 0 : index
      %250 = vector.load %arg8[%c0_76, %c0_77] : memref<8x128xf32, #tpu.memory_space<vmem>>, vector<8x128xf32>
      tpu.vector_store %arg8[%c0_76, %c0_77], %249 {strides = array<i32>} : memref<8x128xf32, #tpu.memory_space<vmem>>, vector<8x128xf32>,
      %cst_78 = arith.constant 0.000000e+00 : f32
      %251 = vector.broadcast %cst_78 : f32 to vector<8x128xf32>
      %c0_79 = arith.constant 0 : index
      %c0_80 = arith.constant 0 : index
      %252 = vector.load %arg9[%c0_79, %c0_80] : memref<8x128xf32, #tpu.memory_space<vmem>>, vector<8x128xf32>
      tpu.vector_store %arg9[%c0_79, %c0_80], %251 {strides = array<i32>} : memref<8x128xf32, #tpu.memory_space<vmem>>, vector<8x128xf32>,
    } else {
    }
    %c0 = arith.constant 0 : index
    %c0_1 = arith.constant 0 : index
    %3 = vector.load %arg1[%c0, %c0_1] : memref<64x128xf32, #tpu.memory_space<vmem>>, vector<64x128xf32>
    %c0_2 = arith.constant 0 : index
    %c0_3 = arith.constant 0 : index
    %4 = vector.load %arg2[%c0_2, %c0_3] : memref<128x512xf32, #tpu.memory_space<vmem>>, vector<128x512xf32>
    %cst = arith.constant dense<0.000000e+00> : vector<64x512xf32>
    %5 = tpu.matmul %3, %4, %cst {dimension_numbers = #tpu.dot_dimension_numbers<[1], [0], [0], [1], [0, 0, 1, 1], [], []>} : vector<64x128xf32>, vector<128x512xf32>, vector<64x512xf32> -> vector<64x512xf32>
    %c0_4 = arith.constant 0 : index
    %c0_5 = arith.constant 0 : index
    %6 = vector.load %arg4[%c0_4, %c0_5] : memref<1x512xf32, #tpu.memory_space<vmem>>, vector<1x512xf32>
    %7 = vector.broadcast %6 : vector<1x512xf32> to vector<64x512xf32>
    %8 = arith.addf %5, %7 : vector<64x512xf32>
    %c0_6 = arith.constant 0 : index
    %c0_7 = arith.constant 0 : index
    %9 = vector.load %arg10[%c0_6, %c0_7] : memref<64x512xf32, #tpu.memory_space<vmem>>, vector<64x512xf32>
    tpu.vector_store %arg10[%c0_6, %c0_7], %8 {strides = array<i32>} : memref<64x512xf32, #tpu.memory_space<vmem>>, vector<64x512xf32>,
    %c0_8 = arith.constant 0 : index
    %c0_9 = arith.constant 0 : index
    %10 = vector.load %arg8[%c0_8, %c0_9] : memref<8x128xf32, #tpu.memory_space<vmem>>, vector<8x128xf32>
    %c0_10 = arith.constant 0 : index
    %c0_11 = arith.constant 0 : index
    %11 = vector.load %arg9[%c0_10, %c0_11] : memref<8x128xf32, #tpu.memory_space<vmem>>, vector<8x128xf32>
    %c0_12 = arith.constant 0 : index
    %c0_13 = arith.constant 0 : index
    %12 = vector.load %arg10[%c0_12, %c0_13] : memref<64x512xf32, #tpu.memory_space<vmem>>, vector<8x512xf32>
    %c0_14 = arith.constant 0 : index
    %c0_15 = arith.constant 0 : index
    %13 = vector.load %arg3[%c0_14, %c0_15] : memref<128x512xf32, #tpu.memory_space<vmem>>, vector<128x512xf32>
    %cst_16 = arith.constant dense<0.000000e+00> : vector<8x512xf32>
    %14 = tpu.matmul %10, %13, %cst_16 {dimension_numbers = #tpu.dot_dimension_numbers<[1], [0], [0], [1], [0, 0, 1, 1], [], []>} : vector<8x128xf32>, vector<128x512xf32>, vector<8x512xf32> -> vector<8x512xf32>
    %15 = arith.addf %12, %14 : vector<8x512xf32>
    %16 = vector.extract_strided_slice %15 {offsets = [0, 0], sizes = [8, 128], strides = [1, 1]} : vector<8x512xf32> to vector<8x128xf32>
    %17 = arith.negf %16 : vector<8x128xf32>
    %18 = math.exp %17 : vector<8x128xf32>
    %cst_17 = arith.constant 1.000000e+00 : f32
    %19 = vector.broadcast %cst_17 : f32 to vector<8x128xf32>
    %20 = arith.addf %19, %18 : vector<8x128xf32>
    %21 = arith.divf %19, %20 : vector<8x128xf32>
    %22 = vector.extract_strided_slice %15 {offsets = [0, 128], sizes = [8, 128], strides = [1, 1]} : vector<8x512xf32> to vector<8x128xf32>
    %23 = arith.negf %22 : vector<8x128xf32>
    %24 = math.exp %23 : vector<8x128xf32>
    %cst_18 = arith.constant 1.000000e+00 : f32
    %25 = vector.broadcast %cst_18 : f32 to vector<8x128xf32>
    %26 = arith.addf %25, %24 : vector<8x128xf32>
    %27 = arith.divf %25, %26 : vector<8x128xf32>
    %28 = vector.extract_strided_slice %15 {offsets = [0, 256], sizes = [8, 128], strides = [1, 1]} : vector<8x512xf32> to vector<8x128xf32>
    %29 = math.tanh %28 : vector<8x128xf32>
    %30 = vector.extract_strided_slice %15 {offsets = [0, 384], sizes = [8, 128], strides = [1, 1]} : vector<8x512xf32> to vector<8x128xf32>
    %31 = arith.negf %30 : vector<8x128xf32>
    %32 = math.exp %31 : vector<8x128xf32>
    %cst_19 = arith.constant 1.000000e+00 : f32
    %33 = vector.broadcast %cst_19 : f32 to vector<8x128xf32>
    %34 = arith.addf %33, %32 : vector<8x128xf32>
    %35 = arith.divf %33, %34 : vector<8x128xf32>
    %36 = arith.mulf %27, %11 : vector<8x128xf32>
    %37 = arith.mulf %21, %29 : vector<8x128xf32>
    %38 = arith.addf %36, %37 : vector<8x128xf32>
    %39 = math.tanh %38 : vector<8x128xf32>
    %40 = arith.mulf %35, %39 : vector<8x128xf32>
    %c8 = arith.constant 8 : index
    %c0_20 = arith.constant 0 : index
    %41 = vector.load %arg10[%c8, %c0_20] : memref<64x512xf32, #tpu.memory_space<vmem>>, vector<8x512xf32>
    %c0_21 = arith.constant 0 : index
    %c0_22 = arith.constant 0 : index
    %42 = vector.load %arg3[%c0_21, %c0_22] : memref<128x512xf32, #tpu.memory_space<vmem>>, vector<128x512xf32>
    %cst_23 = arith.constant dense<0.000000e+00> : vector<8x512xf32>
    %43 = tpu.matmul %40, %42, %cst_23 {dimension_numbers = #tpu.dot_dimension_numbers<[1], [0], [0], [1], [0, 0, 1, 1], [], []>} : vector<8x128xf32>, vector<128x512xf32>, vector<8x512xf32> -> vector<8x512xf32>
    %44 = arith.addf %41, %43 : vector<8x512xf32>
    %45 = vector.extract_strided_slice %44 {offsets = [0, 0], sizes = [8, 128], strides = [1, 1]} : vector<8x512xf32> to vector<8x128xf32>
    %46 = arith.negf %45 : vector<8x128xf32>
    %47 = math.exp %46 : vector<8x128xf32>
    %cst_24 = arith.constant 1.000000e+00 : f32
    %48 = vector.broadcast %cst_24 : f32 to vector<8x128xf32>
    %49 = arith.addf %48, %47 : vector<8x128xf32>
    %50 = arith.divf %48, %49 : vector<8x128xf32>
    %51 = vector.extract_strided_slice %44 {offsets = [0, 128], sizes = [8, 128], strides = [1, 1]} : vector<8x512xf32> to vector<8x128xf32>
    %52 = arith.negf %51 : vector<8x128xf32>
    %53 = math.exp %52 : vector<8x128xf32>
    %cst_25 = arith.constant 1.000000e+00 : f32
    %54 = vector.broadcast %cst_25 : f32 to vector<8x128xf32>
    %55 = arith.addf %54, %53 : vector<8x128xf32>
    %56 = arith.divf %54, %55 : vector<8x128xf32>
    %57 = vector.extract_strided_slice %44 {offsets = [0, 256], sizes = [8, 128], strides = [1, 1]} : vector<8x512xf32> to vector<8x128xf32>
    %58 = math.tanh %57 : vector<8x128xf32>
    %59 = vector.extract_strided_slice %44 {offsets = [0, 384], sizes = [8, 128], strides = [1, 1]} : vector<8x512xf32> to vector<8x128xf32>
    %60 = arith.negf %59 : vector<8x128xf32>
    %61 = math.exp %60 : vector<8x128xf32>
    %cst_26 = arith.constant 1.000000e+00 : f32
    %62 = vector.broadcast %cst_26 : f32 to vector<8x128xf32>
    %63 = arith.addf %62, %61 : vector<8x128xf32>
    %64 = arith.divf %62, %63 : vector<8x128xf32>
    %65 = arith.mulf %56, %38 : vector<8x128xf32>
    %66 = arith.mulf %50, %58 : vector<8x128xf32>
    %67 = arith.addf %65, %66 : vector<8x128xf32>
    %68 = math.tanh %67 : vector<8x128xf32>
    %69 = arith.mulf %64, %68 : vector<8x128xf32>
    %c16 = arith.constant 16 : index
    %c0_27 = arith.constant 0 : index
    %70 = vector.load %arg10[%c16, %c0_27] : memref<64x512xf32, #tpu.memory_space<vmem>>, vector<8x512xf32>
    %c0_28 = arith.constant 0 : index
    %c0_29 = arith.constant 0 : index
    %71 = vector.load %arg3[%c0_28, %c0_29] : memref<128x512xf32, #tpu.memory_space<vmem>>, vector<128x512xf32>
    %cst_30 = arith.constant dense<0.000000e+00> : vector<8x512xf32>
    %72 = tpu.matmul %69, %71, %cst_30 {dimension_numbers = #tpu.dot_dimension_numbers<[1], [0], [0], [1], [0, 0, 1, 1], [], []>} : vector<8x128xf32>, vector<128x512xf32>, vector<8x512xf32> -> vector<8x512xf32>
    %73 = arith.addf %70, %72 : vector<8x512xf32>
    %74 = vector.extract_strided_slice %73 {offsets = [0, 0], sizes = [8, 128], strides = [1, 1]} : vector<8x512xf32> to vector<8x128xf32>
    %75 = arith.negf %74 : vector<8x128xf32>
    %76 = math.exp %75 : vector<8x128xf32>
    %cst_31 = arith.constant 1.000000e+00 : f32
    %77 = vector.broadcast %cst_31 : f32 to vector<8x128xf32>
    %78 = arith.addf %77, %76 : vector<8x128xf32>
    %79 = arith.divf %77, %78 : vector<8x128xf32>
    %80 = vector.extract_strided_slice %73 {offsets = [0, 128], sizes = [8, 128], strides = [1, 1]} : vector<8x512xf32> to vector<8x128xf32>
    %81 = arith.negf %80 : vector<8x128xf32>
    %82 = math.exp %81 : vector<8x128xf32>
    %cst_32 = arith.constant 1.000000e+00 : f32
    %83 = vector.broadcast %cst_32 : f32 to vector<8x128xf32>
    %84 = arith.addf %83, %82 : vector<8x128xf32>
    %85 = arith.divf %83, %84 : vector<8x128xf32>
    %86 = vector.extract_strided_slice %73 {offsets = [0, 256], sizes = [8, 128], strides = [1, 1]} : vector<8x512xf32> to vector<8x128xf32>
    %87 = math.tanh %86 : vector<8x128xf32>
    %88 = vector.extract_strided_slice %73 {offsets = [0, 384], sizes = [8, 128], strides = [1, 1]} : vector<8x512xf32> to vector<8x128xf32>
    %89 = arith.negf %88 : vector<8x128xf32>
    %90 = math.exp %89 : vector<8x128xf32>
    %cst_33 = arith.constant 1.000000e+00 : f32
    %91 = vector.broadcast %cst_33 : f32 to vector<8x128xf32>
    %92 = arith.addf %91, %90 : vector<8x128xf32>
    %93 = arith.divf %91, %92 : vector<8x128xf32>
    %94 = arith.mulf %85, %67 : vector<8x128xf32>
    %95 = arith.mulf %79, %87 : vector<8x128xf32>
    %96 = arith.addf %94, %95 : vector<8x128xf32>
    %97 = math.tanh %96 : vector<8x128xf32>
    %98 = arith.mulf %93, %97 : vector<8x128xf32>
    %c24 = arith.constant 24 : index
    %c0_34 = arith.constant 0 : index
    %99 = vector.load %arg10[%c24, %c0_34] : memref<64x512xf32, #tpu.memory_space<vmem>>, vector<8x512xf32>
    %c0_35 = arith.constant 0 : index
    %c0_36 = arith.constant 0 : index
    %100 = vector.load %arg3[%c0_35, %c0_36] : memref<128x512xf32, #tpu.memory_space<vmem>>, vector<128x512xf32>
    %cst_37 = arith.constant dense<0.000000e+00> : vector<8x512xf32>
    %101 = tpu.matmul %98, %100, %cst_37 {dimension_numbers = #tpu.dot_dimension_numbers<[1], [0], [0], [1], [0, 0, 1, 1], [], []>} : vector<8x128xf32>, vector<128x512xf32>, vector<8x512xf32> -> vector<8x512xf32>
    %102 = arith.addf %99, %101 : vector<8x512xf32>
    %103 = vector.extract_strided_slice %102 {offsets = [0, 0], sizes = [8, 128], strides = [1, 1]} : vector<8x512xf32> to vector<8x128xf32>
    %104 = arith.negf %103 : vector<8x128xf32>
    %105 = math.exp %104 : vector<8x128xf32>
    %cst_38 = arith.constant 1.000000e+00 : f32
    %106 = vector.broadcast %cst_38 : f32 to vector<8x128xf32>
    %107 = arith.addf %106, %105 : vector<8x128xf32>
    %108 = arith.divf %106, %107 : vector<8x128xf32>
    %109 = vector.extract_strided_slice %102 {offsets = [0, 128], sizes = [8, 128], strides = [1, 1]} : vector<8x512xf32> to vector<8x128xf32>
    %110 = arith.negf %109 : vector<8x128xf32>
    %111 = math.exp %110 : vector<8x128xf32>
    %cst_39 = arith.constant 1.000000e+00 : f32
    %112 = vector.broadcast %cst_39 : f32 to vector<8x128xf32>
    %113 = arith.addf %112, %111 : vector<8x128xf32>
    %114 = arith.divf %112, %113 : vector<8x128xf32>
    %115 = vector.extract_strided_slice %102 {offsets = [0, 256], sizes = [8, 128], strides = [1, 1]} : vector<8x512xf32> to vector<8x128xf32>
    %116 = math.tanh %115 : vector<8x128xf32>
    %117 = vector.extract_strided_slice %102 {offsets = [0, 384], sizes = [8, 128], strides = [1, 1]} : vector<8x512xf32> to vector<8x128xf32>
    %118 = arith.negf %117 : vector<8x128xf32>
    %119 = math.exp %118 : vector<8x128xf32>
    %cst_40 = arith.constant 1.000000e+00 : f32
    %120 = vector.broadcast %cst_40 : f32 to vector<8x128xf32>
    %121 = arith.addf %120, %119 : vector<8x128xf32>
    %122 = arith.divf %120, %121 : vector<8x128xf32>
    %123 = arith.mulf %114, %96 : vector<8x128xf32>
    %124 = arith.mulf %108, %116 : vector<8x128xf32>
    %125 = arith.addf %123, %124 : vector<8x128xf32>
    %126 = math.tanh %125 : vector<8x128xf32>
    %127 = arith.mulf %122, %126 : vector<8x128xf32>
    %c32 = arith.constant 32 : index
    %c0_41 = arith.constant 0 : index
    %128 = vector.load %arg10[%c32, %c0_41] : memref<64x512xf32, #tpu.memory_space<vmem>>, vector<8x512xf32>
    %c0_42 = arith.constant 0 : index
    %c0_43 = arith.constant 0 : index
    %129 = vector.load %arg3[%c0_42, %c0_43] : memref<128x512xf32, #tpu.memory_space<vmem>>, vector<128x512xf32>
    %cst_44 = arith.constant dense<0.000000e+00> : vector<8x512xf32>
    %130 = tpu.matmul %127, %129, %cst_44 {dimension_numbers = #tpu.dot_dimension_numbers<[1], [0], [0], [1], [0, 0, 1, 1], [], []>} : vector<8x128xf32>, vector<128x512xf32>, vector<8x512xf32> -> vector<8x512xf32>
    %131 = arith.addf %128, %130 : vector<8x512xf32>
    %132 = vector.extract_strided_slice %131 {offsets = [0, 0], sizes = [8, 128], strides = [1, 1]} : vector<8x512xf32> to vector<8x128xf32>
    %133 = arith.negf %132 : vector<8x128xf32>
    %134 = math.exp %133 : vector<8x128xf32>
    %cst_45 = arith.constant 1.000000e+00 : f32
    %135 = vector.broadcast %cst_45 : f32 to vector<8x128xf32>
    %136 = arith.addf %135, %134 : vector<8x128xf32>
    %137 = arith.divf %135, %136 : vector<8x128xf32>
    %138 = vector.extract_strided_slice %131 {offsets = [0, 128], sizes = [8, 128], strides = [1, 1]} : vector<8x512xf32> to vector<8x128xf32>
    %139 = arith.negf %138 : vector<8x128xf32>
    %140 = math.exp %139 : vector<8x128xf32>
    %cst_46 = arith.constant 1.000000e+00 : f32
    %141 = vector.broadcast %cst_46 : f32 to vector<8x128xf32>
    %142 = arith.addf %141, %140 : vector<8x128xf32>
    %143 = arith.divf %141, %142 : vector<8x128xf32>
    %144 = vector.extract_strided_slice %131 {offsets = [0, 256], sizes = [8, 128], strides = [1, 1]} : vector<8x512xf32> to vector<8x128xf32>
    %145 = math.tanh %144 : vector<8x128xf32>
    %146 = vector.extract_strided_slice %131 {offsets = [0, 384], sizes = [8, 128], strides = [1, 1]} : vector<8x512xf32> to vector<8x128xf32>
    %147 = arith.negf %146 : vector<8x128xf32>
    %148 = math.exp %147 : vector<8x128xf32>
    %cst_47 = arith.constant 1.000000e+00 : f32
    %149 = vector.broadcast %cst_47 : f32 to vector<8x128xf32>
    %150 = arith.addf %149, %148 : vector<8x128xf32>
    %151 = arith.divf %149, %150 : vector<8x128xf32>
    %152 = arith.mulf %143, %125 : vector<8x128xf32>
    %153 = arith.mulf %137, %145 : vector<8x128xf32>
    %154 = arith.addf %152, %153 : vector<8x128xf32>
    %155 = math.tanh %154 : vector<8x128xf32>
    %156 = arith.mulf %151, %155 : vector<8x128xf32>
    %c40 = arith.constant 40 : index
    %c0_48 = arith.constant 0 : index
    %157 = vector.load %arg10[%c40, %c0_48] : memref<64x512xf32, #tpu.memory_space<vmem>>, vector<8x512xf32>
    %c0_49 = arith.constant 0 : index
    %c0_50 = arith.constant 0 : index
    %158 = vector.load %arg3[%c0_49, %c0_50] : memref<128x512xf32, #tpu.memory_space<vmem>>, vector<128x512xf32>
    %cst_51 = arith.constant dense<0.000000e+00> : vector<8x512xf32>
    %159 = tpu.matmul %156, %158, %cst_51 {dimension_numbers = #tpu.dot_dimension_numbers<[1], [0], [0], [1], [0, 0, 1, 1], [], []>} : vector<8x128xf32>, vector<128x512xf32>, vector<8x512xf32> -> vector<8x512xf32>
    %160 = arith.addf %157, %159 : vector<8x512xf32>
    %161 = vector.extract_strided_slice %160 {offsets = [0, 0], sizes = [8, 128], strides = [1, 1]} : vector<8x512xf32> to vector<8x128xf32>
    %162 = arith.negf %161 : vector<8x128xf32>
    %163 = math.exp %162 : vector<8x128xf32>
    %cst_52 = arith.constant 1.000000e+00 : f32
    %164 = vector.broadcast %cst_52 : f32 to vector<8x128xf32>
    %165 = arith.addf %164, %163 : vector<8x128xf32>
    %166 = arith.divf %164, %165 : vector<8x128xf32>
    %167 = vector.extract_strided_slice %160 {offsets = [0, 128], sizes = [8, 128], strides = [1, 1]} : vector<8x512xf32> to vector<8x128xf32>
    %168 = arith.negf %167 : vector<8x128xf32>
    %169 = math.exp %168 : vector<8x128xf32>
    %cst_53 = arith.constant 1.000000e+00 : f32
    %170 = vector.broadcast %cst_53 : f32 to vector<8x128xf32>
    %171 = arith.addf %170, %169 : vector<8x128xf32>
    %172 = arith.divf %170, %171 : vector<8x128xf32>
    %173 = vector.extract_strided_slice %160 {offsets = [0, 256], sizes = [8, 128], strides = [1, 1]} : vector<8x512xf32> to vector<8x128xf32>
    %174 = math.tanh %173 : vector<8x128xf32>
    %175 = vector.extract_strided_slice %160 {offsets = [0, 384], sizes = [8, 128], strides = [1, 1]} : vector<8x512xf32> to vector<8x128xf32>
    %176 = arith.negf %175 : vector<8x128xf32>
    %177 = math.exp %176 : vector<8x128xf32>
    %cst_54 = arith.constant 1.000000e+00 : f32
    %178 = vector.broadcast %cst_54 : f32 to vector<8x128xf32>
    %179 = arith.addf %178, %177 : vector<8x128xf32>
    %180 = arith.divf %178, %179 : vector<8x128xf32>
    %181 = arith.mulf %172, %154 : vector<8x128xf32>
    %182 = arith.mulf %166, %174 : vector<8x128xf32>
    %183 = arith.addf %181, %182 : vector<8x128xf32>
    %184 = math.tanh %183 : vector<8x128xf32>
    %185 = arith.mulf %180, %184 : vector<8x128xf32>
    %c48 = arith.constant 48 : index
    %c0_55 = arith.constant 0 : index
    %186 = vector.load %arg10[%c48, %c0_55] : memref<64x512xf32, #tpu.memory_space<vmem>>, vector<8x512xf32>
    %c0_56 = arith.constant 0 : index
    %c0_57 = arith.constant 0 : index
    %187 = vector.load %arg3[%c0_56, %c0_57] : memref<128x512xf32, #tpu.memory_space<vmem>>, vector<128x512xf32>
    %cst_58 = arith.constant dense<0.000000e+00> : vector<8x512xf32>
    %188 = tpu.matmul %185, %187, %cst_58 {dimension_numbers = #tpu.dot_dimension_numbers<[1], [0], [0], [1], [0, 0, 1, 1], [], []>} : vector<8x128xf32>, vector<128x512xf32>, vector<8x512xf32> -> vector<8x512xf32>
    %189 = arith.addf %186, %188 : vector<8x512xf32>
    %190 = vector.extract_strided_slice %189 {offsets = [0, 0], sizes = [8, 128], strides = [1, 1]} : vector<8x512xf32> to vector<8x128xf32>
    %191 = arith.negf %190 : vector<8x128xf32>
    %192 = math.exp %191 : vector<8x128xf32>
    %cst_59 = arith.constant 1.000000e+00 : f32
    %193 = vector.broadcast %cst_59 : f32 to vector<8x128xf32>
    %194 = arith.addf %193, %192 : vector<8x128xf32>
    %195 = arith.divf %193, %194 : vector<8x128xf32>
    %196 = vector.extract_strided_slice %189 {offsets = [0, 128], sizes = [8, 128], strides = [1, 1]} : vector<8x512xf32> to vector<8x128xf32>
    %197 = arith.negf %196 : vector<8x128xf32>
    %198 = math.exp %197 : vector<8x128xf32>
    %cst_60 = arith.constant 1.000000e+00 : f32
    %199 = vector.broadcast %cst_60 : f32 to vector<8x128xf32>
    %200 = arith.addf %199, %198 : vector<8x128xf32>
    %201 = arith.divf %199, %200 : vector<8x128xf32>
    %202 = vector.extract_strided_slice %189 {offsets = [0, 256], sizes = [8, 128], strides = [1, 1]} : vector<8x512xf32> to vector<8x128xf32>
    %203 = math.tanh %202 : vector<8x128xf32>
    %204 = vector.extract_strided_slice %189 {offsets = [0, 384], sizes = [8, 128], strides = [1, 1]} : vector<8x512xf32> to vector<8x128xf32>
    %205 = arith.negf %204 : vector<8x128xf32>
    %206 = math.exp %205 : vector<8x128xf32>
    %cst_61 = arith.constant 1.000000e+00 : f32
    %207 = vector.broadcast %cst_61 : f32 to vector<8x128xf32>
    %208 = arith.addf %207, %206 : vector<8x128xf32>
    %209 = arith.divf %207, %208 : vector<8x128xf32>
    %210 = arith.mulf %201, %183 : vector<8x128xf32>
    %211 = arith.mulf %195, %203 : vector<8x128xf32>
    %212 = arith.addf %210, %211 : vector<8x128xf32>
    %213 = math.tanh %212 : vector<8x128xf32>
    %214 = arith.mulf %209, %213 : vector<8x128xf32>
    %c56 = arith.constant 56 : index
    %c0_62 = arith.constant 0 : index
    %215 = vector.load %arg10[%c56, %c0_62] : memref<64x512xf32, #tpu.memory_space<vmem>>, vector<8x512xf32>
    %c0_63 = arith.constant 0 : index
    %c0_64 = arith.constant 0 : index
    %216 = vector.load %arg3[%c0_63, %c0_64] : memref<128x512xf32, #tpu.memory_space<vmem>>, vector<128x512xf32>
    %cst_65 = arith.constant dense<0.000000e+00> : vector<8x512xf32>
    %217 = tpu.matmul %214, %216, %cst_65 {dimension_numbers = #tpu.dot_dimension_numbers<[1], [0], [0], [1], [0, 0, 1, 1], [], []>} : vector<8x128xf32>, vector<128x512xf32>, vector<8x512xf32> -> vector<8x512xf32>
    %218 = arith.addf %215, %217 : vector<8x512xf32>
    %219 = vector.extract_strided_slice %218 {offsets = [0, 0], sizes = [8, 128], strides = [1, 1]} : vector<8x512xf32> to vector<8x128xf32>
    %220 = arith.negf %219 : vector<8x128xf32>
    %221 = math.exp %220 : vector<8x128xf32>
    %cst_66 = arith.constant 1.000000e+00 : f32
    %222 = vector.broadcast %cst_66 : f32 to vector<8x128xf32>
    %223 = arith.addf %222, %221 : vector<8x128xf32>
    %224 = arith.divf %222, %223 : vector<8x128xf32>
    %225 = vector.extract_strided_slice %218 {offsets = [0, 128], sizes = [8, 128], strides = [1, 1]} : vector<8x512xf32> to vector<8x128xf32>
    %226 = arith.negf %225 : vector<8x128xf32>
    %227 = math.exp %226 : vector<8x128xf32>
    %cst_67 = arith.constant 1.000000e+00 : f32
    %228 = vector.broadcast %cst_67 : f32 to vector<8x128xf32>
    %229 = arith.addf %228, %227 : vector<8x128xf32>
    %230 = arith.divf %228, %229 : vector<8x128xf32>
    %231 = vector.extract_strided_slice %218 {offsets = [0, 256], sizes = [8, 128], strides = [1, 1]} : vector<8x512xf32> to vector<8x128xf32>
    %232 = math.tanh %231 : vector<8x128xf32>
    %233 = vector.extract_strided_slice %218 {offsets = [0, 384], sizes = [8, 128], strides = [1, 1]} : vector<8x512xf32> to vector<8x128xf32>
    %234 = arith.negf %233 : vector<8x128xf32>
    %235 = math.exp %234 : vector<8x128xf32>
    %cst_68 = arith.constant 1.000000e+00 : f32
    %236 = vector.broadcast %cst_68 : f32 to vector<8x128xf32>
    %237 = arith.addf %236, %235 : vector<8x128xf32>
    %238 = arith.divf %236, %237 : vector<8x128xf32>
    %239 = arith.mulf %230, %212 : vector<8x128xf32>
    %240 = arith.mulf %224, %232 : vector<8x128xf32>
    %241 = arith.addf %239, %240 : vector<8x128xf32>
    %242 = math.tanh %241 : vector<8x128xf32>
    %243 = arith.mulf %238, %242 : vector<8x128xf32>
    %c0_69 = arith.constant 0 : index
    %c0_70 = arith.constant 0 : index
    %244 = vector.load %arg8[%c0_69, %c0_70] : memref<8x128xf32, #tpu.memory_space<vmem>>, vector<8x128xf32>
    tpu.vector_store %arg8[%c0_69, %c0_70], %243 {strides = array<i32>} : memref<8x128xf32, #tpu.memory_space<vmem>>, vector<8x128xf32>,
    %c0_71 = arith.constant 0 : index
    %c0_72 = arith.constant 0 : index
    %245 = vector.load %arg9[%c0_71, %c0_72] : memref<8x128xf32, #tpu.memory_space<vmem>>, vector<8x128xf32>
    tpu.vector_store %arg9[%c0_71, %c0_72], %241 {strides = array<i32>} : memref<8x128xf32, #tpu.memory_space<vmem>>, vector<8x128xf32>,
    %c0_i32_73 = arith.constant 0 : i32
    %246 = arith.cmpi eq, %arg0, %c0_i32_73 : i32
    %247 = arith.extui %246 : i1 to i32
    %c0_i32_74 = arith.constant 0 : i32
    %248 = arith.cmpi ne, %247, %c0_i32_74 : i32
    scf.if %248 {
      %c0_75 = arith.constant 0 : index
      %c0_76 = arith.constant 0 : index
      %249 = vector.load %arg5[%c0_75, %c0_76] : memref<128x128xf32, #tpu.memory_space<vmem>>, vector<128x128xf32>
      %cst_77 = arith.constant dense<0.000000e+00> : vector<8x128xf32>
      %250 = tpu.matmul %243, %249, %cst_77 {dimension_numbers = #tpu.dot_dimension_numbers<[1], [0], [0], [1], [0, 0, 1, 1], [], []>} : vector<8x128xf32>, vector<128x128xf32>, vector<8x128xf32> -> vector<8x128xf32>
      %c0_78 = arith.constant 0 : index
      %c0_79 = arith.constant 0 : index
      %251 = vector.load %arg6[%c0_78, %c0_79] : memref<1x128xf32, #tpu.memory_space<vmem>>, vector<1x128xf32>
      %252 = vector.broadcast %251 : vector<1x128xf32> to vector<8x128xf32>
      %253 = arith.addf %250, %252 : vector<8x128xf32>
      %c0_80 = arith.constant 0 : index
      %c0_81 = arith.constant 0 : index
      %254 = vector.load %arg7[%c0_80, %c0_81] : memref<8x128xf32, #tpu.memory_space<vmem>>, vector<8x128xf32>
      tpu.vector_store %arg7[%c0_80, %c0_81], %253 {strides = array<i32>} : memref<8x128xf32, #tpu.memory_space<vmem>>, vector<8x128xf32>,
    } else {
    }
    return
  }
  func.func @transform_0(%arg0: i32) -> (i32, i32) {
    %c0_i32 = arith.constant 0 : i32
    %c0_i32_0 = arith.constant 0 : i32
    return %arg0, %c0_i32 : i32, i32
  }
  func.func @transform_1(%arg0: i32) -> (i32, i32) {
    %c0_i32 = arith.constant 0 : i32
    %c0_i32_0 = arith.constant 0 : i32
    %c0_i32_1 = arith.constant 0 : i32
    return %c0_i32, %c0_i32_0 : i32, i32
  }
  func.func @transform_2(%arg0: i32) -> (i32, i32) {
    %c0_i32 = arith.constant 0 : i32
    %c0_i32_0 = arith.constant 0 : i32
    %c0_i32_1 = arith.constant 0 : i32
    return %c0_i32, %c0_i32_0 : i32, i32
  }
  func.func @transform_3(%arg0: i32) -> (i32, i32) {
    %c0_i32 = arith.constant 0 : i32
    %c0_i32_0 = arith.constant 0 : i32
    %c0_i32_1 = arith.constant 0 : i32
    return %c0_i32, %c0_i32_0 : i32, i32
  }
  func.func @transform_4(%arg0: i32) -> (i32, i32) {
    %c0_i32 = arith.constant 0 : i32
    %c0_i32_0 = arith.constant 0 : i32
    %c0_i32_1 = arith.constant 0 : i32
    return %c0_i32, %c0_i32_0 : i32, i32
  }
  func.func @transform_5(%arg0: i32) -> (i32, i32) {
    %c0_i32 = arith.constant 0 : i32
    %c0_i32_0 = arith.constant 0 : i32
    %c0_i32_1 = arith.constant 0 : i32
    return %c0_i32, %c0_i32_0 : i32, i32
  }
  func.func @transform_6(%arg0: i32) -> (i32, i32) {
    %c0_i32 = arith.constant 0 : i32
    %c0_i32_0 = arith.constant 0 : i32
    %c0_i32_1 = arith.constant 0 : i32
    return %c0_i32, %c0_i32_0 : i32, i32
  }
}

</mosaic_0001>

<llo_original>
// kernel: lstm_model_forward.3
$region0: #{lstm_model_forward.3}
  #allocation0 [shape = 'u32[]', space=smem, size = 0x4, offset = 0x4, fixed_abs, tag = 'smem constant byte address 0x4 - core index']
  #allocation1 [shape = 'u32[144,128]{1,0:T(1,128)}', space=vmem, size = 0x12000, scoped, tag = 'internal scratch']
  #allocation2 [shape = 'f32[8,128]{1,0:T(8,128)}', space=vmem, size = 0x1000, scoped, tag = 'scratch operand']
  #allocation3 [shape = 'f32[8,128]{1,0:T(8,128)}', space=vmem, size = 0x1000, scoped, tag = 'scratch operand']
  #allocation4 [shape = 'f32[64,512]{1,0:T(8,128)}', space=vmem, size = 0x20000, scoped, tag = 'scratch operand']
  %s0 = inlined_call_operand.vmem [shape: f32[64,128], index: 0, kind: input, shape index: {}]
  %s1 = inlined_call_operand.vmem [shape: f32[128,512], index: 1, kind: input, shape index: {}]
  %s2 = inlined_call_operand.vmem [shape: f32[128,512], index: 2, kind: input, shape index: {}]
  %s3 = inlined_call_operand.vmem [shape: f32[1,512], index: 3, kind: input, shape index: {}]
  %s4 = inlined_call_operand.vmem [shape: f32[128,128], index: 4, kind: input, shape index: {}]
  %s5 = inlined_call_operand.vmem [shape: f32[1,128], index: 5, kind: input, shape index: {}]
  %s6 = inlined_call_operand.vmem [shape: f32[8,128], index: 6, kind: output, shape index: {}]
  %s7 = sld [smem:[#allocation0]]
  $region42: #{lstm_model_forward.3} parent=0
    _
  %s9 = ssub.s32 1, %s7
  %s10 = scalar_select 0, %s9, %s7
  // Predicated region
  $region2: #{lstm_model_forward.3} parent=0 // pred_check
    _
  $region3: #{lstm_model_forward.3} parent=0 // pred_check_branch
    %12 = sbr.rel (0) target = $region5
  $region4: #{lstm_model_forward.3} parent=0 // pred_region
    _
  $region5: #{lstm_model_forward.3} parent=0 // pred_fallthru
    _
  // Predicated region
  $region6: #{lstm_model_forward.3} parent=0 // pred_check
    _
  $region7: #{lstm_model_forward.3} parent=0 // pred_check_branch
    %14 = sbr.rel (0) target = $region9
  $region8: #{lstm_model_forward.3} parent=0 // pred_region
    _
  $region9: #{lstm_model_forward.3} parent=0 // pred_fallthru
    _
  // Predicated region
  $region10: #{lstm_model_forward.3} parent=0 // pred_check
    _
  $region11: #{lstm_model_forward.3} parent=0 // pred_check_branch
    %16 = sbr.rel (0) target = $region13
  $region12: #{lstm_model_forward.3} parent=0 // pred_region
    _
  $region13: #{lstm_model_forward.3} parent=0 // pred_fallthru
    _
  // Predicated region
  $region14: #{lstm_model_forward.3} parent=0 // pred_check
    _
  $region15: #{lstm_model_forward.3} parent=0 // pred_check_branch
    %18 = sbr.rel (0) target = $region17
  $region16: #{lstm_model_forward.3} parent=0 // pred_region
    _
  $region17: #{lstm_model_forward.3} parent=0 // pred_fallthru
    _
  // Predicated region
  $region18: #{lstm_model_forward.3} parent=0 // pred_check
    _
  $region19: #{lstm_model_forward.3} parent=0 // pred_check_branch
    %20 = sbr.rel (0) target = $region21
  $region20: #{lstm_model_forward.3} parent=0 // pred_region
    _
  $region21: #{lstm_model_forward.3} parent=0 // pred_fallthru
    _
  // Predicated region
  $region22: #{lstm_model_forward.3} parent=0 // pred_check
    _
  $region23: #{lstm_model_forward.3} parent=0 // pred_check_branch
    %22 = sbr.rel (0) target = $region25
  $region24: #{lstm_model_forward.3} parent=0 // pred_region
    _
  $region25: #{lstm_model_forward.3} parent=0 // pred_fallthru
    _
  %p23 = scmp.eq.s32.totalorder 0, 0
  // Predicated region
  $region26: #{lstm_model_forward.3} parent=0 // pred_check
    %p24 = pneg %p23
  $region27: #{lstm_model_forward.3} parent=0 // pred_check_branch
    %26 = sbr.rel (%p24) target = $region29
  $region28: #{lstm_model_forward.3} parent=0 // pred_region
    %27 = vst [vmem:[#allocation2] sm:$0xff] 0.0
    %28 = vst [vmem:[#allocation3] sm:$0xff] 0.0
  $region29: #{lstm_model_forward.3} parent=0 // pred_fallthru
    _
  %v29 = vld [vmem:[%s0] sm:$0xff]
  %v30 = vld [vmem:[%s0 + $0x8] sm:$0xff]
  %v31 = vld [vmem:[%s0 + $0x10] sm:$0xff]
  %v32 = vld [vmem:[%s0 + $0x18] sm:$0xff]
  %v33 = vld [vmem:[%s0 + $0x20] sm:$0xff]
  %v34 = vld [vmem:[%s0 + $0x28] sm:$0xff]
  %v35 = vld [vmem:[%s0 + $0x30] sm:$0xff]
  %v36 = vld [vmem:[%s0 + $0x38] sm:$0xff]
  %v37 = vld [vmem:[%s1] sm:$0xff]
  %v38 = vld [vmem:[%s1 + $0x8] sm:$0xff]
  %v39 = vld [vmem:[%s1 + $0x10] sm:$0xff]
  %v40 = vld [vmem:[%s1 + $0x18] sm:$0xff]
  %v41 = vld [vmem:[%s1 + $0x20] sm:$0xff]
  %v42 = vld [vmem:[%s1 + $0x28] sm:$0xff]
  %v43 = vld [vmem:[%s1 + $0x30] sm:$0xff]
  %v44 = vld [vmem:[%s1 + $0x38] sm:$0xff]
  %v45 = vld [vmem:[%s1 + $0x40] sm:$0xff]
  %v46 = vld [vmem:[%s1 + $0x48] sm:$0xff]
  %v47 = vld [vmem:[%s1 + $0x50] sm:$0xff]
  %v48 = vld [vmem:[%s1 + $0x58] sm:$0xff]
  %v49 = vld [vmem:[%s1 + $0x60] sm:$0xff]
  %v50 = vld [vmem:[%s1 + $0x68] sm:$0xff]
  %v51 = vld [vmem:[%s1 + $0x70] sm:$0xff]
  %v52 = vld [vmem:[%s1 + $0x78] sm:$0xff]
  %v53 = vld [vmem:[%s1 + $0x80] sm:$0xff]
  %v54 = vld [vmem:[%s1 + $0x88] sm:$0xff]
  %v55 = vld [vmem:[%s1 + $0x90] sm:$0xff]
  %v56 = vld [vmem:[%s1 + $0x98] sm:$0xff]
  %v57 = vld [vmem:[%s1 + $0xa0] sm:$0xff]
  %v58 = vld [vmem:[%s1 + $0xa8] sm:$0xff]
  %v59 = vld [vmem:[%s1 + $0xb0] sm:$0xff]
  %v60 = vld [vmem:[%s1 + $0xb8] sm:$0xff]
  %v61 = vld [vmem:[%s1 + $0xc0] sm:$0xff]
  %v62 = vld [vmem:[%s1 + $0xc8] sm:$0xff]
  %v63 = vld [vmem:[%s1 + $0xd0] sm:$0xff]
  %v64 = vld [vmem:[%s1 + $0xd8] sm:$0xff]
  %v65 = vld [vmem:[%s1 + $0xe0] sm:$0xff]
  %v66 = vld [vmem:[%s1 + $0xe8] sm:$0xff]
  %v67 = vld [vmem:[%s1 + $0xf0] sm:$0xff]
  %v68 = vld [vmem:[%s1 + $0xf8] sm:$0xff]
  %v69 = vld [vmem:[%s1 + $0x100] sm:$0xff]
  %v70 = vld [vmem:[%s1 + $0x108] sm:$0xff]
  %v71 = vld [vmem:[%s1 + $0x110] sm:$0xff]
  %v72 = vld [vmem:[%s1 + $0x118] sm:$0xff]
  %v73 = vld [vmem:[%s1 + $0x120] sm:$0xff]
  %v74 = vld [vmem:[%s1 + $0x128] sm:$0xff]
  %v75 = vld [vmem:[%s1 + $0x130] sm:$0xff]
  %v76 = vld [vmem:[%s1 + $0x138] sm:$0xff]
  %v77 = vld [vmem:[%s1 + $0x140] sm:$0xff]
  %v78 = vld [vmem:[%s1 + $0x148] sm:$0xff]
  %v79 = vld [vmem:[%s1 + $0x150] sm:$0xff]
  %v80 = vld [vmem:[%s1 + $0x158] sm:$0xff]
  %v81 = vld [vmem:[%s1 + $0x160] sm:$0xff]
  %v82 = vld [vmem:[%s1 + $0x168] sm:$0xff]
  %v83 = vld [vmem:[%s1 + $0x170] sm:$0xff]
  %v84 = vld [vmem:[%s1 + $0x178] sm:$0xff]
  %v85 = vld [vmem:[%s1 + $0x180] sm:$0xff]
  %v86 = vld [vmem:[%s1 + $0x188] sm:$0xff]
  %v87 = vld [vmem:[%s1 + $0x190] sm:$0xff]
  %v88 = vld [vmem:[%s1 + $0x198] sm:$0xff]
  %v89 = vld [vmem:[%s1 + $0x1a0] sm:$0xff]
  %v90 = vld [vmem:[%s1 + $0x1a8] sm:$0xff]
  %v91 = vld [vmem:[%s1 + $0x1b0] sm:$0xff]
  %v92 = vld [vmem:[%s1 + $0x1b8] sm:$0xff]
  %v93 = vld [vmem:[%s1 + $0x1c0] sm:$0xff]
  %v94 = vld [vmem:[%s1 + $0x1c8] sm:$0xff]
  %v95 = vld [vmem:[%s1 + $0x1d0] sm:$0xff]
  %v96 = vld [vmem:[%s1 + $0x1d8] sm:$0xff]
  %v97 = vld [vmem:[%s1 + $0x1e0] sm:$0xff]
  %v98 = vld [vmem:[%s1 + $0x1e8] sm:$0xff]
  %v99 = vld [vmem:[%s1 + $0x1f0] sm:$0xff]
  %v100 = vld [vmem:[%s1 + $0x1f8] sm:$0xff]
  %v101 = vld [vmem:[%s3] sm:$0xf]
  %v103 = vlaneseq
  %v104 = vshrl.u32 %v103, 7
  %v105 = vsub.s32 0, %v104
  %v106 = vrot.slane %v101, %v105
  %v107 = vlaneseq
  %v108 = vshrl.u32 %v107, 7
  %v109 = vsub.s32 1, %v108
  %v110 = vrot.slane %v101, %v109
  %v111 = vlaneseq
  %v112 = vshrl.u32 %v111, 7
  %v113 = vsub.s32 2, %v112
  %v114 = vrot.slane %v101, %v113
  %v115 = vlaneseq
  %v116 = vshrl.u32 %v115, 7
  %v117 = vsub.s32 3, %v116
  %v118 = vrot.slane %v101, %v117
  %123 = vmatprep.subr.mxu0 %v38
  %124 = vmatpush1.msra.mxu0 %v37
  %125 = vmatprep.subr.mxu0 %v42
  %126 = vmatpush1.msra.mxu0 %v41
  %127 = vmatprep.subr.mxu0 %v46
  %128 = vmatpush1.msra.mxu0 %v45
  %129 = vmatprep.subr.mxu0 %v50
  %130 = vmatpush1.msra.mxu0 %v49
  %131 = vmatprep.subr.mxu0 %v54
  %132 = vmatpush1.msra.mxu0 %v53
  %133 = vmatprep.subr.mxu0 %v58
  %134 = vmatpush1.msra.mxu0 %v57
  %135 = vmatprep.subr.mxu0 %v62
  %136 = vmatpush1.msra.mxu0 %v61
  %137 = vmatprep.subr.mxu0 %v66
  %138 = vmatpush1.msra.mxu0 %v65
  %139 = vmatprep.subr.mxu0 %v70
  %140 = vmatpush1.msra.mxu0 %v69
  %141 = vmatprep.subr.mxu0 %v74
  %142 = vmatpush1.msra.mxu0 %v73
  %143 = vmatprep.subr.mxu0 %v78
  %144 = vmatpush1.msra.mxu0 %v77
  %145 = vmatprep.subr.mxu0 %v82
  %146 = vmatpush1.msra.mxu0 %v81
  %147 = vmatprep.subr.mxu0 %v86
  %148 = vmatpush1.msra.mxu0 %v85
  %149 = vmatprep.subr.mxu0 %v90
  %150 = vmatpush1.msra.mxu0 %v89
  %151 = vmatprep.subr.mxu0 %v94
  %152 = vmatpush1.msra.mxu0 %v93
  %153 = vmatprep.subr.mxu0 %v98
  %154 = vmatpush1.msra.mxu0 %v97
  %155 = vmatprep.subr.mxu0 0.0
  %156 = vmatpush1.msra.mxu0 0.0
  %157 = vmatprep.subr.mxu0 0.0
  %158 = vmatpush1.msra.mxu0 0.0
  %159 = vmatprep.subr.mxu0 0.0
  %160 = vmatpush1.msra.mxu0 0.0
  %161 = vmatprep.subr.mxu0 0.0
  %162 = vmatpush1.msra.mxu0 0.0
  %163 = vmatprep.subr.mxu0 0.0
  %164 = vmatpush1.msra.mxu0 0.0
  %165 = vmatprep.subr.mxu0 0.0
  %166 = vmatpush1.msra.mxu0 0.0
  %167 = vmatprep.subr.mxu0 0.0
  %168 = vmatpush1.msra.mxu0 0.0
  %169 = vmatprep.subr.mxu0 0.0
  %170 = vmatpush1.msra.mxu0 0.0
  %171 = vmatprep.subr.mxu0 0.0
  %172 = vmatpush1.msra.mxu0 0.0
  %173 = vmatprep.subr.mxu0 0.0
  %174 = vmatpush1.msra.mxu0 0.0
  %175 = vmatprep.subr.mxu0 0.0
  %176 = vmatpush1.msra.mxu0 0.0
  %177 = vmatprep.subr.mxu0 0.0
  %178 = vmatpush1.msra.mxu0 0.0
  %179 = vmatprep.subr.mxu0 0.0
  %180 = vmatpush1.msra.mxu0 0.0
  %181 = vmatprep.subr.mxu0 0.0
  %182 = vmatpush1.msra.mxu0 0.0
  %183 = vmatprep.subr.mxu0 0.0
  %184 = vmatpush1.msra.mxu0 0.0
  %185 = vmatprep.subr.mxu0 0.0
  %186 = vmatpush1.msra.mxu0 0.0
  %187 = vmatprep.mubr.f32.mxu0 0.0
  %188 = vmatmul.mubr.f32.gmra.mrb[0].mxu0 %v29
  %v189 = vpop.f32.mrb[0].mxu0
  %v190 = vadd.f32 %v106, %v189
  %v191 = vpop.f32.mrb[0].mxu0
  %v192 = vadd.f32 %v110, %v191
  %193 = vmatprep.mubr.f32.mxu0 0.0
  %194 = vmatmul.mubr.f32.gmra.mrb[0].mxu0 %v30
  %v195 = vpop.f32.mrb[0].mxu0
  %v196 = vadd.f32 %v106, %v195
  %v197 = vpop.f32.mrb[0].mxu0
  %v198 = vadd.f32 %v110, %v197
  %199 = vmatprep.mubr.f32.mxu0 0.0
  %200 = vmatmul.mubr.f32.gmra.mrb[0].mxu0 %v31
  %v201 = vpop.f32.mrb[0].mxu0
  %v202 = vadd.f32 %v106, %v201
  %v203 = vpop.f32.mrb[0].mxu0
  %v204 = vadd.f32 %v110, %v203
  %205 = vmatprep.mubr.f32.mxu0 0.0
  %206 = vmatmul.mubr.f32.gmra.mrb[0].mxu0 %v32
  %v207 = vpop.f32.mrb[0].mxu0
  %v208 = vadd.f32 %v106, %v207
  %v209 = vpop.f32.mrb[0].mxu0
  %v210 = vadd.f32 %v110, %v209
  %211 = vmatprep.mubr.f32.mxu0 0.0
  %212 = vmatmul.mubr.f32.gmra.mrb[0].mxu0 %v33
  %v213 = vpop.f32.mrb[0].mxu0
  %v214 = vadd.f32 %v106, %v213
  %v215 = vpop.f32.mrb[0].mxu0
  %v216 = vadd.f32 %v110, %v215
  %217 = vmatprep.mubr.f32.mxu0 0.0
  %218 = vmatmul.mubr.f32.gmra.mrb[0].mxu0 %v34
  %v219 = vpop.f32.mrb[0].mxu0
  %v220 = vadd.f32 %v106, %v219
  %v221 = vpop.f32.mrb[0].mxu0
  %v222 = vadd.f32 %v110, %v221
  %223 = vmatprep.mubr.f32.mxu0 0.0
  %224 = vmatmul.mubr.f32.gmra.mrb[0].mxu0 %v35
  %v225 = vpop.f32.mrb[0].mxu0
  %v226 = vadd.f32 %v106, %v225
  %v227 = vpop.f32.mrb[0].mxu0
  %v228 = vadd.f32 %v110, %v227
  %229 = vmatprep.mubr.f32.mxu0 0.0
  %230 = vmatmul.mubr.f32.gmra.mrb[0].mxu0 %v36
  %v231 = vpop.f32.mrb[0].mxu0
  %v232 = vadd.f32 %v106, %v231
  %v233 = vpop.f32.mrb[0].mxu0
  %v234 = vadd.f32 %v110, %v233
  %235 = vdwg.mxu0
  %236 = vmatprep.subr.mxu0 %v40
  %237 = vmatpush1.msra.mxu0 %v39
  %238 = vmatprep.subr.mxu0 %v44
  %239 = vmatpush1.msra.mxu0 %v43
  %240 = vmatprep.subr.mxu0 %v48
  %241 = vmatpush1.msra.mxu0 %v47
  %242 = vmatprep.subr.mxu0 %v52
  %243 = vmatpush1.msra.mxu0 %v51
  %244 = vmatprep.subr.mxu0 %v56
  %245 = vmatpush1.msra.mxu0 %v55
  %246 = vmatprep.subr.mxu0 %v60
  %247 = vmatpush1.msra.mxu0 %v59
  %248 = vmatprep.subr.mxu0 %v64
  %249 = vmatpush1.msra.mxu0 %v63
  %250 = vmatprep.subr.mxu0 %v68
  %251 = vmatpush1.msra.mxu0 %v67
  %252 = vmatprep.subr.mxu0 %v72
  %253 = vmatpush1.msra.mxu0 %v71
  %254 = vmatprep.subr.mxu0 %v76
  %255 = vmatpush1.msra.mxu0 %v75
  %256 = vmatprep.subr.mxu0 %v80
  %257 = vmatpush1.msra.mxu0 %v79
  %258 = vmatprep.subr.mxu0 %v84
  %259 = vmatpush1.msra.mxu0 %v83
  %260 = vmatprep.subr.mxu0 %v88
  %261 = vmatpush1.msra.mxu0 %v87
  %262 = vmatprep.subr.mxu0 %v92
  %263 = vmatpush1.msra.mxu0 %v91
  %264 = vmatprep.subr.mxu0 %v96
  %265 = vmatpush1.msra.mxu0 %v95
  %266 = vmatprep.subr.mxu0 %v100
  %267 = vmatpush1.msra.mxu0 %v99
  %268 = vmatprep.subr.mxu0 0.0
  %269 = vmatpush1.msra.mxu0 0.0
  %270 = vmatprep.subr.mxu0 0.0
  %271 = vmatpush1.msra.mxu0 0.0
  %272 = vmatprep.subr.mxu0 0.0
  %273 = vmatpush1.msra.mxu0 0.0
  %274 = vmatprep.subr.mxu0 0.0
  %275 = vmatpush1.msra.mxu0 0.0
  %276 = vmatprep.subr.mxu0 0.0
  %277 = vmatpush1.msra.mxu0 0.0
  %278 = vmatprep.subr.mxu0 0.0
  %279 = vmatpush1.msra.mxu0 0.0
  %280 = vmatprep.subr.mxu0 0.0
  %281 = vmatpush1.msra.mxu0 0.0
  %282 = vmatprep.subr.mxu0 0.0
  %283 = vmatpush1.msra.mxu0 0.0
  %284 = vmatprep.subr.mxu0 0.0
  %285 = vmatpush1.msra.mxu0 0.0
  %286 = vmatprep.subr.mxu0 0.0
  %287 = vmatpush1.msra.mxu0 0.0
  %288 = vmatprep.subr.mxu0 0.0
  %289 = vmatpush1.msra.mxu0 0.0
  %290 = vmatprep.subr.mxu0 0.0
  %291 = vmatpush1.msra.mxu0 0.0
  %292 = vmatprep.subr.mxu0 0.0
  %293 = vmatpush1.msra.mxu0 0.0
  %294 = vmatprep.subr.mxu0 0.0
  %295 = vmatpush1.msra.mxu0 0.0
  %296 = vmatprep.subr.mxu0 0.0
  %297 = vmatpush1.msra.mxu0 0.0
  %298 = vmatprep.subr.mxu0 0.0
  %299 = vmatpush1.msra.mxu0 0.0
  %300 = vmatprep.mubr.f32.mxu0 0.0
  %301 = vmatmul.mubr.f32.gmra.mrb[0].mxu0 %v29
  %v302 = vpop.f32.mrb[0].mxu0
  %v303 = vadd.f32 %v114, %v302
  %v304 = vpop.f32.mrb[0].mxu0
  %v305 = vadd.f32 %v118, %v304
  %306 = vmatprep.mubr.f32.mxu0 0.0
  %307 = vmatmul.mubr.f32.gmra.mrb[0].mxu0 %v30
  %v308 = vpop.f32.mrb[0].mxu0
  %v309 = vadd.f32 %v114, %v308
  %v310 = vpop.f32.mrb[0].mxu0
  %v311 = vadd.f32 %v118, %v310
  %312 = vmatprep.mubr.f32.mxu0 0.0
  %313 = vmatmul.mubr.f32.gmra.mrb[0].mxu0 %v31
  %v314 = vpop.f32.mrb[0].mxu0
  %v315 = vadd.f32 %v114, %v314
  %v316 = vpop.f32.mrb[0].mxu0
  %v317 = vadd.f32 %v118, %v316
  %318 = vmatprep.mubr.f32.mxu0 0.0
  %319 = vmatmul.mubr.f32.gmra.mrb[0].mxu0 %v32
  %v320 = vpop.f32.mrb[0].mxu0
  %v321 = vadd.f32 %v114, %v320
  %v322 = vpop.f32.mrb[0].mxu0
  %v323 = vadd.f32 %v118, %v322
  %324 = vmatprep.mubr.f32.mxu0 0.0
  %325 = vmatmul.mubr.f32.gmra.mrb[0].mxu0 %v33
  %v326 = vpop.f32.mrb[0].mxu0
  %v327 = vadd.f32 %v114, %v326
  %v328 = vpop.f32.mrb[0].mxu0
  %v329 = vadd.f32 %v118, %v328
  %330 = vmatprep.mubr.f32.mxu0 0.0
  %331 = vmatmul.mubr.f32.gmra.mrb[0].mxu0 %v34
  %v332 = vpop.f32.mrb[0].mxu0
  %v333 = vadd.f32 %v114, %v332
  %v334 = vpop.f32.mrb[0].mxu0
  %v335 = vadd.f32 %v118, %v334
  %336 = vmatprep.mubr.f32.mxu0 0.0
  %337 = vmatmul.mubr.f32.gmra.mrb[0].mxu0 %v35
  %v338 = vpop.f32.mrb[0].mxu0
  %v339 = vadd.f32 %v114, %v338
  %v340 = vpop.f32.mrb[0].mxu0
  %v341 = vadd.f32 %v118, %v340
  %342 = vmatprep.mubr.f32.mxu0 0.0
  %343 = vmatmul.mubr.f32.gmra.mrb[0].mxu0 %v36
  %v344 = vpop.f32.mrb[0].mxu0
  %v345 = vadd.f32 %v114, %v344
  %v346 = vpop.f32.mrb[0].mxu0
  %v347 = vadd.f32 %v118, %v346
  %348 = vdwg.mxu0
  %349 = vst [vmem:[#allocation4] sm:$0xff] %v190
  %350 = vst [vmem:[#allocation4 + $0x8] sm:$0xff] %v192
  %351 = vst [vmem:[#allocation4 + $0x10] sm:$0xff] %v303
  %352 = vst [vmem:[#allocation4 + $0x18] sm:$0xff] %v305
  %353 = vst [vmem:[#allocation4 + $0x20] sm:$0xff] %v196
  %354 = vst [vmem:[#allocation4 + $0x28] sm:$0xff] %v198
  %355 = vst [vmem:[#allocation4 + $0x30] sm:$0xff] %v309
  %356 = vst [vmem:[#allocation4 + $0x38] sm:$0xff] %v311
  %357 = vst [vmem:[#allocation4 + $0x40] sm:$0xff] %v202
  %358 = vst [vmem:[#allocation4 + $0x48] sm:$0xff] %v204
  %359 = vst [vmem:[#allocation4 + $0x50] sm:$0xff] %v315
  %360 = vst [vmem:[#allocation4 + $0x58] sm:$0xff] %v317
  %361 = vst [vmem:[#allocation4 + $0x60] sm:$0xff] %v208
  %362 = vst [vmem:[#allocation4 + $0x68] sm:$0xff] %v210
  %363 = vst [vmem:[#allocation4 + $0x70] sm:$0xff] %v321
  %364 = vst [vmem:[#allocation4 + $0x78] sm:$0xff] %v323
  %365 = vst [vmem:[#allocation4 + $0x80] sm:$0xff] %v214
  %366 = vst [vmem:[#allocation4 + $0x88] sm:$0xff] %v216
  %367 = vst [vmem:[#allocation4 + $0x90] sm:$0xff] %v327
  %368 = vst [vmem:[#allocation4 + $0x98] sm:$0xff] %v329
  %369 = vst [vmem:[#allocation4 + $0xa0] sm:$0xff] %v220
  %370 = vst [vmem:[#allocation4 + $0xa8] sm:$0xff] %v222
  %371 = vst [vmem:[#allocation4 + $0xb0] sm:$0xff] %v333
  %372 = vst [vmem:[#allocation4 + $0xb8] sm:$0xff] %v335
  %373 = vst [vmem:[#allocation4 + $0xc0] sm:$0xff] %v226
  %374 = vst [vmem:[#allocation4 + $0xc8] sm:$0xff] %v228
  %375 = vst [vmem:[#allocation4 + $0xd0] sm:$0xff] %v339
  %376 = vst [vmem:[#allocation4 + $0xd8] sm:$0xff] %v341
  %377 = vst [vmem:[#allocation4 + $0xe0] sm:$0xff] %v232
  %378 = vst [vmem:[#allocation4 + $0xe8] sm:$0xff] %v234
  %379 = vst [vmem:[#allocation4 + $0xf0] sm:$0xff] %v345
  %380 = vst [vmem:[#allocation4 + $0xf8] sm:$0xff] %v347
  %v381 = vld [vmem:[#allocation2] sm:$0xff]
  %v382 = vld [vmem:[#allocation3] sm:$0xff]
  %v383 = vld [vmem:[#allocation4] sm:$0xff]
  %v384 = vld [vmem:[#allocation4 + $0x8] sm:$0xff]
  %v385 = vld [vmem:[#allocation4 + $0x10] sm:$0xff]
  %v386 = vld [vmem:[#allocation4 + $0x18] sm:$0xff]
  %v387 = vld [vmem:[%s2] sm:$0xff]
  %v388 = vld [vmem:[%s2 + $0x8] sm:$0xff]
  %v389 = vld [vmem:[%s2 + $0x10] sm:$0xff]
  %v390 = vld [vmem:[%s2 + $0x18] sm:$0xff]
  %v391 = vld [vmem:[%s2 + $0x20] sm:$0xff]
  %v392 = vld [vmem:[%s2 + $0x28] sm:$0xff]
  %v393 = vld [vmem:[%s2 + $0x30] sm:$0xff]
  %v394 = vld [vmem:[%s2 + $0x38] sm:$0xff]
  %v395 = vld [vmem:[%s2 + $0x40] sm:$0xff]
  %v396 = vld [vmem:[%s2 + $0x48] sm:$0xff]
  %v397 = vld [vmem:[%s2 + $0x50] sm:$0xff]
  %v398 = vld [vmem:[%s2 + $0x58] sm:$0xff]
  %v399 = vld [vmem:[%s2 + $0x60] sm:$0xff]
  %v400 = vld [vmem:[%s2 + $0x68] sm:$0xff]
  %v401 = vld [vmem:[%s2 + $0x70] sm:$0xff]
  %v402 = vld [vmem:[%s2 + $0x78] sm:$0xff]
  %v403 = vld [vmem:[%s2 + $0x80] sm:$0xff]
  %v404 = vld [vmem:[%s2 + $0x88] sm:$0xff]
  %v405 = vld [vmem:[%s2 + $0x90] sm:$0xff]
  %v406 = vld [vmem:[%s2 + $0x98] sm:$0xff]
  %v407 = vld [vmem:[%s2 + $0xa0] sm:$0xff]
  %v408 = vld [vmem:[%s2 + $0xa8] sm:$0xff]
  %v409 = vld [vmem:[%s2 + $0xb0] sm:$0xff]
  %v410 = vld [vmem:[%s2 + $0xb8] sm:$0xff]
  %v411 = vld [vmem:[%s2 + $0xc0] sm:$0xff]
  %v412 = vld [vmem:[%s2 + $0xc8] sm:$0xff]
  %v413 = vld [vmem:[%s2 + $0xd0] sm:$0xff]
  %v414 = vld [vmem:[%s2 + $0xd8] sm:$0xff]
  %v415 = vld [vmem:[%s2 + $0xe0] sm:$0xff]
  %v416 = vld [vmem:[%s2 + $0xe8] sm:$0xff]
  %v417 = vld [vmem:[%s2 + $0xf0] sm:$0xff]
  %v418 = vld [vmem:[%s2 + $0xf8] sm:$0xff]
  %v419 = vld [vmem:[%s2 + $0x100] sm:$0xff]
  %v420 = vld [vmem:[%s2 + $0x108] sm:$0xff]
  %v421 = vld [vmem:[%s2 + $0x110] sm:$0xff]
  %v422 = vld [vmem:[%s2 + $0x118] sm:$0xff]
  %v423 = vld [vmem:[%s2 + $0x120] sm:$0xff]
  %v424 = vld [vmem:[%s2 + $0x128] sm:$0xff]
  %v425 = vld [vmem:[%s2 + $0x130] sm:$0xff]
  %v426 = vld [vmem:[%s2 + $0x138] sm:$0xff]
  %v427 = vld [vmem:[%s2 + $0x140] sm:$0xff]
  %v428 = vld [vmem:[%s2 + $0x148] sm:$0xff]
  %v429 = vld [vmem:[%s2 + $0x150] sm:$0xff]
  %v430 = vld [vmem:[%s2 + $0x158] sm:$0xff]
  %v431 = vld [vmem:[%s2 + $0x160] sm:$0xff]
  %v432 = vld [vmem:[%s2 + $0x168] sm:$0xff]
  %v433 = vld [vmem:[%s2 + $0x170] sm:$0xff]
  %v434 = vld [vmem:[%s2 + $0x178] sm:$0xff]
  %v435 = vld [vmem:[%s2 + $0x180] sm:$0xff]
  %v436 = vld [vmem:[%s2 + $0x188] sm:$0xff]
  %v437 = vld [vmem:[%s2 + $0x190] sm:$0xff]
  %v438 = vld [vmem:[%s2 + $0x198] sm:$0xff]
  %v439 = vld [vmem:[%s2 + $0x1a0] sm:$0xff]
  %v440 = vld [vmem:[%s2 + $0x1a8] sm:$0xff]
  %v441 = vld [vmem:[%s2 + $0x1b0] sm:$0xff]
  %v442 = vld [vmem:[%s2 + $0x1b8] sm:$0xff]
  %v443 = vld [vmem:[%s2 + $0x1c0] sm:$0xff]
  %v444 = vld [vmem:[%s2 + $0x1c8] sm:$0xff]
  %v445 = vld [vmem:[%s2 + $0x1d0] sm:$0xff]
  %v446 = vld [vmem:[%s2 + $0x1d8] sm:$0xff]
  %v447 = vld [vmem:[%s2 + $0x1e0] sm:$0xff]
  %v448 = vld [vmem:[%s2 + $0x1e8] sm:$0xff]
  %v449 = vld [vmem:[%s2 + $0x1f0] sm:$0xff]
  %v450 = vld [vmem:[%s2 + $0x1f8] sm:$0xff]
  %451 = vmatprep.subr.mxu0 %v388
  %452 = vmatpush1.msra.mxu0 %v387
  %453 = vmatprep.subr.mxu0 %v392
  %454 = vmatpush1.msra.mxu0 %v391
  %455 = vmatprep.subr.mxu0 %v396
  %456 = vmatpush1.msra.mxu0 %v395
  %457 = vmatprep.subr.mxu0 %v400
  %458 = vmatpush1.msra.mxu0 %v399
  %459 = vmatprep.subr.mxu0 %v404
  %460 = vmatpush1.msra.mxu0 %v403
  %461 = vmatprep.subr.mxu0 %v408
  %462 = vmatpush1.msra.mxu0 %v407
  %463 = vmatprep.subr.mxu0 %v412
  %464 = vmatpush1.msra.mxu0 %v411
  %465 = vmatprep.subr.mxu0 %v416
  %466 = vmatpush1.msra.mxu0 %v415
  %467 = vmatprep.subr.mxu0 %v420
  %468 = vmatpush1.msra.mxu0 %v419
  %469 = vmatprep.subr.mxu0 %v424
  %470 = vmatpush1.msra.mxu0 %v423
  %471 = vmatprep.subr.mxu0 %v428
  %472 = vmatpush1.msra.mxu0 %v427
  %473 = vmatprep.subr.mxu0 %v432
  %474 = vmatpush1.msra.mxu0 %v431
  %475 = vmatprep.subr.mxu0 %v436
  %476 = vmatpush1.msra.mxu0 %v435
  %477 = vmatprep.subr.mxu0 %v440
  %478 = vmatpush1.msra.mxu0 %v439
  %479 = vmatprep.subr.mxu0 %v444
  %480 = vmatpush1.msra.mxu0 %v443
  %481 = vmatprep.subr.mxu0 %v448
  %482 = vmatpush1.msra.mxu0 %v447
  %483 = vmatprep.subr.mxu0 0.0
  %484 = vmatpush1.msra.mxu0 0.0
  %485 = vmatprep.subr.mxu0 0.0
  %486 = vmatpush1.msra.mxu0 0.0
  %487 = vmatprep.subr.mxu0 0.0
  %488 = vmatpush1.msra.mxu0 0.0
  %489 = vmatprep.subr.mxu0 0.0
  %490 = vmatpush1.msra.mxu0 0.0
  %491 = vmatprep.subr.mxu0 0.0
  %492 = vmatpush1.msra.mxu0 0.0
  %493 = vmatprep.subr.mxu0 0.0
  %494 = vmatpush1.msra.mxu0 0.0
  %495 = vmatprep.subr.mxu0 0.0
  %496 = vmatpush1.msra.mxu0 0.0
  %497 = vmatprep.subr.mxu0 0.0
  %498 = vmatpush1.msra.mxu0 0.0
  %499 = vmatprep.subr.mxu0 0.0
  %500 = vmatpush1.msra.mxu0 0.0
  %501 = vmatprep.subr.mxu0 0.0
  %502 = vmatpush1.msra.mxu0 0.0
  %503 = vmatprep.subr.mxu0 0.0
  %504 = vmatpush1.msra.mxu0 0.0
  %505 = vmatprep.subr.mxu0 0.0
  %506 = vmatpush1.msra.mxu0 0.0
  %507 = vmatprep.subr.mxu0 0.0
  %508 = vmatpush1.msra.mxu0 0.0
  %509 = vmatprep.subr.mxu0 0.0
  %510 = vmatpush1.msra.mxu0 0.0
  %511 = vmatprep.subr.mxu0 0.0
  %512 = vmatpush1.msra.mxu0 0.0
  %513 = vmatprep.subr.mxu0 0.0
  %514 = vmatpush1.msra.mxu0 0.0
  %515 = vmatprep.mubr.f32.mxu0 0.0
  %516 = vmatmul.mubr.f32.gmra.mrb[0].mxu0 %v381
  %v517 = vpop.f32.mrb[0].mxu0
  %v518 = vadd.f32 0.0, %v517
  %v519 = vpop.f32.mrb[0].mxu0
  %v520 = vadd.f32 0.0, %v519
  %521 = vdwg.mxu0
  %522 = vmatprep.subr.mxu0 %v390
  %523 = vmatpush1.msra.mxu0 %v389
  %524 = vmatprep.subr.mxu0 %v394
  %525 = vmatpush1.msra.mxu0 %v393
  %526 = vmatprep.subr.mxu0 %v398
  %527 = vmatpush1.msra.mxu0 %v397
  %528 = vmatprep.subr.mxu0 %v402
  %529 = vmatpush1.msra.mxu0 %v401
  %530 = vmatprep.subr.mxu0 %v406
  %531 = vmatpush1.msra.mxu0 %v405
  %532 = vmatprep.subr.mxu0 %v410
  %533 = vmatpush1.msra.mxu0 %v409
  %534 = vmatprep.subr.mxu0 %v414
  %535 = vmatpush1.msra.mxu0 %v413
  %536 = vmatprep.subr.mxu0 %v418
  %537 = vmatpush1.msra.mxu0 %v417
  %538 = vmatprep.subr.mxu0 %v422
  %539 = vmatpush1.msra.mxu0 %v421
  %540 = vmatprep.subr.mxu0 %v426
  %541 = vmatpush1.msra.mxu0 %v425
  %542 = vmatprep.subr.mxu0 %v430
  %543 = vmatpush1.msra.mxu0 %v429
  %544 = vmatprep.subr.mxu0 %v434
  %545 = vmatpush1.msra.mxu0 %v433
  %546 = vmatprep.subr.mxu0 %v438
  %547 = vmatpush1.msra.mxu0 %v437
  %548 = vmatprep.subr.mxu0 %v442
  %549 = vmatpush1.msra.mxu0 %v441
  %550 = vmatprep.subr.mxu0 %v446
  %551 = vmatpush1.msra.mxu0 %v445
  %552 = vmatprep.subr.mxu0 %v450
  %553 = vmatpush1.msra.mxu0 %v449
  %554 = vmatprep.subr.mxu0 0.0
  %555 = vmatpush1.msra.mxu0 0.0
  %556 = vmatprep.subr.mxu0 0.0
  %557 = vmatpush1.msra.mxu0 0.0
  %558 = vmatprep.subr.mxu0 0.0
  %559 = vmatpush1.msra.mxu0 0.0
  %560 = vmatprep.subr.mxu0 0.0
  %561 = vmatpush1.msra.mxu0 0.0
  %562 = vmatprep.subr.mxu0 0.0
  %563 = vmatpush1.msra.mxu0 0.0
  %564 = vmatprep.subr.mxu0 0.0
  %565 = vmatpush1.msra.mxu0 0.0
  %566 = vmatprep.subr.mxu0 0.0
  %567 = vmatpush1.msra.mxu0 0.0
  %568 = vmatprep.subr.mxu0 0.0
  %569 = vmatpush1.msra.mxu0 0.0
  %570 = vmatprep.subr.mxu0 0.0
  %571 = vmatpush1.msra.mxu0 0.0
  %572 = vmatprep.subr.mxu0 0.0
  %573 = vmatpush1.msra.mxu0 0.0
  %574 = vmatprep.subr.mxu0 0.0
  %575 = vmatpush1.msra.mxu0 0.0
  %576 = vmatprep.subr.mxu0 0.0
  %577 = vmatpush1.msra.mxu0 0.0
  %578 = vmatprep.subr.mxu0 0.0
  %579 = vmatpush1.msra.mxu0 0.0
  %580 = vmatprep.subr.mxu0 0.0
  %581 = vmatpush1.msra.mxu0 0.0
  %582 = vmatprep.subr.mxu0 0.0
  %583 = vmatpush1.msra.mxu0 0.0
  %584 = vmatprep.subr.mxu0 0.0
  %585 = vmatpush1.msra.mxu0 0.0
  %586 = vmatprep.mubr.f32.mxu0 0.0
  %587 = vmatmul.mubr.f32.gmra.mrb[0].mxu0 %v381
  %v588 = vpop.f32.mrb[0].mxu0
  %v589 = vadd.f32 0.0, %v588
  %v590 = vpop.f32.mrb[0].mxu0
  %v591 = vadd.f32 0.0, %v590
  %592 = vdwg.mxu0
  %v593 = vadd.f32 %v383, %v518
  %v594 = vadd.f32 %v384, %v520
  %v595 = vadd.f32 %v385, %v589
  %v596 = vadd.f32 %v386, %v591
  %v597 = vxor.u32 %v593, 2147483648
  %v598 = vmul.f32 %v597, 1.442695
  %v599 = vpow.pop %v598
  %v600 = vadd.f32 %v599, 1.0
  %v601 = vrcp.pop %v600
  %v602 = vmul.f32 1.0, %v601
  %v603 = vxor.u32 %v594, 2147483648
  %v604 = vmul.f32 %v603, 1.442695
  %v605 = vpow.pop %v604
  %v606 = vadd.f32 %v605, 1.0
  %v607 = vrcp.pop %v606
  %v608 = vmul.f32 1.0, %v607
  %v609 = vtanh.pop %v595
  %v610 = vxor.u32 %v596, 2147483648
  %v611 = vmul.f32 %v610, 1.442695
  %v612 = vpow.pop %v611
  %v613 = vadd.f32 %v612, 1.0
  %v614 = vrcp.pop %v613
  %v615 = vmul.f32 1.0, %v614
  %v616 = vmul.f32 %v608, %v382
  %v617 = vmul.f32 %v602, %v609
  %v618 = vadd.f32 %v616, %v617
  %v619 = vtanh.pop %v618
  %v620 = vmul.f32 %v615, %v619
  %v621 = vld [vmem:[#allocation4 + $0x20] sm:$0xff]
  %v622 = vld [vmem:[#allocation4 + $0x28] sm:$0xff]
  %v623 = vld [vmem:[#allocation4 + $0x30] sm:$0xff]
  %v624 = vld [vmem:[#allocation4 + $0x38] sm:$0xff]
  %625 = vmatprep.subr.mxu0 %v388
  %626 = vmatpush1.msra.mxu0 %v387
  %627 = vmatprep.subr.mxu0 %v392
  %628 = vmatpush1.msra.mxu0 %v391
  %629 = vmatprep.subr.mxu0 %v396
  %630 = vmatpush1.msra.mxu0 %v395
  %631 = vmatprep.subr.mxu0 %v400
  %632 = vmatpush1.msra.mxu0 %v399
  %633 = vmatprep.subr.mxu0 %v404
  %634 = vmatpush1.msra.mxu0 %v403
  %635 = vmatprep.subr.mxu0 %v408
  %636 = vmatpush1.msra.mxu0 %v407
  %637 = vmatprep.subr.mxu0 %v412
  %638 = vmatpush1.msra.mxu0 %v411
  %639 = vmatprep.subr.mxu0 %v416
  %640 = vmatpush1.msra.mxu0 %v415
  %641 = vmatprep.subr.mxu0 %v420
  %642 = vmatpush1.msra.mxu0 %v419
  %643 = vmatprep.subr.mxu0 %v424
  %644 = vmatpush1.msra.mxu0 %v423
  %645 = vmatprep.subr.mxu0 %v428
  %646 = vmatpush1.msra.mxu0 %v427
  %647 = vmatprep.subr.mxu0 %v432
  %648 = vmatpush1.msra.mxu0 %v431
  %649 = vmatprep.subr.mxu0 %v436
  %650 = vmatpush1.msra.mxu0 %v435
  %651 = vmatprep.subr.mxu0 %v440
  %652 = vmatpush1.msra.mxu0 %v439
  %653 = vmatprep.subr.mxu0 %v444
  %654 = vmatpush1.msra.mxu0 %v443
  %655 = vmatprep.subr.mxu0 %v448
  %656 = vmatpush1.msra.mxu0 %v447
  %657 = vmatprep.subr.mxu0 0.0
  %658 = vmatpush1.msra.mxu0 0.0
  %659 = vmatprep.subr.mxu0 0.0
  %660 = vmatpush1.msra.mxu0 0.0
  %661 = vmatprep.subr.mxu0 0.0
  %662 = vmatpush1.msra.mxu0 0.0
  %663 = vmatprep.subr.mxu0 0.0
  %664 = vmatpush1.msra.mxu0 0.0
  %665 = vmatprep.subr.mxu0 0.0
  %666 = vmatpush1.msra.mxu0 0.0
  %667 = vmatprep.subr.mxu0 0.0
  %668 = vmatpush1.msra.mxu0 0.0
  %669 = vmatprep.subr.mxu0 0.0
  %670 = vmatpush1.msra.mxu0 0.0
  %671 = vmatprep.subr.mxu0 0.0
  %672 = vmatpush1.msra.mxu0 0.0
  %673 = vmatprep.subr.mxu0 0.0
  %674 = vmatpush1.msra.mxu0 0.0
  %675 = vmatprep.subr.mxu0 0.0
  %676 = vmatpush1.msra.mxu0 0.0
  %677 = vmatprep.subr.mxu0 0.0
  %678 = vmatpush1.msra.mxu0 0.0
  %679 = vmatprep.subr.mxu0 0.0
  %680 = vmatpush1.msra.mxu0 0.0
  %681 = vmatprep.subr.mxu0 0.0
  %682 = vmatpush1.msra.mxu0 0.0
  %683 = vmatprep.subr.mxu0 0.0
  %684 = vmatpush1.msra.mxu0 0.0
  %685 = vmatprep.subr.mxu0 0.0
  %686 = vmatpush1.msra.mxu0 0.0
  %687 = vmatprep.subr.mxu0 0.0
  %688 = vmatpush1.msra.mxu0 0.0
  %689 = vmatprep.mubr.f32.mxu0 0.0
  %690 = vmatmul.mubr.f32.gmra.mrb[0].mxu0 %v620
  %v691 = vpop.f32.mrb[0].mxu0
  %v692 = vadd.f32 0.0, %v691
  %v693 = vpop.f32.mrb[0].mxu0
  %v694 = vadd.f32 0.0, %v693
  %695 = vdwg.mxu0
  %696 = vmatprep.subr.mxu0 %v390
  %697 = vmatpush1.msra.mxu0 %v389
  %698 = vmatprep.subr.mxu0 %v394
  %699 = vmatpush1.msra.mxu0 %v393
  %700 = vmatprep.subr.mxu0 %v398
  %701 = vmatpush1.msra.mxu0 %v397
  %702 = vmatprep.subr.mxu0 %v402
  %703 = vmatpush1.msra.mxu0 %v401
  %704 = vmatprep.subr.mxu0 %v406
  %705 = vmatpush1.msra.mxu0 %v405
  %706 = vmatprep.subr.mxu0 %v410
  %707 = vmatpush1.msra.mxu0 %v409
  %708 = vmatprep.subr.mxu0 %v414
  %709 = vmatpush1.msra.mxu0 %v413
  %710 = vmatprep.subr.mxu0 %v418
  %711 = vmatpush1.msra.mxu0 %v417
  %712 = vmatprep.subr.mxu0 %v422
  %713 = vmatpush1.msra.mxu0 %v421
  %714 = vmatprep.subr.mxu0 %v426
  %715 = vmatpush1.msra.mxu0 %v425
  %716 = vmatprep.subr.mxu0 %v430
  %717 = vmatpush1.msra.mxu0 %v429
  %718 = vmatprep.subr.mxu0 %v434
  %719 = vmatpush1.msra.mxu0 %v433
  %720 = vmatprep.subr.mxu0 %v438
  %721 = vmatpush1.msra.mxu0 %v437
  %722 = vmatprep.subr.mxu0 %v442
  %723 = vmatpush1.msra.mxu0 %v441
  %724 = vmatprep.subr.mxu0 %v446
  %725 = vmatpush1.msra.mxu0 %v445
  %726 = vmatprep.subr.mxu0 %v450
  %727 = vmatpush1.msra.mxu0 %v449
  %728 = vmatprep.subr.mxu0 0.0
  %729 = vmatpush1.msra.mxu0 0.0
  %730 = vmatprep.subr.mxu0 0.0
  %731 = vmatpush1.msra.mxu0 0.0
  %732 = vmatprep.subr.mxu0 0.0
  %733 = vmatpush1.msra.mxu0 0.0
  %734 = vmatprep.subr.mxu0 0.0
  %735 = vmatpush1.msra.mxu0 0.0
  %736 = vmatprep.subr.mxu0 0.0
  %737 = vmatpush1.msra.mxu0 0.0
  %738 = vmatprep.subr.mxu0 0.0
  %739 = vmatpush1.msra.mxu0 0.0
  %740 = vmatprep.subr.mxu0 0.0
  %741 = vmatpush1.msra.mxu0 0.0
  %742 = vmatprep.subr.mxu0 0.0
  %743 = vmatpush1.msra.mxu0 0.0
  %744 = vmatprep.subr.mxu0 0.0
  %745 = vmatpush1.msra.mxu0 0.0
  %746 = vmatprep.subr.mxu0 0.0
  %747 = vmatpush1.msra.mxu0 0.0
  %748 = vmatprep.subr.mxu0 0.0
  %749 = vmatpush1.msra.mxu0 0.0
  %750 = vmatprep.subr.mxu0 0.0
  %751 = vmatpush1.msra.mxu0 0.0
  %752 = vmatprep.subr.mxu0 0.0
  %753 = vmatpush1.msra.mxu0 0.0
  %754 = vmatprep.subr.mxu0 0.0
  %755 = vmatpush1.msra.mxu0 0.0
  %756 = vmatprep.subr.mxu0 0.0
  %757 = vmatpush1.msra.mxu0 0.0
  %758 = vmatprep.subr.mxu0 0.0
  %759 = vmatpush1.msra.mxu0 0.0
  %760 = vmatprep.mubr.f32.mxu0 0.0
  %761 = vmatmul.mubr.f32.gmra.mrb[0].mxu0 %v620
  %v762 = vpop.f32.mrb[0].mxu0
  %v763 = vadd.f32 0.0, %v762
  %v764 = vpop.f32.mrb[0].mxu0
  %v765 = vadd.f32 0.0, %v764
  %766 = vdwg.mxu0
  %v767 = vadd.f32 %v621, %v692
  %v768 = vadd.f32 %v622, %v694
  %v769 = vadd.f32 %v623, %v763
  %v770 = vadd.f32 %v624, %v765
  %v771 = vxor.u32 %v767, 2147483648
  %v772 = vmul.f32 %v771, 1.442695
  %v773 = vpow.pop %v772
  %v774 = vadd.f32 %v773, 1.0
  %v775 = vrcp.pop %v774
  %v776 = vmul.f32 1.0, %v775
  %v777 = vxor.u32 %v768, 2147483648
  %v778 = vmul.f32 %v777, 1.442695
  %v779 = vpow.pop %v778
  %v780 = vadd.f32 %v779, 1.0
  %v781 = vrcp.pop %v780
  %v782 = vmul.f32 1.0, %v781
  %v783 = vtanh.pop %v769
  %v784 = vxor.u32 %v770, 2147483648
  %v785 = vmul.f32 %v784, 1.442695
  %v786 = vpow.pop %v785
  %v787 = vadd.f32 %v786, 1.0
  %v788 = vrcp.pop %v787
  %v789 = vmul.f32 1.0, %v788
  %v790 = vmul.f32 %v782, %v618
  %v791 = vmul.f32 %v776, %v783
  %v792 = vadd.f32 %v790, %v791
  %v793 = vtanh.pop %v792
  %v794 = vmul.f32 %v789, %v793
  %v795 = vld [vmem:[#allocation4 + $0x40] sm:$0xff]
  %v796 = vld [vmem:[#allocation4 + $0x48] sm:$0xff]
  %v797 = vld [vmem:[#allocation4 + $0x50] sm:$0xff]
  %v798 = vld [vmem:[#allocation4 + $0x58] sm:$0xff]
  %799 = vmatprep.subr.mxu0 %v388
  %800 = vmatpush1.msra.mxu0 %v387
  %801 = vmatprep.subr.mxu0 %v392
  %802 = vmatpush1.msra.mxu0 %v391
  %803 = vmatprep.subr.mxu0 %v396
  %804 = vmatpush1.msra.mxu0 %v395
  %805 = vmatprep.subr.mxu0 %v400
  %806 = vmatpush1.msra.mxu0 %v399
  %807 = vmatprep.subr.mxu0 %v404
  %808 = vmatpush1.msra.mxu0 %v403
  %809 = vmatprep.subr.mxu0 %v408
  %810 = vmatpush1.msra.mxu0 %v407
  %811 = vmatprep.subr.mxu0 %v412
  %812 = vmatpush1.msra.mxu0 %v411
  %813 = vmatprep.subr.mxu0 %v416
  %814 = vmatpush1.msra.mxu0 %v415
  %815 = vmatprep.subr.mxu0 %v420
  %816 = vmatpush1.msra.mxu0 %v419
  %817 = vmatprep.subr.mxu0 %v424
  %818 = vmatpush1.msra.mxu0 %v423
  %819 = vmatprep.subr.mxu0 %v428
  %820 = vmatpush1.msra.mxu0 %v427
  %821 = vmatprep.subr.mxu0 %v432
  %822 = vmatpush1.msra.mxu0 %v431
  %823 = vmatprep.subr.mxu0 %v436
  %824 = vmatpush1.msra.mxu0 %v435
  %825 = vmatprep.subr.mxu0 %v440
  %826 = vmatpush1.msra.mxu0 %v439
  %827 = vmatprep.subr.mxu0 %v444
  %828 = vmatpush1.msra.mxu0 %v443
  %829 = vmatprep.subr.mxu0 %v448
  %830 = vmatpush1.msra.mxu0 %v447
  %831 = vmatprep.subr.mxu0 0.0
  %832 = vmatpush1.msra.mxu0 0.0
  %833 = vmatprep.subr.mxu0 0.0
  %834 = vmatpush1.msra.mxu0 0.0
  %835 = vmatprep.subr.mxu0 0.0
  %836 = vmatpush1.msra.mxu0 0.0
  %837 = vmatprep.subr.mxu0 0.0
  %838 = vmatpush1.msra.mxu0 0.0
  %839 = vmatprep.subr.mxu0 0.0
  %840 = vmatpush1.msra.mxu0 0.0
  %841 = vmatprep.subr.mxu0 0.0
  %842 = vmatpush1.msra.mxu0 0.0
  %843 = vmatprep.subr.mxu0 0.0
  %844 = vmatpush1.msra.mxu0 0.0
  %845 = vmatprep.subr.mxu0 0.0
  %846 = vmatpush1.msra.mxu0 0.0
  %847 = vmatprep.subr.mxu0 0.0
  %848 = vmatpush1.msra.mxu0 0.0
  %849 = vmatprep.subr.mxu0 0.0
  %850 = vmatpush1.msra.mxu0 0.0
  %851 = vmatprep.subr.mxu0 0.0
  %852 = vmatpush1.msra.mxu0 0.0
  %853 = vmatprep.subr.mxu0 0.0
  %854 = vmatpush1.msra.mxu0 0.0
  %855 = vmatprep.subr.mxu0 0.0
  %856 = vmatpush1.msra.mxu0 0.0
  %857 = vmatprep.subr.mxu0 0.0
  %858 = vmatpush1.msra.mxu0 0.0
  %859 = vmatprep.subr.mxu0 0.0
  %860 = vmatpush1.msra.mxu0 0.0
  %861 = vmatprep.subr.mxu0 0.0
  %862 = vmatpush1.msra.mxu0 0.0
  %863 = vmatprep.mubr.f32.mxu0 0.0
  %864 = vmatmul.mubr.f32.gmra.mrb[0].mxu0 %v794
  %v865 = vpop.f32.mrb[0].mxu0
  %v866 = vadd.f32 0.0, %v865
  %v867 = vpop.f32.mrb[0].mxu0
  %v868 = vadd.f32 0.0, %v867
  %869 = vdwg.mxu0
  %870 = vmatprep.subr.mxu0 %v390
  %871 = vmatpush1.msra.mxu0 %v389
  %872 = vmatprep.subr.mxu0 %v394
  %873 = vmatpush1.msra.mxu0 %v393
  %874 = vmatprep.subr.mxu0 %v398
  %875 = vmatpush1.msra.mxu0 %v397
  %876 = vmatprep.subr.mxu0 %v402
  %877 = vmatpush1.msra.mxu0 %v401
  %878 = vmatprep.subr.mxu0 %v406
  %879 = vmatpush1.msra.mxu0 %v405
  %880 = vmatprep.subr.mxu0 %v410
  %881 = vmatpush1.msra.mxu0 %v409
  %882 = vmatprep.subr.mxu0 %v414
  %883 = vmatpush1.msra.mxu0 %v413
  %884 = vmatprep.subr.mxu0 %v418
  %885 = vmatpush1.msra.mxu0 %v417
  %886 = vmatprep.subr.mxu0 %v422
  %887 = vmatpush1.msra.mxu0 %v421
  %888 = vmatprep.subr.mxu0 %v426
  %889 = vmatpush1.msra.mxu0 %v425
  %890 = vmatprep.subr.mxu0 %v430
  %891 = vmatpush1.msra.mxu0 %v429
  %892 = vmatprep.subr.mxu0 %v434
  %893 = vmatpush1.msra.mxu0 %v433
  %894 = vmatprep.subr.mxu0 %v438
  %895 = vmatpush1.msra.mxu0 %v437
  %896 = vmatprep.subr.mxu0 %v442
  %897 = vmatpush1.msra.mxu0 %v441
  %898 = vmatprep.subr.mxu0 %v446
  %899 = vmatpush1.msra.mxu0 %v445
  %900 = vmatprep.subr.mxu0 %v450
  %901 = vmatpush1.msra.mxu0 %v449
  %902 = vmatprep.subr.mxu0 0.0
  %903 = vmatpush1.msra.mxu0 0.0
  %904 = vmatprep.subr.mxu0 0.0
  %905 = vmatpush1.msra.mxu0 0.0
  %906 = vmatprep.subr.mxu0 0.0
  %907 = vmatpush1.msra.mxu0 0.0
  %908 = vmatprep.subr.mxu0 0.0
  %909 = vmatpush1.msra.mxu0 0.0
  %910 = vmatprep.subr.mxu0 0.0
  %911 = vmatpush1.msra.mxu0 0.0
  %912 = vmatprep.subr.mxu0 0.0
  %913 = vmatpush1.msra.mxu0 0.0
  %914 = vmatprep.subr.mxu0 0.0
  %915 = vmatpush1.msra.mxu0 0.0
  %916 = vmatprep.subr.mxu0 0.0
  %917 = vmatpush1.msra.mxu0 0.0
  %918 = vmatprep.subr.mxu0 0.0
  %919 = vmatpush1.msra.mxu0 0.0
  %920 = vmatprep.subr.mxu0 0.0
  %921 = vmatpush1.msra.mxu0 0.0
  %922 = vmatprep.subr.mxu0 0.0
  %923 = vmatpush1.msra.mxu0 0.0
  %924 = vmatprep.subr.mxu0 0.0
  %925 = vmatpush1.msra.mxu0 0.0
  %926 = vmatprep.subr.mxu0 0.0
  %927 = vmatpush1.msra.mxu0 0.0
  %928 = vmatprep.subr.mxu0 0.0
  %929 = vmatpush1.msra.mxu0 0.0
  %930 = vmatprep.subr.mxu0 0.0
  %931 = vmatpush1.msra.mxu0 0.0
  %932 = vmatprep.subr.mxu0 0.0
  %933 = vmatpush1.msra.mxu0 0.0
  %934 = vmatprep.mubr.f32.mxu0 0.0
  %935 = vmatmul.mubr.f32.gmra.mrb[0].mxu0 %v794
  %v936 = vpop.f32.mrb[0].mxu0
  %v937 = vadd.f32 0.0, %v936
  %v938 = vpop.f32.mrb[0].mxu0
  %v939 = vadd.f32 0.0, %v938
  %940 = vdwg.mxu0
  %v941 = vadd.f32 %v795, %v866
  %v942 = vadd.f32 %v796, %v868
  %v943 = vadd.f32 %v797, %v937
  %v944 = vadd.f32 %v798, %v939
  %v945 = vxor.u32 %v941, 2147483648
  %v946 = vmul.f32 %v945, 1.442695
  %v947 = vpow.pop %v946
  %v948 = vadd.f32 %v947, 1.0
  %v949 = vrcp.pop %v948
  %v950 = vmul.f32 1.0, %v949
  %v951 = vxor.u32 %v942, 2147483648
  %v952 = vmul.f32 %v951, 1.442695
  %v953 = vpow.pop %v952
  %v954 = vadd.f32 %v953, 1.0
  %v955 = vrcp.pop %v954
  %v956 = vmul.f32 1.0, %v955
  %v957 = vtanh.pop %v943
  %v958 = vxor.u32 %v944, 2147483648
  %v959 = vmul.f32 %v958, 1.442695
  %v960 = vpow.pop %v959
  %v961 = vadd.f32 %v960, 1.0
  %v962 = vrcp.pop %v961
  %v963 = vmul.f32 1.0, %v962
  %v964 = vmul.f32 %v956, %v792
  %v965 = vmul.f32 %v950, %v957
  %v966 = vadd.f32 %v964, %v965
  %v967 = vtanh.pop %v966
  %v968 = vmul.f32 %v963, %v967
  %v969 = vld [vmem:[#allocation4 + $0x60] sm:$0xff]
  %v970 = vld [vmem:[#allocation4 + $0x68] sm:$0xff]
  %v971 = vld [vmem:[#allocation4 + $0x70] sm:$0xff]
  %v972 = vld [vmem:[#allocation4 + $0x78] sm:$0xff]
  %973 = vmatprep.subr.mxu0 %v388
  %974 = vmatpush1.msra.mxu0 %v387
  %975 = vmatprep.subr.mxu0 %v392
  %976 = vmatpush1.msra.mxu0 %v391
  %977 = vmatprep.subr.mxu0 %v396
  %978 = vmatpush1.msra.mxu0 %v395
  %979 = vmatprep.subr.mxu0 %v400
  %980 = vmatpush1.msra.mxu0 %v399
  %981 = vmatprep.subr.mxu0 %v404
  %982 = vmatpush1.msra.mxu0 %v403
  %983 = vmatprep.subr.mxu0 %v408
  %984 = vmatpush1.msra.mxu0 %v407
  %985 = vmatprep.subr.mxu0 %v412
  %986 = vmatpush1.msra.mxu0 %v411
  %987 = vmatprep.subr.mxu0 %v416
  %988 = vmatpush1.msra.mxu0 %v415
  %989 = vmatprep.subr.mxu0 %v420
  %990 = vmatpush1.msra.mxu0 %v419
  %991 = vmatprep.subr.mxu0 %v424
  %992 = vmatpush1.msra.mxu0 %v423
  %993 = vmatprep.subr.mxu0 %v428
  %994 = vmatpush1.msra.mxu0 %v427
  %995 = vmatprep.subr.mxu0 %v432
  %996 = vmatpush1.msra.mxu0 %v431
  %997 = vmatprep.subr.mxu0 %v436
  %998 = vmatpush1.msra.mxu0 %v435
  %999 = vmatprep.subr.mxu0 %v440
  %1000 = vmatpush1.msra.mxu0 %v439
  %1001 = vmatprep.subr.mxu0 %v444
  %1002 = vmatpush1.msra.mxu0 %v443
  %1003 = vmatprep.subr.mxu0 %v448
  %1004 = vmatpush1.msra.mxu0 %v447
  %1005 = vmatprep.subr.mxu0 0.0
  %1006 = vmatpush1.msra.mxu0 0.0
  %1007 = vmatprep.subr.mxu0 0.0
  %1008 = vmatpush1.msra.mxu0 0.0
  %1009 = vmatprep.subr.mxu0 0.0
  %1010 = vmatpush1.msra.mxu0 0.0
  %1011 = vmatprep.subr.mxu0 0.0
  %1012 = vmatpush1.msra.mxu0 0.0
  %1013 = vmatprep.subr.mxu0 0.0
  %1014 = vmatpush1.msra.mxu0 0.0
  %1015 = vmatprep.subr.mxu0 0.0
  %1016 = vmatpush1.msra.mxu0 0.0
  %1017 = vmatprep.subr.mxu0 0.0
  %1018 = vmatpush1.msra.mxu0 0.0
  %1019 = vmatprep.subr.mxu0 0.0
  %1020 = vmatpush1.msra.mxu0 0.0
  %1021 = vmatprep.subr.mxu0 0.0
  %1022 = vmatpush1.msra.mxu0 0.0
  %1023 = vmatprep.subr.mxu0 0.0
  %1024 = vmatpush1.msra.mxu0 0.0
  %1025 = vmatprep.subr.mxu0 0.0
  %1026 = vmatpush1.msra.mxu0 0.0
  %1027 = vmatprep.subr.mxu0 0.0
  %1028 = vmatpush1.msra.mxu0 0.0
  %1029 = vmatprep.subr.mxu0 0.0
  %1030 = vmatpush1.msra.mxu0 0.0
  %1031 = vmatprep.subr.mxu0 0.0
  %1032 = vmatpush1.msra.mxu0 0.0
  %1033 = vmatprep.subr.mxu0 0.0
  %1034 = vmatpush1.msra.mxu0 0.0
  %1035 = vmatprep.subr.mxu0 0.0
  %1036 = vmatpush1.msra.mxu0 0.0
  %1037 = vmatprep.mubr.f32.mxu0 0.0
  %1038 = vmatmul.mubr.f32.gmra.mrb[0].mxu0 %v968
  %v1039 = vpop.f32.mrb[0].mxu0
  %v1040 = vadd.f32 0.0, %v1039
  %v1041 = vpop.f32.mrb[0].mxu0
  %v1042 = vadd.f32 0.0, %v1041
  %1043 = vdwg.mxu0
  %1044 = vmatprep.subr.mxu0 %v390
  %1045 = vmatpush1.msra.mxu0 %v389
  %1046 = vmatprep.subr.mxu0 %v394
  %1047 = vmatpush1.msra.mxu0 %v393
  %1048 = vmatprep.subr.mxu0 %v398
  %1049 = vmatpush1.msra.mxu0 %v397
  %1050 = vmatprep.subr.mxu0 %v402
  %1051 = vmatpush1.msra.mxu0 %v401
  %1052 = vmatprep.subr.mxu0 %v406
  %1053 = vmatpush1.msra.mxu0 %v405
  %1054 = vmatprep.subr.mxu0 %v410
  %1055 = vmatpush1.msra.mxu0 %v409
  %1056 = vmatprep.subr.mxu0 %v414
  %1057 = vmatpush1.msra.mxu0 %v413
  %1058 = vmatprep.subr.mxu0 %v418
  %1059 = vmatpush1.msra.mxu0 %v417
  %1060 = vmatprep.subr.mxu0 %v422
  %1061 = vmatpush1.msra.mxu0 %v421
  %1062 = vmatprep.subr.mxu0 %v426
  %1063 = vmatpush1.msra.mxu0 %v425
  %1064 = vmatprep.subr.mxu0 %v430
  %1065 = vmatpush1.msra.mxu0 %v429
  %1066 = vmatprep.subr.mxu0 %v434
  %1067 = vmatpush1.msra.mxu0 %v433
  %1068 = vmatprep.subr.mxu0 %v438
  %1069 = vmatpush1.msra.mxu0 %v437
  %1070 = vmatprep.subr.mxu0 %v442
  %1071 = vmatpush1.msra.mxu0 %v441
  %1072 = vmatprep.subr.mxu0 %v446
  %1073 = vmatpush1.msra.mxu0 %v445
  %1074 = vmatprep.subr.mxu0 %v450
  %1075 = vmatpush1.msra.mxu0 %v449
  %1076 = vmatprep.subr.mxu0 0.0
  %1077 = vmatpush1.msra.mxu0 0.0
  %1078 = vmatprep.subr.mxu0 0.0
  %1079 = vmatpush1.msra.mxu0 0.0
  %1080 = vmatprep.subr.mxu0 0.0
  %1081 = vmatpush1.msra.mxu0 0.0
  %1082 = vmatprep.subr.mxu0 0.0
  %1083 = vmatpush1.msra.mxu0 0.0
  %1084 = vmatprep.subr.mxu0 0.0
  %1085 = vmatpush1.msra.mxu0 0.0
  %1086 = vmatprep.subr.mxu0 0.0
  %1087 = vmatpush1.msra.mxu0 0.0
  %1088 = vmatprep.subr.mxu0 0.0
  %1089 = vmatpush1.msra.mxu0 0.0
  %1090 = vmatprep.subr.mxu0 0.0
  %1091 = vmatpush1.msra.mxu0 0.0
  %1092 = vmatprep.subr.mxu0 0.0
  %1093 = vmatpush1.msra.mxu0 0.0
  %1094 = vmatprep.subr.mxu0 0.0
  %1095 = vmatpush1.msra.mxu0 0.0
  %1096 = vmatprep.subr.mxu0 0.0
  %1097 = vmatpush1.msra.mxu0 0.0
  %1098 = vmatprep.subr.mxu0 0.0
  %1099 = vmatpush1.msra.mxu0 0.0
  %1100 = vmatprep.subr.mxu0 0.0
  %1101 = vmatpush1.msra.mxu0 0.0
  %1102 = vmatprep.subr.mxu0 0.0
  %1103 = vmatpush1.msra.mxu0 0.0
  %1104 = vmatprep.subr.mxu0 0.0
  %1105 = vmatpush1.msra.mxu0 0.0
  %1106 = vmatprep.subr.mxu0 0.0
  %1107 = vmatpush1.msra.mxu0 0.0
  %1108 = vmatprep.mubr.f32.mxu0 0.0
  %1109 = vmatmul.mubr.f32.gmra.mrb[0].mxu0 %v968
  %v1110 = vpop.f32.mrb[0].mxu0
  %v1111 = vadd.f32 0.0, %v1110
  %v1112 = vpop.f32.mrb[0].mxu0
  %v1113 = vadd.f32 0.0, %v1112
  %1114 = vdwg.mxu0
  %v1115 = vadd.f32 %v969, %v1040
  %v1116 = vadd.f32 %v970, %v1042
  %v1117 = vadd.f32 %v971, %v1111
  %v1118 = vadd.f32 %v972, %v1113
  %v1119 = vxor.u32 %v1115, 2147483648
  %v1120 = vmul.f32 %v1119, 1.442695
  %v1121 = vpow.pop %v1120
  %v1122 = vadd.f32 %v1121, 1.0
  %v1123 = vrcp.pop %v1122
  %v1124 = vmul.f32 1.0, %v1123
  %v1125 = vxor.u32 %v1116, 2147483648
  %v1126 = vmul.f32 %v1125, 1.442695
  %v1127 = vpow.pop %v1126
  %v1128 = vadd.f32 %v1127, 1.0
  %v1129 = vrcp.pop %v1128
  %v1130 = vmul.f32 1.0, %v1129
  %v1131 = vtanh.pop %v1117
  %v1132 = vxor.u32 %v1118, 2147483648
  %v1133 = vmul.f32 %v1132, 1.442695
  %v1134 = vpow.pop %v1133
  %v1135 = vadd.f32 %v1134, 1.0
  %v1136 = vrcp.pop %v1135
  %v1137 = vmul.f32 1.0, %v1136
  %v1138 = vmul.f32 %v1130, %v966
  %v1139 = vmul.f32 %v1124, %v1131
  %v1140 = vadd.f32 %v1138, %v1139
  %v1141 = vtanh.pop %v1140
  %v1142 = vmul.f32 %v1137, %v1141
  %v1143 = vld [vmem:[#allocation4 + $0x80] sm:$0xff]
  %v1144 = vld [vmem:[#allocation4 + $0x88] sm:$0xff]
  %v1145 = vld [vmem:[#allocation4 + $0x90] sm:$0xff]
  %v1146 = vld [vmem:[#allocation4 + $0x98] sm:$0xff]
  %1147 = vmatprep.subr.mxu0 %v388
  %1148 = vmatpush1.msra.mxu0 %v387
  %1149 = vmatprep.subr.mxu0 %v392
  %1150 = vmatpush1.msra.mxu0 %v391
  %1151 = vmatprep.subr.mxu0 %v396
  %1152 = vmatpush1.msra.mxu0 %v395
  %1153 = vmatprep.subr.mxu0 %v400
  %1154 = vmatpush1.msra.mxu0 %v399
  %1155 = vmatprep.subr.mxu0 %v404
  %1156 = vmatpush1.msra.mxu0 %v403
  %1157 = vmatprep.subr.mxu0 %v408
  %1158 = vmatpush1.msra.mxu0 %v407
  %1159 = vmatprep.subr.mxu0 %v412
  %1160 = vmatpush1.msra.mxu0 %v411
  %1161 = vmatprep.subr.mxu0 %v416
  %1162 = vmatpush1.msra.mxu0 %v415
  %1163 = vmatprep.subr.mxu0 %v420
  %1164 = vmatpush1.msra.mxu0 %v419
  %1165 = vmatprep.subr.mxu0 %v424
  %1166 = vmatpush1.msra.mxu0 %v423
  %1167 = vmatprep.subr.mxu0 %v428
  %1168 = vmatpush1.msra.mxu0 %v427
  %1169 = vmatprep.subr.mxu0 %v432
  %1170 = vmatpush1.msra.mxu0 %v431
  %1171 = vmatprep.subr.mxu0 %v436
  %1172 = vmatpush1.msra.mxu0 %v435
  %1173 = vmatprep.subr.mxu0 %v440
  %1174 = vmatpush1.msra.mxu0 %v439
  %1175 = vmatprep.subr.mxu0 %v444
  %1176 = vmatpush1.msra.mxu0 %v443
  %1177 = vmatprep.subr.mxu0 %v448
  %1178 = vmatpush1.msra.mxu0 %v447
  %1179 = vmatprep.subr.mxu0 0.0
  %1180 = vmatpush1.msra.mxu0 0.0
  %1181 = vmatprep.subr.mxu0 0.0
  %1182 = vmatpush1.msra.mxu0 0.0
  %1183 = vmatprep.subr.mxu0 0.0
  %1184 = vmatpush1.msra.mxu0 0.0
  %1185 = vmatprep.subr.mxu0 0.0
  %1186 = vmatpush1.msra.mxu0 0.0
  %1187 = vmatprep.subr.mxu0 0.0
  %1188 = vmatpush1.msra.mxu0 0.0
  %1189 = vmatprep.subr.mxu0 0.0
  %1190 = vmatpush1.msra.mxu0 0.0
  %1191 = vmatprep.subr.mxu0 0.0
  %1192 = vmatpush1.msra.mxu0 0.0
  %1193 = vmatprep.subr.mxu0 0.0
  %1194 = vmatpush1.msra.mxu0 0.0
  %1195 = vmatprep.subr.mxu0 0.0
  %1196 = vmatpush1.msra.mxu0 0.0
  %1197 = vmatprep.subr.mxu0 0.0
  %1198 = vmatpush1.msra.mxu0 0.0
  %1199 = vmatprep.subr.mxu0 0.0
  %1200 = vmatpush1.msra.mxu0 0.0
  %1201 = vmatprep.subr.mxu0 0.0
  %1202 = vmatpush1.msra.mxu0 0.0
  %1203 = vmatprep.subr.mxu0 0.0
  %1204 = vmatpush1.msra.mxu0 0.0
  %1205 = vmatprep.subr.mxu0 0.0
  %1206 = vmatpush1.msra.mxu0 0.0
  %1207 = vmatprep.subr.mxu0 0.0
  %1208 = vmatpush1.msra.mxu0 0.0
  %1209 = vmatprep.subr.mxu0 0.0
  %1210 = vmatpush1.msra.mxu0 0.0
  %1211 = vmatprep.mubr.f32.mxu0 0.0
  %1212 = vmatmul.mubr.f32.gmra.mrb[0].mxu0 %v1142
  %v1213 = vpop.f32.mrb[0].mxu0
  %v1214 = vadd.f32 0.0, %v1213
  %v1215 = vpop.f32.mrb[0].mxu0
  %v1216 = vadd.f32 0.0, %v1215
  %1217 = vdwg.mxu0
  %1218 = vmatprep.subr.mxu0 %v390
  %1219 = vmatpush1.msra.mxu0 %v389
  %1220 = vmatprep.subr.mxu0 %v394
  %1221 = vmatpush1.msra.mxu0 %v393
  %1222 = vmatprep.subr.mxu0 %v398
  %1223 = vmatpush1.msra.mxu0 %v397
  %1224 = vmatprep.subr.mxu0 %v402
  %1225 = vmatpush1.msra.mxu0 %v401
  %1226 = vmatprep.subr.mxu0 %v406
  %1227 = vmatpush1.msra.mxu0 %v405
  %1228 = vmatprep.subr.mxu0 %v410
  %1229 = vmatpush1.msra.mxu0 %v409
  %1230 = vmatprep.subr.mxu0 %v414
  %1231 = vmatpush1.msra.mxu0 %v413
  %1232 = vmatprep.subr.mxu0 %v418
  %1233 = vmatpush1.msra.mxu0 %v417
  %1234 = vmatprep.subr.mxu0 %v422
  %1235 = vmatpush1.msra.mxu0 %v421
  %1236 = vmatprep.subr.mxu0 %v426
  %1237 = vmatpush1.msra.mxu0 %v425
  %1238 = vmatprep.subr.mxu0 %v430
  %1239 = vmatpush1.msra.mxu0 %v429
  %1240 = vmatprep.subr.mxu0 %v434
  %1241 = vmatpush1.msra.mxu0 %v433
  %1242 = vmatprep.subr.mxu0 %v438
  %1243 = vmatpush1.msra.mxu0 %v437
  %1244 = vmatprep.subr.mxu0 %v442
  %1245 = vmatpush1.msra.mxu0 %v441
  %1246 = vmatprep.subr.mxu0 %v446
  %1247 = vmatpush1.msra.mxu0 %v445
  %1248 = vmatprep.subr.mxu0 %v450
  %1249 = vmatpush1.msra.mxu0 %v449
  %1250 = vmatprep.subr.mxu0 0.0
  %1251 = vmatpush1.msra.mxu0 0.0
  %1252 = vmatprep.subr.mxu0 0.0
  %1253 = vmatpush1.msra.mxu0 0.0
  %1254 = vmatprep.subr.mxu0 0.0
  %1255 = vmatpush1.msra.mxu0 0.0
  %1256 = vmatprep.subr.mxu0 0.0
  %1257 = vmatpush1.msra.mxu0 0.0
  %1258 = vmatprep.subr.mxu0 0.0
  %1259 = vmatpush1.msra.mxu0 0.0
  %1260 = vmatprep.subr.mxu0 0.0
  %1261 = vmatpush1.msra.mxu0 0.0
  %1262 = vmatprep.subr.mxu0 0.0
  %1263 = vmatpush1.msra.mxu0 0.0
  %1264 = vmatprep.subr.mxu0 0.0
  %1265 = vmatpush1.msra.mxu0 0.0
  %1266 = vmatprep.subr.mxu0 0.0
  %1267 = vmatpush1.msra.mxu0 0.0
  %1268 = vmatprep.subr.mxu0 0.0
  %1269 = vmatpush1.msra.mxu0 0.0
  %1270 = vmatprep.subr.mxu0 0.0
  %1271 = vmatpush1.msra.mxu0 0.0
  %1272 = vmatprep.subr.mxu0 0.0
  %1273 = vmatpush1.msra.mxu0 0.0
  %1274 = vmatprep.subr.mxu0 0.0
  %1275 = vmatpush1.msra.mxu0 0.0
  %1276 = vmatprep.subr.mxu0 0.0
  %1277 = vmatpush1.msra.mxu0 0.0
  %1278 = vmatprep.subr.mxu0 0.0
  %1279 = vmatpush1.msra.mxu0 0.0
  %1280 = vmatprep.subr.mxu0 0.0
  %1281 = vmatpush1.msra.mxu0 0.0
  %1282 = vmatprep.mubr.f32.mxu0 0.0
  %1283 = vmatmul.mubr.f32.gmra.mrb[0].mxu0 %v1142
  %v1284 = vpop.f32.mrb[0].mxu0
  %v1285 = vadd.f32 0.0, %v1284
  %v1286 = vpop.f32.mrb[0].mxu0
  %v1287 = vadd.f32 0.0, %v1286
  %1288 = vdwg.mxu0
  %v1289 = vadd.f32 %v1143, %v1214
  %v1290 = vadd.f32 %v1144, %v1216
  %v1291 = vadd.f32 %v1145, %v1285
  %v1292 = vadd.f32 %v1146, %v1287
  %v1293 = vxor.u32 %v1289, 2147483648
  %v1294 = vmul.f32 %v1293, 1.442695
  %v1295 = vpow.pop %v1294
  %v1296 = vadd.f32 %v1295, 1.0
  %v1297 = vrcp.pop %v1296
  %v1298 = vmul.f32 1.0, %v1297
  %v1299 = vxor.u32 %v1290, 2147483648
  %v1300 = vmul.f32 %v1299, 1.442695
  %v1301 = vpow.pop %v1300
  %v1302 = vadd.f32 %v1301, 1.0
  %v1303 = vrcp.pop %v1302
  %v1304 = vmul.f32 1.0, %v1303
  %v1305 = vtanh.pop %v1291
  %v1306 = vxor.u32 %v1292, 2147483648
  %v1307 = vmul.f32 %v1306, 1.442695
  %v1308 = vpow.pop %v1307
  %v1309 = vadd.f32 %v1308, 1.0
  %v1310 = vrcp.pop %v1309
  %v1311 = vmul.f32 1.0, %v1310
  %v1312 = vmul.f32 %v1304, %v1140
  %v1313 = vmul.f32 %v1298, %v1305
  %v1314 = vadd.f32 %v1312, %v1313
  %v1315 = vtanh.pop %v1314
  %v1316 = vmul.f32 %v1311, %v1315
  %v1317 = vld [vmem:[#allocation4 + $0xa0] sm:$0xff]
  %v1318 = vld [vmem:[#allocation4 + $0xa8] sm:$0xff]
  %v1319 = vld [vmem:[#allocation4 + $0xb0] sm:$0xff]
  %v1320 = vld [vmem:[#allocation4 + $0xb8] sm:$0xff]
  %1321 = vmatprep.subr.mxu0 %v388
  %1322 = vmatpush1.msra.mxu0 %v387
  %1323 = vmatprep.subr.mxu0 %v392
  %1324 = vmatpush1.msra.mxu0 %v391
  %1325 = vmatprep.subr.mxu0 %v396
  %1326 = vmatpush1.msra.mxu0 %v395
  %1327 = vmatprep.subr.mxu0 %v400
  %1328 = vmatpush1.msra.mxu0 %v399
  %1329 = vmatprep.subr.mxu0 %v404
  %1330 = vmatpush1.msra.mxu0 %v403
  %1331 = vmatprep.subr.mxu0 %v408
  %1332 = vmatpush1.msra.mxu0 %v407
  %1333 = vmatprep.subr.mxu0 %v412
  %1334 = vmatpush1.msra.mxu0 %v411
  %1335 = vmatprep.subr.mxu0 %v416
  %1336 = vmatpush1.msra.mxu0 %v415
  %1337 = vmatprep.subr.mxu0 %v420
  %1338 = vmatpush1.msra.mxu0 %v419
  %1339 = vmatprep.subr.mxu0 %v424
  %1340 = vmatpush1.msra.mxu0 %v423
  %1341 = vmatprep.subr.mxu0 %v428
  %1342 = vmatpush1.msra.mxu0 %v427
  %1343 = vmatprep.subr.mxu0 %v432
  %1344 = vmatpush1.msra.mxu0 %v431
  %1345 = vmatprep.subr.mxu0 %v436
  %1346 = vmatpush1.msra.mxu0 %v435
  %1347 = vmatprep.subr.mxu0 %v440
  %1348 = vmatpush1.msra.mxu0 %v439
  %1349 = vmatprep.subr.mxu0 %v444
  %1350 = vmatpush1.msra.mxu0 %v443
  %1351 = vmatprep.subr.mxu0 %v448
  %1352 = vmatpush1.msra.mxu0 %v447
  %1353 = vmatprep.subr.mxu0 0.0
  %1354 = vmatpush1.msra.mxu0 0.0
  %1355 = vmatprep.subr.mxu0 0.0
  %1356 = vmatpush1.msra.mxu0 0.0
  %1357 = vmatprep.subr.mxu0 0.0
  %1358 = vmatpush1.msra.mxu0 0.0
  %1359 = vmatprep.subr.mxu0 0.0
  %1360 = vmatpush1.msra.mxu0 0.0
  %1361 = vmatprep.subr.mxu0 0.0
  %1362 = vmatpush1.msra.mxu0 0.0
  %1363 = vmatprep.subr.mxu0 0.0
  %1364 = vmatpush1.msra.mxu0 0.0
  %1365 = vmatprep.subr.mxu0 0.0
  %1366 = vmatpush1.msra.mxu0 0.0
  %1367 = vmatprep.subr.mxu0 0.0
  %1368 = vmatpush1.msra.mxu0 0.0
  %1369 = vmatprep.subr.mxu0 0.0
  %1370 = vmatpush1.msra.mxu0 0.0
  %1371 = vmatprep.subr.mxu0 0.0
  %1372 = vmatpush1.msra.mxu0 0.0
  %1373 = vmatprep.subr.mxu0 0.0
  %1374 = vmatpush1.msra.mxu0 0.0
  %1375 = vmatprep.subr.mxu0 0.0
  %1376 = vmatpush1.msra.mxu0 0.0
  %1377 = vmatprep.subr.mxu0 0.0
  %1378 = vmatpush1.msra.mxu0 0.0
  %1379 = vmatprep.subr.mxu0 0.0
  %1380 = vmatpush1.msra.mxu0 0.0
  %1381 = vmatprep.subr.mxu0 0.0
  %1382 = vmatpush1.msra.mxu0 0.0
  %1383 = vmatprep.subr.mxu0 0.0
  %1384 = vmatpush1.msra.mxu0 0.0
  %1385 = vmatprep.mubr.f32.mxu0 0.0
  %1386 = vmatmul.mubr.f32.gmra.mrb[0].mxu0 %v1316
  %v1387 = vpop.f32.mrb[0].mxu0
  %v1388 = vadd.f32 0.0, %v1387
  %v1389 = vpop.f32.mrb[0].mxu0
  %v1390 = vadd.f32 0.0, %v1389
  %1391 = vdwg.mxu0
  %1392 = vmatprep.subr.mxu0 %v390
  %1393 = vmatpush1.msra.mxu0 %v389
  %1394 = vmatprep.subr.mxu0 %v394
  %1395 = vmatpush1.msra.mxu0 %v393
  %1396 = vmatprep.subr.mxu0 %v398
  %1397 = vmatpush1.msra.mxu0 %v397
  %1398 = vmatprep.subr.mxu0 %v402
  %1399 = vmatpush1.msra.mxu0 %v401
  %1400 = vmatprep.subr.mxu0 %v406
  %1401 = vmatpush1.msra.mxu0 %v405
  %1402 = vmatprep.subr.mxu0 %v410
  %1403 = vmatpush1.msra.mxu0 %v409
  %1404 = vmatprep.subr.mxu0 %v414
  %1405 = vmatpush1.msra.mxu0 %v413
  %1406 = vmatprep.subr.mxu0 %v418
  %1407 = vmatpush1.msra.mxu0 %v417
  %1408 = vmatprep.subr.mxu0 %v422
  %1409 = vmatpush1.msra.mxu0 %v421
  %1410 = vmatprep.subr.mxu0 %v426
  %1411 = vmatpush1.msra.mxu0 %v425
  %1412 = vmatprep.subr.mxu0 %v430
  %1413 = vmatpush1.msra.mxu0 %v429
  %1414 = vmatprep.subr.mxu0 %v434
  %1415 = vmatpush1.msra.mxu0 %v433
  %1416 = vmatprep.subr.mxu0 %v438
  %1417 = vmatpush1.msra.mxu0 %v437
  %1418 = vmatprep.subr.mxu0 %v442
  %1419 = vmatpush1.msra.mxu0 %v441
  %1420 = vmatprep.subr.mxu0 %v446
  %1421 = vmatpush1.msra.mxu0 %v445
  %1422 = vmatprep.subr.mxu0 %v450
  %1423 = vmatpush1.msra.mxu0 %v449
  %1424 = vmatprep.subr.mxu0 0.0
  %1425 = vmatpush1.msra.mxu0 0.0
  %1426 = vmatprep.subr.mxu0 0.0
  %1427 = vmatpush1.msra.mxu0 0.0
  %1428 = vmatprep.subr.mxu0 0.0
  %1429 = vmatpush1.msra.mxu0 0.0
  %1430 = vmatprep.subr.mxu0 0.0
  %1431 = vmatpush1.msra.mxu0 0.0
  %1432 = vmatprep.subr.mxu0 0.0
  %1433 = vmatpush1.msra.mxu0 0.0
  %1434 = vmatprep.subr.mxu0 0.0
  %1435 = vmatpush1.msra.mxu0 0.0
  %1436 = vmatprep.subr.mxu0 0.0
  %1437 = vmatpush1.msra.mxu0 0.0
  %1438 = vmatprep.subr.mxu0 0.0
  %1439 = vmatpush1.msra.mxu0 0.0
  %1440 = vmatprep.subr.mxu0 0.0
  %1441 = vmatpush1.msra.mxu0 0.0
  %1442 = vmatprep.subr.mxu0 0.0
  %1443 = vmatpush1.msra.mxu0 0.0
  %1444 = vmatprep.subr.mxu0 0.0
  %1445 = vmatpush1.msra.mxu0 0.0
  %1446 = vmatprep.subr.mxu0 0.0
  %1447 = vmatpush1.msra.mxu0 0.0
  %1448 = vmatprep.subr.mxu0 0.0
  %1449 = vmatpush1.msra.mxu0 0.0
  %1450 = vmatprep.subr.mxu0 0.0
  %1451 = vmatpush1.msra.mxu0 0.0
  %1452 = vmatprep.subr.mxu0 0.0
  %1453 = vmatpush1.msra.mxu0 0.0
  %1454 = vmatprep.subr.mxu0 0.0
  %1455 = vmatpush1.msra.mxu0 0.0
  %1456 = vmatprep.mubr.f32.mxu0 0.0
  %1457 = vmatmul.mubr.f32.gmra.mrb[0].mxu0 %v1316
  %v1458 = vpop.f32.mrb[0].mxu0
  %v1459 = vadd.f32 0.0, %v1458
  %v1460 = vpop.f32.mrb[0].mxu0
  %v1461 = vadd.f32 0.0, %v1460
  %1462 = vdwg.mxu0
  %v1463 = vadd.f32 %v1317, %v1388
  %v1464 = vadd.f32 %v1318, %v1390
  %v1465 = vadd.f32 %v1319, %v1459
  %v1466 = vadd.f32 %v1320, %v1461
  %v1467 = vxor.u32 %v1463, 2147483648
  %v1468 = vmul.f32 %v1467, 1.442695
  %v1469 = vpow.pop %v1468
  %v1470 = vadd.f32 %v1469, 1.0
  %v1471 = vrcp.pop %v1470
  %v1472 = vmul.f32 1.0, %v1471
  %v1473 = vxor.u32 %v1464, 2147483648
  %v1474 = vmul.f32 %v1473, 1.442695
  %v1475 = vpow.pop %v1474
  %v1476 = vadd.f32 %v1475, 1.0
  %v1477 = vrcp.pop %v1476
  %v1478 = vmul.f32 1.0, %v1477
  %v1479 = vtanh.pop %v1465
  %v1480 = vxor.u32 %v1466, 2147483648
  %v1481 = vmul.f32 %v1480, 1.442695
  %v1482 = vpow.pop %v1481
  %v1483 = vadd.f32 %v1482, 1.0
  %v1484 = vrcp.pop %v1483
  %v1485 = vmul.f32 1.0, %v1484
  %v1486 = vmul.f32 %v1478, %v1314
  %v1487 = vmul.f32 %v1472, %v1479
  %v1488 = vadd.f32 %v1486, %v1487
  %v1489 = vtanh.pop %v1488
  %v1490 = vmul.f32 %v1485, %v1489
  %v1491 = vld [vmem:[#allocation4 + $0xc0] sm:$0xff]
  %v1492 = vld [vmem:[#allocation4 + $0xc8] sm:$0xff]
  %v1493 = vld [vmem:[#allocation4 + $0xd0] sm:$0xff]
  %v1494 = vld [vmem:[#allocation4 + $0xd8] sm:$0xff]
  %1495 = vmatprep.subr.mxu0 %v388
  %1496 = vmatpush1.msra.mxu0 %v387
  %1497 = vmatprep.subr.mxu0 %v392
  %1498 = vmatpush1.msra.mxu0 %v391
  %1499 = vmatprep.subr.mxu0 %v396
  %1500 = vmatpush1.msra.mxu0 %v395
  %1501 = vmatprep.subr.mxu0 %v400
  %1502 = vmatpush1.msra.mxu0 %v399
  %1503 = vmatprep.subr.mxu0 %v404
  %1504 = vmatpush1.msra.mxu0 %v403
  %1505 = vmatprep.subr.mxu0 %v408
  %1506 = vmatpush1.msra.mxu0 %v407
  %1507 = vmatprep.subr.mxu0 %v412
  %1508 = vmatpush1.msra.mxu0 %v411
  %1509 = vmatprep.subr.mxu0 %v416
  %1510 = vmatpush1.msra.mxu0 %v415
  %1511 = vmatprep.subr.mxu0 %v420
  %1512 = vmatpush1.msra.mxu0 %v419
  %1513 = vmatprep.subr.mxu0 %v424
  %1514 = vmatpush1.msra.mxu0 %v423
  %1515 = vmatprep.subr.mxu0 %v428
  %1516 = vmatpush1.msra.mxu0 %v427
  %1517 = vmatprep.subr.mxu0 %v432
  %1518 = vmatpush1.msra.mxu0 %v431
  %1519 = vmatprep.subr.mxu0 %v436
  %1520 = vmatpush1.msra.mxu0 %v435
  %1521 = vmatprep.subr.mxu0 %v440
  %1522 = vmatpush1.msra.mxu0 %v439
  %1523 = vmatprep.subr.mxu0 %v444
  %1524 = vmatpush1.msra.mxu0 %v443
  %1525 = vmatprep.subr.mxu0 %v448
  %1526 = vmatpush1.msra.mxu0 %v447
  %1527 = vmatprep.subr.mxu0 0.0
  %1528 = vmatpush1.msra.mxu0 0.0
  %1529 = vmatprep.subr.mxu0 0.0
  %1530 = vmatpush1.msra.mxu0 0.0
  %1531 = vmatprep.subr.mxu0 0.0
  %1532 = vmatpush1.msra.mxu0 0.0
  %1533 = vmatprep.subr.mxu0 0.0
  %1534 = vmatpush1.msra.mxu0 0.0
  %1535 = vmatprep.subr.mxu0 0.0
  %1536 = vmatpush1.msra.mxu0 0.0
  %1537 = vmatprep.subr.mxu0 0.0
  %1538 = vmatpush1.msra.mxu0 0.0
  %1539 = vmatprep.subr.mxu0 0.0
  %1540 = vmatpush1.msra.mxu0 0.0
  %1541 = vmatprep.subr.mxu0 0.0
  %1542 = vmatpush1.msra.mxu0 0.0
  %1543 = vmatprep.subr.mxu0 0.0
  %1544 = vmatpush1.msra.mxu0 0.0
  %1545 = vmatprep.subr.mxu0 0.0
  %1546 = vmatpush1.msra.mxu0 0.0
  %1547 = vmatprep.subr.mxu0 0.0
  %1548 = vmatpush1.msra.mxu0 0.0
  %1549 = vmatprep.subr.mxu0 0.0
  %1550 = vmatpush1.msra.mxu0 0.0
  %1551 = vmatprep.subr.mxu0 0.0
  %1552 = vmatpush1.msra.mxu0 0.0
  %1553 = vmatprep.subr.mxu0 0.0
  %1554 = vmatpush1.msra.mxu0 0.0
  %1555 = vmatprep.subr.mxu0 0.0
  %1556 = vmatpush1.msra.mxu0 0.0
  %1557 = vmatprep.subr.mxu0 0.0
  %1558 = vmatpush1.msra.mxu0 0.0
  %1559 = vmatprep.mubr.f32.mxu0 0.0
  %1560 = vmatmul.mubr.f32.gmra.mrb[0].mxu0 %v1490
  %v1561 = vpop.f32.mrb[0].mxu0
  %v1562 = vadd.f32 0.0, %v1561
  %v1563 = vpop.f32.mrb[0].mxu0
  %v1564 = vadd.f32 0.0, %v1563
  %1565 = vdwg.mxu0
  %1566 = vmatprep.subr.mxu0 %v390
  %1567 = vmatpush1.msra.mxu0 %v389
  %1568 = vmatprep.subr.mxu0 %v394
  %1569 = vmatpush1.msra.mxu0 %v393
  %1570 = vmatprep.subr.mxu0 %v398
  %1571 = vmatpush1.msra.mxu0 %v397
  %1572 = vmatprep.subr.mxu0 %v402
  %1573 = vmatpush1.msra.mxu0 %v401
  %1574 = vmatprep.subr.mxu0 %v406
  %1575 = vmatpush1.msra.mxu0 %v405
  %1576 = vmatprep.subr.mxu0 %v410
  %1577 = vmatpush1.msra.mxu0 %v409
  %1578 = vmatprep.subr.mxu0 %v414
  %1579 = vmatpush1.msra.mxu0 %v413
  %1580 = vmatprep.subr.mxu0 %v418
  %1581 = vmatpush1.msra.mxu0 %v417
  %1582 = vmatprep.subr.mxu0 %v422
  %1583 = vmatpush1.msra.mxu0 %v421
  %1584 = vmatprep.subr.mxu0 %v426
  %1585 = vmatpush1.msra.mxu0 %v425
  %1586 = vmatprep.subr.mxu0 %v430
  %1587 = vmatpush1.msra.mxu0 %v429
  %1588 = vmatprep.subr.mxu0 %v434
  %1589 = vmatpush1.msra.mxu0 %v433
  %1590 = vmatprep.subr.mxu0 %v438
  %1591 = vmatpush1.msra.mxu0 %v437
  %1592 = vmatprep.subr.mxu0 %v442
  %1593 = vmatpush1.msra.mxu0 %v441
  %1594 = vmatprep.subr.mxu0 %v446
  %1595 = vmatpush1.msra.mxu0 %v445
  %1596 = vmatprep.subr.mxu0 %v450
  %1597 = vmatpush1.msra.mxu0 %v449
  %1598 = vmatprep.subr.mxu0 0.0
  %1599 = vmatpush1.msra.mxu0 0.0
  %1600 = vmatprep.subr.mxu0 0.0
  %1601 = vmatpush1.msra.mxu0 0.0
  %1602 = vmatprep.subr.mxu0 0.0
  %1603 = vmatpush1.msra.mxu0 0.0
  %1604 = vmatprep.subr.mxu0 0.0
  %1605 = vmatpush1.msra.mxu0 0.0
  %1606 = vmatprep.subr.mxu0 0.0
  %1607 = vmatpush1.msra.mxu0 0.0
  %1608 = vmatprep.subr.mxu0 0.0
  %1609 = vmatpush1.msra.mxu0 0.0
  %1610 = vmatprep.subr.mxu0 0.0
  %1611 = vmatpush1.msra.mxu0 0.0
  %1612 = vmatprep.subr.mxu0 0.0
  %1613 = vmatpush1.msra.mxu0 0.0
  %1614 = vmatprep.subr.mxu0 0.0
  %1615 = vmatpush1.msra.mxu0 0.0
  %1616 = vmatprep.subr.mxu0 0.0
  %1617 = vmatpush1.msra.mxu0 0.0
  %1618 = vmatprep.subr.mxu0 0.0
  %1619 = vmatpush1.msra.mxu0 0.0
  %1620 = vmatprep.subr.mxu0 0.0
  %1621 = vmatpush1.msra.mxu0 0.0
  %1622 = vmatprep.subr.mxu0 0.0
  %1623 = vmatpush1.msra.mxu0 0.0
  %1624 = vmatprep.subr.mxu0 0.0
  %1625 = vmatpush1.msra.mxu0 0.0
  %1626 = vmatprep.subr.mxu0 0.0
  %1627 = vmatpush1.msra.mxu0 0.0
  %1628 = vmatprep.subr.mxu0 0.0
  %1629 = vmatpush1.msra.mxu0 0.0
  %1630 = vmatprep.mubr.f32.mxu0 0.0
  %1631 = vmatmul.mubr.f32.gmra.mrb[0].mxu0 %v1490
  %v1632 = vpop.f32.mrb[0].mxu0
  %v1633 = vadd.f32 0.0, %v1632
  %v1634 = vpop.f32.mrb[0].mxu0
  %v1635 = vadd.f32 0.0, %v1634
  %1636 = vdwg.mxu0
  %v1637 = vadd.f32 %v1491, %v1562
  %v1638 = vadd.f32 %v1492, %v1564
  %v1639 = vadd.f32 %v1493, %v1633
  %v1640 = vadd.f32 %v1494, %v1635
  %v1641 = vxor.u32 %v1637, 2147483648
  %v1642 = vmul.f32 %v1641, 1.442695
  %v1643 = vpow.pop %v1642
  %v1644 = vadd.f32 %v1643, 1.0
  %v1645 = vrcp.pop %v1644
  %v1646 = vmul.f32 1.0, %v1645
  %v1647 = vxor.u32 %v1638, 2147483648
  %v1648 = vmul.f32 %v1647, 1.442695
  %v1649 = vpow.pop %v1648
  %v1650 = vadd.f32 %v1649, 1.0
  %v1651 = vrcp.pop %v1650
  %v1652 = vmul.f32 1.0, %v1651
  %v1653 = vtanh.pop %v1639
  %v1654 = vxor.u32 %v1640, 2147483648
  %v1655 = vmul.f32 %v1654, 1.442695
  %v1656 = vpow.pop %v1655
  %v1657 = vadd.f32 %v1656, 1.0
  %v1658 = vrcp.pop %v1657
  %v1659 = vmul.f32 1.0, %v1658
  %v1660 = vmul.f32 %v1652, %v1488
  %v1661 = vmul.f32 %v1646, %v1653
  %v1662 = vadd.f32 %v1660, %v1661
  %v1663 = vtanh.pop %v1662
  %v1664 = vmul.f32 %v1659, %v1663
  %v1665 = vld [vmem:[#allocation4 + $0xe0] sm:$0xff]
  %v1666 = vld [vmem:[#allocation4 + $0xe8] sm:$0xff]
  %v1667 = vld [vmem:[#allocation4 + $0xf0] sm:$0xff]
  %v1668 = vld [vmem:[#allocation4 + $0xf8] sm:$0xff]
  %1669 = vmatprep.subr.mxu0 %v388
  %1670 = vmatpush1.msra.mxu0 %v387
  %1671 = vmatprep.subr.mxu0 %v392
  %1672 = vmatpush1.msra.mxu0 %v391
  %1673 = vmatprep.subr.mxu0 %v396
  %1674 = vmatpush1.msra.mxu0 %v395
  %1675 = vmatprep.subr.mxu0 %v400
  %1676 = vmatpush1.msra.mxu0 %v399
  %1677 = vmatprep.subr.mxu0 %v404
  %1678 = vmatpush1.msra.mxu0 %v403
  %1679 = vmatprep.subr.mxu0 %v408
  %1680 = vmatpush1.msra.mxu0 %v407
  %1681 = vmatprep.subr.mxu0 %v412
  %1682 = vmatpush1.msra.mxu0 %v411
  %1683 = vmatprep.subr.mxu0 %v416
  %1684 = vmatpush1.msra.mxu0 %v415
  %1685 = vmatprep.subr.mxu0 %v420
  %1686 = vmatpush1.msra.mxu0 %v419
  %1687 = vmatprep.subr.mxu0 %v424
  %1688 = vmatpush1.msra.mxu0 %v423
  %1689 = vmatprep.subr.mxu0 %v428
  %1690 = vmatpush1.msra.mxu0 %v427
  %1691 = vmatprep.subr.mxu0 %v432
  %1692 = vmatpush1.msra.mxu0 %v431
  %1693 = vmatprep.subr.mxu0 %v436
  %1694 = vmatpush1.msra.mxu0 %v435
  %1695 = vmatprep.subr.mxu0 %v440
  %1696 = vmatpush1.msra.mxu0 %v439
  %1697 = vmatprep.subr.mxu0 %v444
  %1698 = vmatpush1.msra.mxu0 %v443
  %1699 = vmatprep.subr.mxu0 %v448
  %1700 = vmatpush1.msra.mxu0 %v447
  %1701 = vmatprep.subr.mxu0 0.0
  %1702 = vmatpush1.msra.mxu0 0.0
  %1703 = vmatprep.subr.mxu0 0.0
  %1704 = vmatpush1.msra.mxu0 0.0
  %1705 = vmatprep.subr.mxu0 0.0
  %1706 = vmatpush1.msra.mxu0 0.0
  %1707 = vmatprep.subr.mxu0 0.0
  %1708 = vmatpush1.msra.mxu0 0.0
  %1709 = vmatprep.subr.mxu0 0.0
  %1710 = vmatpush1.msra.mxu0 0.0
  %1711 = vmatprep.subr.mxu0 0.0
  %1712 = vmatpush1.msra.mxu0 0.0
  %1713 = vmatprep.subr.mxu0 0.0
  %1714 = vmatpush1.msra.mxu0 0.0
  %1715 = vmatprep.subr.mxu0 0.0
  %1716 = vmatpush1.msra.mxu0 0.0
  %1717 = vmatprep.subr.mxu0 0.0
  %1718 = vmatpush1.msra.mxu0 0.0
  %1719 = vmatprep.subr.mxu0 0.0
  %1720 = vmatpush1.msra.mxu0 0.0
  %1721 = vmatprep.subr.mxu0 0.0
  %1722 = vmatpush1.msra.mxu0 0.0
  %1723 = vmatprep.subr.mxu0 0.0
  %1724 = vmatpush1.msra.mxu0 0.0
  %1725 = vmatprep.subr.mxu0 0.0
  %1726 = vmatpush1.msra.mxu0 0.0
  %1727 = vmatprep.subr.mxu0 0.0
  %1728 = vmatpush1.msra.mxu0 0.0
  %1729 = vmatprep.subr.mxu0 0.0
  %1730 = vmatpush1.msra.mxu0 0.0
  %1731 = vmatprep.subr.mxu0 0.0
  %1732 = vmatpush1.msra.mxu0 0.0
  %1733 = vmatprep.mubr.f32.mxu0 0.0
  %1734 = vmatmul.mubr.f32.gmra.mrb[0].mxu0 %v1664
  %v1735 = vpop.f32.mrb[0].mxu0
  %v1736 = vadd.f32 0.0, %v1735
  %v1737 = vpop.f32.mrb[0].mxu0
  %v1738 = vadd.f32 0.0, %v1737
  %1739 = vdwg.mxu0
  %1740 = vmatprep.subr.mxu0 %v390
  %1741 = vmatpush1.msra.mxu0 %v389
  %1742 = vmatprep.subr.mxu0 %v394
  %1743 = vmatpush1.msra.mxu0 %v393
  %1744 = vmatprep.subr.mxu0 %v398
  %1745 = vmatpush1.msra.mxu0 %v397
  %1746 = vmatprep.subr.mxu0 %v402
  %1747 = vmatpush1.msra.mxu0 %v401
  %1748 = vmatprep.subr.mxu0 %v406
  %1749 = vmatpush1.msra.mxu0 %v405
  %1750 = vmatprep.subr.mxu0 %v410
  %1751 = vmatpush1.msra.mxu0 %v409
  %1752 = vmatprep.subr.mxu0 %v414
  %1753 = vmatpush1.msra.mxu0 %v413
  %1754 = vmatprep.subr.mxu0 %v418
  %1755 = vmatpush1.msra.mxu0 %v417
  %1756 = vmatprep.subr.mxu0 %v422
  %1757 = vmatpush1.msra.mxu0 %v421
  %1758 = vmatprep.subr.mxu0 %v426
  %1759 = vmatpush1.msra.mxu0 %v425
  %1760 = vmatprep.subr.mxu0 %v430
  %1761 = vmatpush1.msra.mxu0 %v429
  %1762 = vmatprep.subr.mxu0 %v434
  %1763 = vmatpush1.msra.mxu0 %v433
  %1764 = vmatprep.subr.mxu0 %v438
  %1765 = vmatpush1.msra.mxu0 %v437
  %1766 = vmatprep.subr.mxu0 %v442
  %1767 = vmatpush1.msra.mxu0 %v441
  %1768 = vmatprep.subr.mxu0 %v446
  %1769 = vmatpush1.msra.mxu0 %v445
  %1770 = vmatprep.subr.mxu0 %v450
  %1771 = vmatpush1.msra.mxu0 %v449
  %1772 = vmatprep.subr.mxu0 0.0
  %1773 = vmatpush1.msra.mxu0 0.0
  %1774 = vmatprep.subr.mxu0 0.0
  %1775 = vmatpush1.msra.mxu0 0.0
  %1776 = vmatprep.subr.mxu0 0.0
  %1777 = vmatpush1.msra.mxu0 0.0
  %1778 = vmatprep.subr.mxu0 0.0
  %1779 = vmatpush1.msra.mxu0 0.0
  %1780 = vmatprep.subr.mxu0 0.0
  %1781 = vmatpush1.msra.mxu0 0.0
  %1782 = vmatprep.subr.mxu0 0.0
  %1783 = vmatpush1.msra.mxu0 0.0
  %1784 = vmatprep.subr.mxu0 0.0
  %1785 = vmatpush1.msra.mxu0 0.0
  %1786 = vmatprep.subr.mxu0 0.0
  %1787 = vmatpush1.msra.mxu0 0.0
  %1788 = vmatprep.subr.mxu0 0.0
  %1789 = vmatpush1.msra.mxu0 0.0
  %1790 = vmatprep.subr.mxu0 0.0
  %1791 = vmatpush1.msra.mxu0 0.0
  %1792 = vmatprep.subr.mxu0 0.0
  %1793 = vmatpush1.msra.mxu0 0.0
  %1794 = vmatprep.subr.mxu0 0.0
  %1795 = vmatpush1.msra.mxu0 0.0
  %1796 = vmatprep.subr.mxu0 0.0
  %1797 = vmatpush1.msra.mxu0 0.0
  %1798 = vmatprep.subr.mxu0 0.0
  %1799 = vmatpush1.msra.mxu0 0.0
  %1800 = vmatprep.subr.mxu0 0.0
  %1801 = vmatpush1.msra.mxu0 0.0
  %1802 = vmatprep.subr.mxu0 0.0
  %1803 = vmatpush1.msra.mxu0 0.0
  %1804 = vmatprep.mubr.f32.mxu0 0.0
  %1805 = vmatmul.mubr.f32.gmra.mrb[0].mxu0 %v1664
  %v1806 = vpop.f32.mrb[0].mxu0
  %v1807 = vadd.f32 0.0, %v1806
  %v1808 = vpop.f32.mrb[0].mxu0
  %v1809 = vadd.f32 0.0, %v1808
  %1810 = vdwg.mxu0
  %v1811 = vadd.f32 %v1665, %v1736
  %v1812 = vadd.f32 %v1666, %v1738
  %v1813 = vadd.f32 %v1667, %v1807
  %v1814 = vadd.f32 %v1668, %v1809
  %v1815 = vxor.u32 %v1811, 2147483648
  %v1816 = vmul.f32 %v1815, 1.442695
  %v1817 = vpow.pop %v1816
  %v1818 = vadd.f32 %v1817, 1.0
  %v1819 = vrcp.pop %v1818
  %v1820 = vmul.f32 1.0, %v1819
  %v1821 = vxor.u32 %v1812, 2147483648
  %v1822 = vmul.f32 %v1821, 1.442695
  %v1823 = vpow.pop %v1822
  %v1824 = vadd.f32 %v1823, 1.0
  %v1825 = vrcp.pop %v1824
  %v1826 = vmul.f32 1.0, %v1825
  %v1827 = vtanh.pop %v1813
  %v1828 = vxor.u32 %v1814, 2147483648
  %v1829 = vmul.f32 %v1828, 1.442695
  %v1830 = vpow.pop %v1829
  %v1831 = vadd.f32 %v1830, 1.0
  %v1832 = vrcp.pop %v1831
  %v1833 = vmul.f32 1.0, %v1832
  %v1834 = vmul.f32 %v1826, %v1662
  %v1835 = vmul.f32 %v1820, %v1827
  %v1836 = vadd.f32 %v1834, %v1835
  %v1837 = vtanh.pop %v1836
  %v1838 = vmul.f32 %v1833, %v1837
  %1839 = vst [vmem:[#allocation2] sm:$0xff] %v1838
  %1840 = vst [vmem:[#allocation3] sm:$0xff] %v1836
  // Predicated region
  $region30: #{lstm_model_forward.3} parent=0 // pred_check
    %p1841 = pneg %p23
  $region31: #{lstm_model_forward.3} parent=0 // pred_check_branch
    %1843 = sbr.rel (%p1841) target = $region33
  $region32: #{lstm_model_forward.3} parent=0 // pred_region
    %v1844 = vld [vmem:[%s4] sm:$0xff]
    %v1845 = vld [vmem:[%s4 + $0x8] sm:$0xff]
    %v1846 = vld [vmem:[%s4 + $0x10] sm:$0xff]
    %v1847 = vld [vmem:[%s4 + $0x18] sm:$0xff]
    %v1848 = vld [vmem:[%s4 + $0x20] sm:$0xff]
    %v1849 = vld [vmem:[%s4 + $0x28] sm:$0xff]
    %v1850 = vld [vmem:[%s4 + $0x30] sm:$0xff]
    %v1851 = vld [vmem:[%s4 + $0x38] sm:$0xff]
    %v1852 = vld [vmem:[%s4 + $0x40] sm:$0xff]
    %v1853 = vld [vmem:[%s4 + $0x48] sm:$0xff]
    %v1854 = vld [vmem:[%s4 + $0x50] sm:$0xff]
    %v1855 = vld [vmem:[%s4 + $0x58] sm:$0xff]
    %v1856 = vld [vmem:[%s4 + $0x60] sm:$0xff]
    %v1857 = vld [vmem:[%s4 + $0x68] sm:$0xff]
    %v1858 = vld [vmem:[%s4 + $0x70] sm:$0xff]
    %v1859 = vld [vmem:[%s4 + $0x78] sm:$0xff]
    %v1860 = vld [vmem:[%s5] sm:$0x1]
    %v1862 = vlaneseq
    %v1863 = vshrl.u32 %v1862, 7
    %v1864 = vsub.s32 0, %v1863
    %v1865 = vrot.slane %v1860, %v1864
    %1867 = vmatprep.subr.mxu0 0.0
    %1868 = vmatpush1.msra.mxu0 %v1844
    %1869 = vmatprep.subr.mxu0 0.0
    %1870 = vmatpush1.msra.mxu0 %v1845
    %1871 = vmatprep.subr.mxu0 0.0
    %1872 = vmatpush1.msra.mxu0 %v1846
    %1873 = vmatprep.subr.mxu0 0.0
    %1874 = vmatpush1.msra.mxu0 %v1847
    %1875 = vmatprep.subr.mxu0 0.0
    %1876 = vmatpush1.msra.mxu0 %v1848
    %1877 = vmatprep.subr.mxu0 0.0
    %1878 = vmatpush1.msra.mxu0 %v1849
    %1879 = vmatprep.subr.mxu0 0.0
    %1880 = vmatpush1.msra.mxu0 %v1850
    %1881 = vmatprep.subr.mxu0 0.0
    %1882 = vmatpush1.msra.mxu0 %v1851
    %1883 = vmatprep.subr.mxu0 0.0
    %1884 = vmatpush1.msra.mxu0 %v1852
    %1885 = vmatprep.subr.mxu0 0.0
    %1886 = vmatpush1.msra.mxu0 %v1853
    %1887 = vmatprep.subr.mxu0 0.0
    %1888 = vmatpush1.msra.mxu0 %v1854
    %1889 = vmatprep.subr.mxu0 0.0
    %1890 = vmatpush1.msra.mxu0 %v1855
    %1891 = vmatprep.subr.mxu0 0.0
    %1892 = vmatpush1.msra.mxu0 %v1856
    %1893 = vmatprep.subr.mxu0 0.0
    %1894 = vmatpush1.msra.mxu0 %v1857
    %1895 = vmatprep.subr.mxu0 0.0
    %1896 = vmatpush1.msra.mxu0 %v1858
    %1897 = vmatprep.subr.mxu0 0.0
    %1898 = vmatpush1.msra.mxu0 %v1859
    %1899 = vmatprep.subr.mxu0 0.0
    %1900 = vmatpush1.msra.mxu0 0.0
    %1901 = vmatprep.subr.mxu0 0.0
    %1902 = vmatpush1.msra.mxu0 0.0
    %1903 = vmatprep.subr.mxu0 0.0
    %1904 = vmatpush1.msra.mxu0 0.0
    %1905 = vmatprep.subr.mxu0 0.0
    %1906 = vmatpush1.msra.mxu0 0.0
    %1907 = vmatprep.subr.mxu0 0.0
    %1908 = vmatpush1.msra.mxu0 0.0
    %1909 = vmatprep.subr.mxu0 0.0
    %1910 = vmatpush1.msra.mxu0 0.0
    %1911 = vmatprep.subr.mxu0 0.0
    %1912 = vmatpush1.msra.mxu0 0.0
    %1913 = vmatprep.subr.mxu0 0.0
    %1914 = vmatpush1.msra.mxu0 0.0
    %1915 = vmatprep.subr.mxu0 0.0
    %1916 = vmatpush1.msra.mxu0 0.0
    %1917 = vmatprep.subr.mxu0 0.0
    %1918 = vmatpush1.msra.mxu0 0.0
    %1919 = vmatprep.subr.mxu0 0.0
    %1920 = vmatpush1.msra.mxu0 0.0
    %1921 = vmatprep.subr.mxu0 0.0
    %1922 = vmatpush1.msra.mxu0 0.0
    %1923 = vmatprep.subr.mxu0 0.0
    %1924 = vmatpush1.msra.mxu0 0.0
    %1925 = vmatprep.subr.mxu0 0.0
    %1926 = vmatpush1.msra.mxu0 0.0
    %1927 = vmatprep.subr.mxu0 0.0
    %1928 = vmatpush1.msra.mxu0 0.0
    %1929 = vmatprep.subr.mxu0 0.0
    %1930 = vmatpush1.msra.mxu0 0.0
    %1931 = vmatprep.mubr.f32.mxu0 0.0
    %1932 = vmatmul.mubr.f32.gmra.mrb[0].mxu0 %v1838
    %v1933 = vpop.f32.mrb[0].mxu0
    %v1934 = vadd.f32 %v1865, %v1933
    %v1935 = vpop.f32.mrb[0].mxu0
    %1936 = vdwg.mxu0
    %1937 = vst [vmem:[%s6] sm:$0xff] %v1934
  $region33: #{lstm_model_forward.3} parent=0 // pred_fallthru
    _
  // Predicated region
  $region34: #{lstm_model_forward.3} parent=0 // pred_check
    _
  $region35: #{lstm_model_forward.3} parent=0 // pred_check_branch
    %1939 = sbr.rel (0) target = $region37
  $region36: #{lstm_model_forward.3} parent=0 // pred_region
    _
  $region37: #{lstm_model_forward.3} parent=0 // pred_fallthru
    _
  // Predicated region
  $region38: #{lstm_model_forward.3} parent=0 // pred_check
    _
  $region39: #{lstm_model_forward.3} parent=0 // pred_check_branch
    %1941 = sbr.rel (0) target = $region41
  $region40: #{lstm_model_forward.3} parent=0 // pred_region
    _
  $region41: #{lstm_model_forward.3} parent=0 // pred_fallthru
    _

// kernel: lstm_model_forward.2
$region0: #{lstm_model_forward.2}
  #allocation0 [shape = 'u32[]', space=smem, size = 0x4, offset = 0x4, fixed_abs, tag = 'smem constant byte address 0x4 - core index']
  #allocation1 [shape = 'u32[144,128]{1,0:T(1,128)}', space=vmem, size = 0x12000, scoped, tag = 'internal scratch']
  #allocation2 [shape = 'f32[8,128]{1,0:T(8,128)}', space=vmem, size = 0x1000, scoped, tag = 'scratch operand']
  #allocation3 [shape = 'f32[8,128]{1,0:T(8,128)}', space=vmem, size = 0x1000, scoped, tag = 'scratch operand']
  #allocation4 [shape = 'f32[64,512]{1,0:T(8,128)}', space=vmem, size = 0x20000, scoped, tag = 'scratch operand']
  %s0 = inlined_call_operand.vmem [shape: f32[64,128], index: 0, kind: input, shape index: {}]
  %s1 = inlined_call_operand.vmem [shape: f32[128,512], index: 1, kind: input, shape index: {}]
  %s2 = inlined_call_operand.vmem [shape: f32[128,512], index: 2, kind: input, shape index: {}]
  %s3 = inlined_call_operand.vmem [shape: f32[1,512], index: 3, kind: input, shape index: {}]
  %s4 = inlined_call_operand.vmem [shape: f32[64,128], index: 4, kind: output, shape index: {}]
  %s5 = sld [smem:[#allocation0]]
  $region30: #{lstm_model_forward.2} parent=0
    _
  %s7 = ssub.s32 1, %s5
  %s8 = scalar_select 0, %s7, %s5
  // Predicated region
  $region2: #{lstm_model_forward.2} parent=0 // pred_check
    _
  $region3: #{lstm_model_forward.2} parent=0 // pred_check_branch
    %10 = sbr.rel (0) target = $region5
  $region4: #{lstm_model_forward.2} parent=0 // pred_region
    _
  $region5: #{lstm_model_forward.2} parent=0 // pred_fallthru
    _
  // Predicated region
  $region6: #{lstm_model_forward.2} parent=0 // pred_check
    _
  $region7: #{lstm_model_forward.2} parent=0 // pred_check_branch
    %12 = sbr.rel (0) target = $region9
  $region8: #{lstm_model_forward.2} parent=0 // pred_region
    _
  $region9: #{lstm_model_forward.2} parent=0 // pred_fallthru
    _
  // Predicated region
  $region10: #{lstm_model_forward.2} parent=0 // pred_check
    _
  $region11: #{lstm_model_forward.2} parent=0 // pred_check_branch
    %14 = sbr.rel (0) target = $region13
  $region12: #{lstm_model_forward.2} parent=0 // pred_region
    _
  $region13: #{lstm_model_forward.2} parent=0 // pred_fallthru
    _
  // Predicated region
  $region14: #{lstm_model_forward.2} parent=0 // pred_check
    _
  $region15: #{lstm_model_forward.2} parent=0 // pred_check_branch
    %16 = sbr.rel (0) target = $region17
  $region16: #{lstm_model_forward.2} parent=0 // pred_region
    _
  $region17: #{lstm_model_forward.2} parent=0 // pred_fallthru
    _
  %p17 = scmp.eq.s32.totalorder 0, 0
  // Predicated region
  $region18: #{lstm_model_forward.2} parent=0 // pred_check
    %p18 = pneg %p17
  $region19: #{lstm_model_forward.2} parent=0 // pred_check_branch
    %20 = sbr.rel (%p18) target = $region21
  $region20: #{lstm_model_forward.2} parent=0 // pred_region
    %21 = vst [vmem:[#allocation2] sm:$0xff] 0.0
    %22 = vst [vmem:[#allocation3] sm:$0xff] 0.0
  $region21: #{lstm_model_forward.2} parent=0 // pred_fallthru
    _
  %v23 = vld [vmem:[%s0] sm:$0xff]
  %v24 = vld [vmem:[%s0 + $0x8] sm:$0xff]
  %v25 = vld [vmem:[%s0 + $0x10] sm:$0xff]
  %v26 = vld [vmem:[%s0 + $0x18] sm:$0xff]
  %v27 = vld [vmem:[%s0 + $0x20] sm:$0xff]
  %v28 = vld [vmem:[%s0 + $0x28] sm:$0xff]
  %v29 = vld [vmem:[%s0 + $0x30] sm:$0xff]
  %v30 = vld [vmem:[%s0 + $0x38] sm:$0xff]
  %v31 = vld [vmem:[%s1] sm:$0xff]
  %v32 = vld [vmem:[%s1 + $0x8] sm:$0xff]
  %v33 = vld [vmem:[%s1 + $0x10] sm:$0xff]
  %v34 = vld [vmem:[%s1 + $0x18] sm:$0xff]
  %v35 = vld [vmem:[%s1 + $0x20] sm:$0xff]
  %v36 = vld [vmem:[%s1 + $0x28] sm:$0xff]
  %v37 = vld [vmem:[%s1 + $0x30] sm:$0xff]
  %v38 = vld [vmem:[%s1 + $0x38] sm:$0xff]
  %v39 = vld [vmem:[%s1 + $0x40] sm:$0xff]
  %v40 = vld [vmem:[%s1 + $0x48] sm:$0xff]
  %v41 = vld [vmem:[%s1 + $0x50] sm:$0xff]
  %v42 = vld [vmem:[%s1 + $0x58] sm:$0xff]
  %v43 = vld [vmem:[%s1 + $0x60] sm:$0xff]
  %v44 = vld [vmem:[%s1 + $0x68] sm:$0xff]
  %v45 = vld [vmem:[%s1 + $0x70] sm:$0xff]
  %v46 = vld [vmem:[%s1 + $0x78] sm:$0xff]
  %v47 = vld [vmem:[%s1 + $0x80] sm:$0xff]
  %v48 = vld [vmem:[%s1 + $0x88] sm:$0xff]
  %v49 = vld [vmem:[%s1 + $0x90] sm:$0xff]
  %v50 = vld [vmem:[%s1 + $0x98] sm:$0xff]
  %v51 = vld [vmem:[%s1 + $0xa0] sm:$0xff]
  %v52 = vld [vmem:[%s1 + $0xa8] sm:$0xff]
  %v53 = vld [vmem:[%s1 + $0xb0] sm:$0xff]
  %v54 = vld [vmem:[%s1 + $0xb8] sm:$0xff]
  %v55 = vld [vmem:[%s1 + $0xc0] sm:$0xff]
  %v56 = vld [vmem:[%s1 + $0xc8] sm:$0xff]
  %v57 = vld [vmem:[%s1 + $0xd0] sm:$0xff]
  %v58 = vld [vmem:[%s1 + $0xd8] sm:$0xff]
  %v59 = vld [vmem:[%s1 + $0xe0] sm:$0xff]
  %v60 = vld [vmem:[%s1 + $0xe8] sm:$0xff]
  %v61 = vld [vmem:[%s1 + $0xf0] sm:$0xff]
  %v62 = vld [vmem:[%s1 + $0xf8] sm:$0xff]
  %v63 = vld [vmem:[%s1 + $0x100] sm:$0xff]
  %v64 = vld [vmem:[%s1 + $0x108] sm:$0xff]
  %v65 = vld [vmem:[%s1 + $0x110] sm:$0xff]
  %v66 = vld [vmem:[%s1 + $0x118] sm:$0xff]
  %v67 = vld [vmem:[%s1 + $0x120] sm:$0xff]
  %v68 = vld [vmem:[%s1 + $0x128] sm:$0xff]
  %v69 = vld [vmem:[%s1 + $0x130] sm:$0xff]
  %v70 = vld [vmem:[%s1 + $0x138] sm:$0xff]
  %v71 = vld [vmem:[%s1 + $0x140] sm:$0xff]
  %v72 = vld [vmem:[%s1 + $0x148] sm:$0xff]
  %v73 = vld [vmem:[%s1 + $0x150] sm:$0xff]
  %v74 = vld [vmem:[%s1 + $0x158] sm:$0xff]
  %v75 = vld [vmem:[%s1 + $0x160] sm:$0xff]
  %v76 = vld [vmem:[%s1 + $0x168] sm:$0xff]
  %v77 = vld [vmem:[%s1 + $0x170] sm:$0xff]
  %v78 = vld [vmem:[%s1 + $0x178] sm:$0xff]
  %v79 = vld [vmem:[%s1 + $0x180] sm:$0xff]
  %v80 = vld [vmem:[%s1 + $0x188] sm:$0xff]
  %v81 = vld [vmem:[%s1 + $0x190] sm:$0xff]
  %v82 = vld [vmem:[%s1 + $0x198] sm:$0xff]
  %v83 = vld [vmem:[%s1 + $0x1a0] sm:$0xff]
  %v84 = vld [vmem:[%s1 + $0x1a8] sm:$0xff]
  %v85 = vld [vmem:[%s1 + $0x1b0] sm:$0xff]
  %v86 = vld [vmem:[%s1 + $0x1b8] sm:$0xff]
  %v87 = vld [vmem:[%s1 + $0x1c0] sm:$0xff]
  %v88 = vld [vmem:[%s1 + $0x1c8] sm:$0xff]
  %v89 = vld [vmem:[%s1 + $0x1d0] sm:$0xff]
  %v90 = vld [vmem:[%s1 + $0x1d8] sm:$0xff]
  %v91 = vld [vmem:[%s1 + $0x1e0] sm:$0xff]
  %v92 = vld [vmem:[%s1 + $0x1e8] sm:$0xff]
  %v93 = vld [vmem:[%s1 + $0x1f0] sm:$0xff]
  %v94 = vld [vmem:[%s1 + $0x1f8] sm:$0xff]
  %v95 = vld [vmem:[%s3] sm:$0xf]
  %v97 = vlaneseq
  %v98 = vshrl.u32 %v97, 7
  %v99 = vsub.s32 0, %v98
  %v100 = vrot.slane %v95, %v99
  %v101 = vlaneseq
  %v102 = vshrl.u32 %v101, 7
  %v103 = vsub.s32 1, %v102
  %v104 = vrot.slane %v95, %v103
  %v105 = vlaneseq
  %v106 = vshrl.u32 %v105, 7
  %v107 = vsub.s32 2, %v106
  %v108 = vrot.slane %v95, %v107
  %v109 = vlaneseq
  %v110 = vshrl.u32 %v109, 7
  %v111 = vsub.s32 3, %v110
  %v112 = vrot.slane %v95, %v111
  %117 = vmatprep.subr.mxu0 %v32
  %118 = vmatpush1.msra.mxu0 %v31
  %119 = vmatprep.subr.mxu0 %v36
  %120 = vmatpush1.msra.mxu0 %v35
  %121 = vmatprep.subr.mxu0 %v40
  %122 = vmatpush1.msra.mxu0 %v39
  %123 = vmatprep.subr.mxu0 %v44
  %124 = vmatpush1.msra.mxu0 %v43
  %125 = vmatprep.subr.mxu0 %v48
  %126 = vmatpush1.msra.mxu0 %v47
  %127 = vmatprep.subr.mxu0 %v52
  %128 = vmatpush1.msra.mxu0 %v51
  %129 = vmatprep.subr.mxu0 %v56
  %130 = vmatpush1.msra.mxu0 %v55
  %131 = vmatprep.subr.mxu0 %v60
  %132 = vmatpush1.msra.mxu0 %v59
  %133 = vmatprep.subr.mxu0 %v64
  %134 = vmatpush1.msra.mxu0 %v63
  %135 = vmatprep.subr.mxu0 %v68
  %136 = vmatpush1.msra.mxu0 %v67
  %137 = vmatprep.subr.mxu0 %v72
  %138 = vmatpush1.msra.mxu0 %v71
  %139 = vmatprep.subr.mxu0 %v76
  %140 = vmatpush1.msra.mxu0 %v75
  %141 = vmatprep.subr.mxu0 %v80
  %142 = vmatpush1.msra.mxu0 %v79
  %143 = vmatprep.subr.mxu0 %v84
  %144 = vmatpush1.msra.mxu0 %v83
  %145 = vmatprep.subr.mxu0 %v88
  %146 = vmatpush1.msra.mxu0 %v87
  %147 = vmatprep.subr.mxu0 %v92
  %148 = vmatpush1.msra.mxu0 %v91
  %149 = vmatprep.subr.mxu0 0.0
  %150 = vmatpush1.msra.mxu0 0.0
  %151 = vmatprep.subr.mxu0 0.0
  %152 = vmatpush1.msra.mxu0 0.0
  %153 = vmatprep.subr.mxu0 0.0
  %154 = vmatpush1.msra.mxu0 0.0
  %155 = vmatprep.subr.mxu0 0.0
  %156 = vmatpush1.msra.mxu0 0.0
  %157 = vmatprep.subr.mxu0 0.0
  %158 = vmatpush1.msra.mxu0 0.0
  %159 = vmatprep.subr.mxu0 0.0
  %160 = vmatpush1.msra.mxu0 0.0
  %161 = vmatprep.subr.mxu0 0.0
  %162 = vmatpush1.msra.mxu0 0.0
  %163 = vmatprep.subr.mxu0 0.0
  %164 = vmatpush1.msra.mxu0 0.0
  %165 = vmatprep.subr.mxu0 0.0
  %166 = vmatpush1.msra.mxu0 0.0
  %167 = vmatprep.subr.mxu0 0.0
  %168 = vmatpush1.msra.mxu0 0.0
  %169 = vmatprep.subr.mxu0 0.0
  %170 = vmatpush1.msra.mxu0 0.0
  %171 = vmatprep.subr.mxu0 0.0
  %172 = vmatpush1.msra.mxu0 0.0
  %173 = vmatprep.subr.mxu0 0.0
  %174 = vmatpush1.msra.mxu0 0.0
  %175 = vmatprep.subr.mxu0 0.0
  %176 = vmatpush1.msra.mxu0 0.0
  %177 = vmatprep.subr.mxu0 0.0
  %178 = vmatpush1.msra.mxu0 0.0
  %179 = vmatprep.subr.mxu0 0.0
  %180 = vmatpush1.msra.mxu0 0.0
  %181 = vmatprep.mubr.f32.mxu0 0.0
  %182 = vmatmul.mubr.f32.gmra.mrb[0].mxu0 %v23
  %v183 = vpop.f32.mrb[0].mxu0
  %v184 = vadd.f32 %v100, %v183
  %v185 = vpop.f32.mrb[0].mxu0
  %v186 = vadd.f32 %v104, %v185
  %187 = vmatprep.mubr.f32.mxu0 0.0
  %188 = vmatmul.mubr.f32.gmra.mrb[0].mxu0 %v24
  %v189 = vpop.f32.mrb[0].mxu0
  %v190 = vadd.f32 %v100, %v189
  %v191 = vpop.f32.mrb[0].mxu0
  %v192 = vadd.f32 %v104, %v191
  %193 = vmatprep.mubr.f32.mxu0 0.0
  %194 = vmatmul.mubr.f32.gmra.mrb[0].mxu0 %v25
  %v195 = vpop.f32.mrb[0].mxu0
  %v196 = vadd.f32 %v100, %v195
  %v197 = vpop.f32.mrb[0].mxu0
  %v198 = vadd.f32 %v104, %v197
  %199 = vmatprep.mubr.f32.mxu0 0.0
  %200 = vmatmul.mubr.f32.gmra.mrb[0].mxu0 %v26
  %v201 = vpop.f32.mrb[0].mxu0
  %v202 = vadd.f32 %v100, %v201
  %v203 = vpop.f32.mrb[0].mxu0
  %v204 = vadd.f32 %v104, %v203
  %205 = vmatprep.mubr.f32.mxu0 0.0
  %206 = vmatmul.mubr.f32.gmra.mrb[0].mxu0 %v27
  %v207 = vpop.f32.mrb[0].mxu0
  %v208 = vadd.f32 %v100, %v207
  %v209 = vpop.f32.mrb[0].mxu0
  %v210 = vadd.f32 %v104, %v209
  %211 = vmatprep.mubr.f32.mxu0 0.0
  %212 = vmatmul.mubr.f32.gmra.mrb[0].mxu0 %v28
  %v213 = vpop.f32.mrb[0].mxu0
  %v214 = vadd.f32 %v100, %v213
  %v215 = vpop.f32.mrb[0].mxu0
  %v216 = vadd.f32 %v104, %v215
  %217 = vmatprep.mubr.f32.mxu0 0.0
  %218 = vmatmul.mubr.f32.gmra.mrb[0].mxu0 %v29
  %v219 = vpop.f32.mrb[0].mxu0
  %v220 = vadd.f32 %v100, %v219
  %v221 = vpop.f32.mrb[0].mxu0
  %v222 = vadd.f32 %v104, %v221
  %223 = vmatprep.mubr.f32.mxu0 0.0
  %224 = vmatmul.mubr.f32.gmra.mrb[0].mxu0 %v30
  %v225 = vpop.f32.mrb[0].mxu0
  %v226 = vadd.f32 %v100, %v225
  %v227 = vpop.f32.mrb[0].mxu0
  %v228 = vadd.f32 %v104, %v227
  %229 = vdwg.mxu0
  %230 = vmatprep.subr.mxu0 %v34
  %231 = vmatpush1.msra.mxu0 %v33
  %232 = vmatprep.subr.mxu0 %v38
  %233 = vmatpush1.msra.mxu0 %v37
  %234 = vmatprep.subr.mxu0 %v42
  %235 = vmatpush1.msra.mxu0 %v41
  %236 = vmatprep.subr.mxu0 %v46
  %237 = vmatpush1.msra.mxu0 %v45
  %238 = vmatprep.subr.mxu0 %v50
  %239 = vmatpush1.msra.mxu0 %v49
  %240 = vmatprep.subr.mxu0 %v54
  %241 = vmatpush1.msra.mxu0 %v53
  %242 = vmatprep.subr.mxu0 %v58
  %243 = vmatpush1.msra.mxu0 %v57
  %244 = vmatprep.subr.mxu0 %v62
  %245 = vmatpush1.msra.mxu0 %v61
  %246 = vmatprep.subr.mxu0 %v66
  %247 = vmatpush1.msra.mxu0 %v65
  %248 = vmatprep.subr.mxu0 %v70
  %249 = vmatpush1.msra.mxu0 %v69
  %250 = vmatprep.subr.mxu0 %v74
  %251 = vmatpush1.msra.mxu0 %v73
  %252 = vmatprep.subr.mxu0 %v78
  %253 = vmatpush1.msra.mxu0 %v77
  %254 = vmatprep.subr.mxu0 %v82
  %255 = vmatpush1.msra.mxu0 %v81
  %256 = vmatprep.subr.mxu0 %v86
  %257 = vmatpush1.msra.mxu0 %v85
  %258 = vmatprep.subr.mxu0 %v90
  %259 = vmatpush1.msra.mxu0 %v89
  %260 = vmatprep.subr.mxu0 %v94
  %261 = vmatpush1.msra.mxu0 %v93
  %262 = vmatprep.subr.mxu0 0.0
  %263 = vmatpush1.msra.mxu0 0.0
  %264 = vmatprep.subr.mxu0 0.0
  %265 = vmatpush1.msra.mxu0 0.0
  %266 = vmatprep.subr.mxu0 0.0
  %267 = vmatpush1.msra.mxu0 0.0
  %268 = vmatprep.subr.mxu0 0.0
  %269 = vmatpush1.msra.mxu0 0.0
  %270 = vmatprep.subr.mxu0 0.0
  %271 = vmatpush1.msra.mxu0 0.0
  %272 = vmatprep.subr.mxu0 0.0
  %273 = vmatpush1.msra.mxu0 0.0
  %274 = vmatprep.subr.mxu0 0.0
  %275 = vmatpush1.msra.mxu0 0.0
  %276 = vmatprep.subr.mxu0 0.0
  %277 = vmatpush1.msra.mxu0 0.0
  %278 = vmatprep.subr.mxu0 0.0
  %279 = vmatpush1.msra.mxu0 0.0
  %280 = vmatprep.subr.mxu0 0.0
  %281 = vmatpush1.msra.mxu0 0.0
  %282 = vmatprep.subr.mxu0 0.0
  %283 = vmatpush1.msra.mxu0 0.0
  %284 = vmatprep.subr.mxu0 0.0
  %285 = vmatpush1.msra.mxu0 0.0
  %286 = vmatprep.subr.mxu0 0.0
  %287 = vmatpush1.msra.mxu0 0.0
  %288 = vmatprep.subr.mxu0 0.0
  %289 = vmatpush1.msra.mxu0 0.0
  %290 = vmatprep.subr.mxu0 0.0
  %291 = vmatpush1.msra.mxu0 0.0
  %292 = vmatprep.subr.mxu0 0.0
  %293 = vmatpush1.msra.mxu0 0.0
  %294 = vmatprep.mubr.f32.mxu0 0.0
  %295 = vmatmul.mubr.f32.gmra.mrb[0].mxu0 %v23
  %v296 = vpop.f32.mrb[0].mxu0
  %v297 = vadd.f32 %v108, %v296
  %v298 = vpop.f32.mrb[0].mxu0
  %v299 = vadd.f32 %v112, %v298
  %300 = vmatprep.mubr.f32.mxu0 0.0
  %301 = vmatmul.mubr.f32.gmra.mrb[0].mxu0 %v24
  %v302 = vpop.f32.mrb[0].mxu0
  %v303 = vadd.f32 %v108, %v302
  %v304 = vpop.f32.mrb[0].mxu0
  %v305 = vadd.f32 %v112, %v304
  %306 = vmatprep.mubr.f32.mxu0 0.0
  %307 = vmatmul.mubr.f32.gmra.mrb[0].mxu0 %v25
  %v308 = vpop.f32.mrb[0].mxu0
  %v309 = vadd.f32 %v108, %v308
  %v310 = vpop.f32.mrb[0].mxu0
  %v311 = vadd.f32 %v112, %v310
  %312 = vmatprep.mubr.f32.mxu0 0.0
  %313 = vmatmul.mubr.f32.gmra.mrb[0].mxu0 %v26
  %v314 = vpop.f32.mrb[0].mxu0
  %v315 = vadd.f32 %v108, %v314
  %v316 = vpop.f32.mrb[0].mxu0
  %v317 = vadd.f32 %v112, %v316
  %318 = vmatprep.mubr.f32.mxu0 0.0
  %319 = vmatmul.mubr.f32.gmra.mrb[0].mxu0 %v27
  %v320 = vpop.f32.mrb[0].mxu0
  %v321 = vadd.f32 %v108, %v320
  %v322 = vpop.f32.mrb[0].mxu0
  %v323 = vadd.f32 %v112, %v322
  %324 = vmatprep.mubr.f32.mxu0 0.0
  %325 = vmatmul.mubr.f32.gmra.mrb[0].mxu0 %v28
  %v326 = vpop.f32.mrb[0].mxu0
  %v327 = vadd.f32 %v108, %v326
  %v328 = vpop.f32.mrb[0].mxu0
  %v329 = vadd.f32 %v112, %v328
  %330 = vmatprep.mubr.f32.mxu0 0.0
  %331 = vmatmul.mubr.f32.gmra.mrb[0].mxu0 %v29
  %v332 = vpop.f32.mrb[0].mxu0
  %v333 = vadd.f32 %v108, %v332
  %v334 = vpop.f32.mrb[0].mxu0
  %v335 = vadd.f32 %v112, %v334
  %336 = vmatprep.mubr.f32.mxu0 0.0
  %337 = vmatmul.mubr.f32.gmra.mrb[0].mxu0 %v30
  %v338 = vpop.f32.mrb[0].mxu0
  %v339 = vadd.f32 %v108, %v338
  %v340 = vpop.f32.mrb[0].mxu0
  %v341 = vadd.f32 %v112, %v340
  %342 = vdwg.mxu0
  %343 = vst [vmem:[#allocation4] sm:$0xff] %v184
  %344 = vst [vmem:[#allocation4 + $0x8] sm:$0xff] %v186
  %345 = vst [vmem:[#allocation4 + $0x10] sm:$0xff] %v297
  %346 = vst [vmem:[#allocation4 + $0x18] sm:$0xff] %v299
  %347 = vst [vmem:[#allocation4 + $0x20] sm:$0xff] %v190
  %348 = vst [vmem:[#allocation4 + $0x28] sm:$0xff] %v192
  %349 = vst [vmem:[#allocation4 + $0x30] sm:$0xff] %v303
  %350 = vst [vmem:[#allocation4 + $0x38] sm:$0xff] %v305
  %351 = vst [vmem:[#allocation4 + $0x40] sm:$0xff] %v196
  %352 = vst [vmem:[#allocation4 + $0x48] sm:$0xff] %v198
  %353 = vst [vmem:[#allocation4 + $0x50] sm:$0xff] %v309
  %354 = vst [vmem:[#allocation4 + $0x58] sm:$0xff] %v311
  %355 = vst [vmem:[#allocation4 + $0x60] sm:$0xff] %v202
  %356 = vst [vmem:[#allocation4 + $0x68] sm:$0xff] %v204
  %357 = vst [vmem:[#allocation4 + $0x70] sm:$0xff] %v315
  %358 = vst [vmem:[#allocation4 + $0x78] sm:$0xff] %v317
  %359 = vst [vmem:[#allocation4 + $0x80] sm:$0xff] %v208
  %360 = vst [vmem:[#allocation4 + $0x88] sm:$0xff] %v210
  %361 = vst [vmem:[#allocation4 + $0x90] sm:$0xff] %v321
  %362 = vst [vmem:[#allocation4 + $0x98] sm:$0xff] %v323
  %363 = vst [vmem:[#allocation4 + $0xa0] sm:$0xff] %v214
  %364 = vst [vmem:[#allocation4 + $0xa8] sm:$0xff] %v216
  %365 = vst [vmem:[#allocation4 + $0xb0] sm:$0xff] %v327
  %366 = vst [vmem:[#allocation4 + $0xb8] sm:$0xff] %v329
  %367 = vst [vmem:[#allocation4 + $0xc0] sm:$0xff] %v220
  %368 = vst [vmem:[#allocation4 + $0xc8] sm:$0xff] %v222
  %369 = vst [vmem:[#allocation4 + $0xd0] sm:$0xff] %v333
  %370 = vst [vmem:[#allocation4 + $0xd8] sm:$0xff] %v335
  %371 = vst [vmem:[#allocation4 + $0xe0] sm:$0xff] %v226
  %372 = vst [vmem:[#allocation4 + $0xe8] sm:$0xff] %v228
  %373 = vst [vmem:[#allocation4 + $0xf0] sm:$0xff] %v339
  %374 = vst [vmem:[#allocation4 + $0xf8] sm:$0xff] %v341
  %v375 = vld [vmem:[#allocation2] sm:$0xff]
  %v376 = vld [vmem:[#allocation3] sm:$0xff]
  %v377 = vld [vmem:[#allocation4] sm:$0xff]
  %v378 = vld [vmem:[#allocation4 + $0x8] sm:$0xff]
  %v379 = vld [vmem:[#allocation4 + $0x10] sm:$0xff]
  %v380 = vld [vmem:[#allocation4 + $0x18] sm:$0xff]
  %v381 = vld [vmem:[%s2] sm:$0xff]
  %v382 = vld [vmem:[%s2 + $0x8] sm:$0xff]
  %v383 = vld [vmem:[%s2 + $0x10] sm:$0xff]
  %v384 = vld [vmem:[%s2 + $0x18] sm:$0xff]
  %v385 = vld [vmem:[%s2 + $0x20] sm:$0xff]
  %v386 = vld [vmem:[%s2 + $0x28] sm:$0xff]
  %v387 = vld [vmem:[%s2 + $0x30] sm:$0xff]
  %v388 = vld [vmem:[%s2 + $0x38] sm:$0xff]
  %v389 = vld [vmem:[%s2 + $0x40] sm:$0xff]
  %v390 = vld [vmem:[%s2 + $0x48] sm:$0xff]
  %v391 = vld [vmem:[%s2 + $0x50] sm:$0xff]
  %v392 = vld [vmem:[%s2 + $0x58] sm:$0xff]
  %v393 = vld [vmem:[%s2 + $0x60] sm:$0xff]
  %v394 = vld [vmem:[%s2 + $0x68] sm:$0xff]
  %v395 = vld [vmem:[%s2 + $0x70] sm:$0xff]
  %v396 = vld [vmem:[%s2 + $0x78] sm:$0xff]
  %v397 = vld [vmem:[%s2 + $0x80] sm:$0xff]
  %v398 = vld [vmem:[%s2 + $0x88] sm:$0xff]
  %v399 = vld [vmem:[%s2 + $0x90] sm:$0xff]
  %v400 = vld [vmem:[%s2 + $0x98] sm:$0xff]
  %v401 = vld [vmem:[%s2 + $0xa0] sm:$0xff]
  %v402 = vld [vmem:[%s2 + $0xa8] sm:$0xff]
  %v403 = vld [vmem:[%s2 + $0xb0] sm:$0xff]
  %v404 = vld [vmem:[%s2 + $0xb8] sm:$0xff]
  %v405 = vld [vmem:[%s2 + $0xc0] sm:$0xff]
  %v406 = vld [vmem:[%s2 + $0xc8] sm:$0xff]
  %v407 = vld [vmem:[%s2 + $0xd0] sm:$0xff]
  %v408 = vld [vmem:[%s2 + $0xd8] sm:$0xff]
  %v409 = vld [vmem:[%s2 + $0xe0] sm:$0xff]
  %v410 = vld [vmem:[%s2 + $0xe8] sm:$0xff]
  %v411 = vld [vmem:[%s2 + $0xf0] sm:$0xff]
  %v412 = vld [vmem:[%s2 + $0xf8] sm:$0xff]
  %v413 = vld [vmem:[%s2 + $0x100] sm:$0xff]
  %v414 = vld [vmem:[%s2 + $0x108] sm:$0xff]
  %v415 = vld [vmem:[%s2 + $0x110] sm:$0xff]
  %v416 = vld [vmem:[%s2 + $0x118] sm:$0xff]
  %v417 = vld [vmem:[%s2 + $0x120] sm:$0xff]
  %v418 = vld [vmem:[%s2 + $0x128] sm:$0xff]
  %v419 = vld [vmem:[%s2 + $0x130] sm:$0xff]
  %v420 = vld [vmem:[%s2 + $0x138] sm:$0xff]
  %v421 = vld [vmem:[%s2 + $0x140] sm:$0xff]
  %v422 = vld [vmem:[%s2 + $0x148] sm:$0xff]
  %v423 = vld [vmem:[%s2 + $0x150] sm:$0xff]
  %v424 = vld [vmem:[%s2 + $0x158] sm:$0xff]
  %v425 = vld [vmem:[%s2 + $0x160] sm:$0xff]
  %v426 = vld [vmem:[%s2 + $0x168] sm:$0xff]
  %v427 = vld [vmem:[%s2 + $0x170] sm:$0xff]
  %v428 = vld [vmem:[%s2 + $0x178] sm:$0xff]
  %v429 = vld [vmem:[%s2 + $0x180] sm:$0xff]
  %v430 = vld [vmem:[%s2 + $0x188] sm:$0xff]
  %v431 = vld [vmem:[%s2 + $0x190] sm:$0xff]
  %v432 = vld [vmem:[%s2 + $0x198] sm:$0xff]
  %v433 = vld [vmem:[%s2 + $0x1a0] sm:$0xff]
  %v434 = vld [vmem:[%s2 + $0x1a8] sm:$0xff]
  %v435 = vld [vmem:[%s2 + $0x1b0] sm:$0xff]
  %v436 = vld [vmem:[%s2 + $0x1b8] sm:$0xff]
  %v437 = vld [vmem:[%s2 + $0x1c0] sm:$0xff]
  %v438 = vld [vmem:[%s2 + $0x1c8] sm:$0xff]
  %v439 = vld [vmem:[%s2 + $0x1d0] sm:$0xff]
  %v440 = vld [vmem:[%s2 + $0x1d8] sm:$0xff]
  %v441 = vld [vmem:[%s2 + $0x1e0] sm:$0xff]
  %v442 = vld [vmem:[%s2 + $0x1e8] sm:$0xff]
  %v443 = vld [vmem:[%s2 + $0x1f0] sm:$0xff]
  %v444 = vld [vmem:[%s2 + $0x1f8] sm:$0xff]
  %445 = vmatprep.subr.mxu0 %v382
  %446 = vmatpush1.msra.mxu0 %v381
  %447 = vmatprep.subr.mxu0 %v386
  %448 = vmatpush1.msra.mxu0 %v385
  %449 = vmatprep.subr.mxu0 %v390
  %450 = vmatpush1.msra.mxu0 %v389
  %451 = vmatprep.subr.mxu0 %v394
  %452 = vmatpush1.msra.mxu0 %v393
  %453 = vmatprep.subr.mxu0 %v398
  %454 = vmatpush1.msra.mxu0 %v397
  %455 = vmatprep.subr.mxu0 %v402
  %456 = vmatpush1.msra.mxu0 %v401
  %457 = vmatprep.subr.mxu0 %v406
  %458 = vmatpush1.msra.mxu0 %v405
  %459 = vmatprep.subr.mxu0 %v410
  %460 = vmatpush1.msra.mxu0 %v409
  %461 = vmatprep.subr.mxu0 %v414
  %462 = vmatpush1.msra.mxu0 %v413
  %463 = vmatprep.subr.mxu0 %v418
  %464 = vmatpush1.msra.mxu0 %v417
  %465 = vmatprep.subr.mxu0 %v422
  %466 = vmatpush1.msra.mxu0 %v421
  %467 = vmatprep.subr.mxu0 %v426
  %468 = vmatpush1.msra.mxu0 %v425
  %469 = vmatprep.subr.mxu0 %v430
  %470 = vmatpush1.msra.mxu0 %v429
  %471 = vmatprep.subr.mxu0 %v434
  %472 = vmatpush1.msra.mxu0 %v433
  %473 = vmatprep.subr.mxu0 %v438
  %474 = vmatpush1.msra.mxu0 %v437
  %475 = vmatprep.subr.mxu0 %v442
  %476 = vmatpush1.msra.mxu0 %v441
  %477 = vmatprep.subr.mxu0 0.0
  %478 = vmatpush1.msra.mxu0 0.0
  %479 = vmatprep.subr.mxu0 0.0
  %480 = vmatpush1.msra.mxu0 0.0
  %481 = vmatprep.subr.mxu0 0.0
  %482 = vmatpush1.msra.mxu0 0.0
  %483 = vmatprep.subr.mxu0 0.0
  %484 = vmatpush1.msra.mxu0 0.0
  %485 = vmatprep.subr.mxu0 0.0
  %486 = vmatpush1.msra.mxu0 0.0
  %487 = vmatprep.subr.mxu0 0.0
  %488 = vmatpush1.msra.mxu0 0.0
  %489 = vmatprep.subr.mxu0 0.0
  %490 = vmatpush1.msra.mxu0 0.0
  %491 = vmatprep.subr.mxu0 0.0
  %492 = vmatpush1.msra.mxu0 0.0
  %493 = vmatprep.subr.mxu0 0.0
  %494 = vmatpush1.msra.mxu0 0.0
  %495 = vmatprep.subr.mxu0 0.0
  %496 = vmatpush1.msra.mxu0 0.0
  %497 = vmatprep.subr.mxu0 0.0
  %498 = vmatpush1.msra.mxu0 0.0
  %499 = vmatprep.subr.mxu0 0.0
  %500 = vmatpush1.msra.mxu0 0.0
  %501 = vmatprep.subr.mxu0 0.0
  %502 = vmatpush1.msra.mxu0 0.0
  %503 = vmatprep.subr.mxu0 0.0
  %504 = vmatpush1.msra.mxu0 0.0
  %505 = vmatprep.subr.mxu0 0.0
  %506 = vmatpush1.msra.mxu0 0.0
  %507 = vmatprep.subr.mxu0 0.0
  %508 = vmatpush1.msra.mxu0 0.0
  %509 = vmatprep.mubr.f32.mxu0 0.0
  %510 = vmatmul.mubr.f32.gmra.mrb[0].mxu0 %v375
  %v511 = vpop.f32.mrb[0].mxu0
  %v512 = vadd.f32 0.0, %v511
  %v513 = vpop.f32.mrb[0].mxu0
  %v514 = vadd.f32 0.0, %v513
  %515 = vdwg.mxu0
  %516 = vmatprep.subr.mxu0 %v384
  %517 = vmatpush1.msra.mxu0 %v383
  %518 = vmatprep.subr.mxu0 %v388
  %519 = vmatpush1.msra.mxu0 %v387
  %520 = vmatprep.subr.mxu0 %v392
  %521 = vmatpush1.msra.mxu0 %v391
  %522 = vmatprep.subr.mxu0 %v396
  %523 = vmatpush1.msra.mxu0 %v395
  %524 = vmatprep.subr.mxu0 %v400
  %525 = vmatpush1.msra.mxu0 %v399
  %526 = vmatprep.subr.mxu0 %v404
  %527 = vmatpush1.msra.mxu0 %v403
  %528 = vmatprep.subr.mxu0 %v408
  %529 = vmatpush1.msra.mxu0 %v407
  %530 = vmatprep.subr.mxu0 %v412
  %531 = vmatpush1.msra.mxu0 %v411
  %532 = vmatprep.subr.mxu0 %v416
  %533 = vmatpush1.msra.mxu0 %v415
  %534 = vmatprep.subr.mxu0 %v420
  %535 = vmatpush1.msra.mxu0 %v419
  %536 = vmatprep.subr.mxu0 %v424
  %537 = vmatpush1.msra.mxu0 %v423
  %538 = vmatprep.subr.mxu0 %v428
  %539 = vmatpush1.msra.mxu0 %v427
  %540 = vmatprep.subr.mxu0 %v432
  %541 = vmatpush1.msra.mxu0 %v431
  %542 = vmatprep.subr.mxu0 %v436
  %543 = vmatpush1.msra.mxu0 %v435
  %544 = vmatprep.subr.mxu0 %v440
  %545 = vmatpush1.msra.mxu0 %v439
  %546 = vmatprep.subr.mxu0 %v444
  %547 = vmatpush1.msra.mxu0 %v443
  %548 = vmatprep.subr.mxu0 0.0
  %549 = vmatpush1.msra.mxu0 0.0
  %550 = vmatprep.subr.mxu0 0.0
  %551 = vmatpush1.msra.mxu0 0.0
  %552 = vmatprep.subr.mxu0 0.0
  %553 = vmatpush1.msra.mxu0 0.0
  %554 = vmatprep.subr.mxu0 0.0
  %555 = vmatpush1.msra.mxu0 0.0
  %556 = vmatprep.subr.mxu0 0.0
  %557 = vmatpush1.msra.mxu0 0.0
  %558 = vmatprep.subr.mxu0 0.0
  %559 = vmatpush1.msra.mxu0 0.0
  %560 = vmatprep.subr.mxu0 0.0
  %561 = vmatpush1.msra.mxu0 0.0
  %562 = vmatprep.subr.mxu0 0.0
  %563 = vmatpush1.msra.mxu0 0.0
  %564 = vmatprep.subr.mxu0 0.0
  %565 = vmatpush1.msra.mxu0 0.0
  %566 = vmatprep.subr.mxu0 0.0
  %567 = vmatpush1.msra.mxu0 0.0
  %568 = vmatprep.subr.mxu0 0.0
  %569 = vmatpush1.msra.mxu0 0.0
  %570 = vmatprep.subr.mxu0 0.0
  %571 = vmatpush1.msra.mxu0 0.0
  %572 = vmatprep.subr.mxu0 0.0
  %573 = vmatpush1.msra.mxu0 0.0
  %574 = vmatprep.subr.mxu0 0.0
  %575 = vmatpush1.msra.mxu0 0.0
  %576 = vmatprep.subr.mxu0 0.0
  %577 = vmatpush1.msra.mxu0 0.0
  %578 = vmatprep.subr.mxu0 0.0
  %579 = vmatpush1.msra.mxu0 0.0
  %580 = vmatprep.mubr.f32.mxu0 0.0
  %581 = vmatmul.mubr.f32.gmra.mrb[0].mxu0 %v375
  %v582 = vpop.f32.mrb[0].mxu0
  %v583 = vadd.f32 0.0, %v582
  %v584 = vpop.f32.mrb[0].mxu0
  %v585 = vadd.f32 0.0, %v584
  %586 = vdwg.mxu0
  %v587 = vadd.f32 %v377, %v512
  %v588 = vadd.f32 %v378, %v514
  %v589 = vadd.f32 %v379, %v583
  %v590 = vadd.f32 %v380, %v585
  %v591 = vxor.u32 %v587, 2147483648
  %v592 = vmul.f32 %v591, 1.442695
  %v593 = vpow.pop %v592
  %v594 = vadd.f32 %v593, 1.0
  %v595 = vrcp.pop %v594
  %v596 = vmul.f32 1.0, %v595
  %v597 = vxor.u32 %v588, 2147483648
  %v598 = vmul.f32 %v597, 1.442695
  %v599 = vpow.pop %v598
  %v600 = vadd.f32 %v599, 1.0
  %v601 = vrcp.pop %v600
  %v602 = vmul.f32 1.0, %v601
  %v603 = vtanh.pop %v589
  %v604 = vxor.u32 %v590, 2147483648
  %v605 = vmul.f32 %v604, 1.442695
  %v606 = vpow.pop %v605
  %v607 = vadd.f32 %v606, 1.0
  %v608 = vrcp.pop %v607
  %v609 = vmul.f32 1.0, %v608
  %v610 = vmul.f32 %v602, %v376
  %v611 = vmul.f32 %v596, %v603
  %v612 = vadd.f32 %v610, %v611
  %v613 = vtanh.pop %v612
  %v614 = vmul.f32 %v609, %v613
  %615 = vst [vmem:[%s4] sm:$0xff] %v614
  %v616 = vld [vmem:[#allocation4 + $0x20] sm:$0xff]
  %v617 = vld [vmem:[#allocation4 + $0x28] sm:$0xff]
  %v618 = vld [vmem:[#allocation4 + $0x30] sm:$0xff]
  %v619 = vld [vmem:[#allocation4 + $0x38] sm:$0xff]
  %v620 = vld [vmem:[%s2] sm:$0xff]
  %v621 = vld [vmem:[%s2 + $0x8] sm:$0xff]
  %v622 = vld [vmem:[%s2 + $0x10] sm:$0xff]
  %v623 = vld [vmem:[%s2 + $0x18] sm:$0xff]
  %v624 = vld [vmem:[%s2 + $0x20] sm:$0xff]
  %v625 = vld [vmem:[%s2 + $0x28] sm:$0xff]
  %v626 = vld [vmem:[%s2 + $0x30] sm:$0xff]
  %v627 = vld [vmem:[%s2 + $0x38] sm:$0xff]
  %v628 = vld [vmem:[%s2 + $0x40] sm:$0xff]
  %v629 = vld [vmem:[%s2 + $0x48] sm:$0xff]
  %v630 = vld [vmem:[%s2 + $0x50] sm:$0xff]
  %v631 = vld [vmem:[%s2 + $0x58] sm:$0xff]
  %v632 = vld [vmem:[%s2 + $0x60] sm:$0xff]
  %v633 = vld [vmem:[%s2 + $0x68] sm:$0xff]
  %v634 = vld [vmem:[%s2 + $0x70] sm:$0xff]
  %v635 = vld [vmem:[%s2 + $0x78] sm:$0xff]
  %v636 = vld [vmem:[%s2 + $0x80] sm:$0xff]
  %v637 = vld [vmem:[%s2 + $0x88] sm:$0xff]
  %v638 = vld [vmem:[%s2 + $0x90] sm:$0xff]
  %v639 = vld [vmem:[%s2 + $0x98] sm:$0xff]
  %v640 = vld [vmem:[%s2 + $0xa0] sm:$0xff]
  %v641 = vld [vmem:[%s2 + $0xa8] sm:$0xff]
  %v642 = vld [vmem:[%s2 + $0xb0] sm:$0xff]
  %v643 = vld [vmem:[%s2 + $0xb8] sm:$0xff]
  %v644 = vld [vmem:[%s2 + $0xc0] sm:$0xff]
  %v645 = vld [vmem:[%s2 + $0xc8] sm:$0xff]
  %v646 = vld [vmem:[%s2 + $0xd0] sm:$0xff]
  %v647 = vld [vmem:[%s2 + $0xd8] sm:$0xff]
  %v648 = vld [vmem:[%s2 + $0xe0] sm:$0xff]
  %v649 = vld [vmem:[%s2 + $0xe8] sm:$0xff]
  %v650 = vld [vmem:[%s2 + $0xf0] sm:$0xff]
  %v651 = vld [vmem:[%s2 + $0xf8] sm:$0xff]
  %v652 = vld [vmem:[%s2 + $0x100] sm:$0xff]
  %v653 = vld [vmem:[%s2 + $0x108] sm:$0xff]
  %v654 = vld [vmem:[%s2 + $0x110] sm:$0xff]
  %v655 = vld [vmem:[%s2 + $0x118] sm:$0xff]
  %v656 = vld [vmem:[%s2 + $0x120] sm:$0xff]
  %v657 = vld [vmem:[%s2 + $0x128] sm:$0xff]
  %v658 = vld [vmem:[%s2 + $0x130] sm:$0xff]
  %v659 = vld [vmem:[%s2 + $0x138] sm:$0xff]
  %v660 = vld [vmem:[%s2 + $0x140] sm:$0xff]
  %v661 = vld [vmem:[%s2 + $0x148] sm:$0xff]
  %v662 = vld [vmem:[%s2 + $0x150] sm:$0xff]
  %v663 = vld [vmem:[%s2 + $0x158] sm:$0xff]
  %v664 = vld [vmem:[%s2 + $0x160] sm:$0xff]
  %v665 = vld [vmem:[%s2 + $0x168] sm:$0xff]
  %v666 = vld [vmem:[%s2 + $0x170] sm:$0xff]
  %v667 = vld [vmem:[%s2 + $0x178] sm:$0xff]
  %v668 = vld [vmem:[%s2 + $0x180] sm:$0xff]
  %v669 = vld [vmem:[%s2 + $0x188] sm:$0xff]
  %v670 = vld [vmem:[%s2 + $0x190] sm:$0xff]
  %v671 = vld [vmem:[%s2 + $0x198] sm:$0xff]
  %v672 = vld [vmem:[%s2 + $0x1a0] sm:$0xff]
  %v673 = vld [vmem:[%s2 + $0x1a8] sm:$0xff]
  %v674 = vld [vmem:[%s2 + $0x1b0] sm:$0xff]
  %v675 = vld [vmem:[%s2 + $0x1b8] sm:$0xff]
  %v676 = vld [vmem:[%s2 + $0x1c0] sm:$0xff]
  %v677 = vld [vmem:[%s2 + $0x1c8] sm:$0xff]
  %v678 = vld [vmem:[%s2 + $0x1d0] sm:$0xff]
  %v679 = vld [vmem:[%s2 + $0x1d8] sm:$0xff]
  %v680 = vld [vmem:[%s2 + $0x1e0] sm:$0xff]
  %v681 = vld [vmem:[%s2 + $0x1e8] sm:$0xff]
  %v682 = vld [vmem:[%s2 + $0x1f0] sm:$0xff]
  %v683 = vld [vmem:[%s2 + $0x1f8] sm:$0xff]
  %684 = vmatprep.subr.mxu0 %v621
  %685 = vmatpush1.msra.mxu0 %v620
  %686 = vmatprep.subr.mxu0 %v625
  %687 = vmatpush1.msra.mxu0 %v624
  %688 = vmatprep.subr.mxu0 %v629
  %689 = vmatpush1.msra.mxu0 %v628
  %690 = vmatprep.subr.mxu0 %v633
  %691 = vmatpush1.msra.mxu0 %v632
  %692 = vmatprep.subr.mxu0 %v637
  %693 = vmatpush1.msra.mxu0 %v636
  %694 = vmatprep.subr.mxu0 %v641
  %695 = vmatpush1.msra.mxu0 %v640
  %696 = vmatprep.subr.mxu0 %v645
  %697 = vmatpush1.msra.mxu0 %v644
  %698 = vmatprep.subr.mxu0 %v649
  %699 = vmatpush1.msra.mxu0 %v648
  %700 = vmatprep.subr.mxu0 %v653
  %701 = vmatpush1.msra.mxu0 %v652
  %702 = vmatprep.subr.mxu0 %v657
  %703 = vmatpush1.msra.mxu0 %v656
  %704 = vmatprep.subr.mxu0 %v661
  %705 = vmatpush1.msra.mxu0 %v660
  %706 = vmatprep.subr.mxu0 %v665
  %707 = vmatpush1.msra.mxu0 %v664
  %708 = vmatprep.subr.mxu0 %v669
  %709 = vmatpush1.msra.mxu0 %v668
  %710 = vmatprep.subr.mxu0 %v673
  %711 = vmatpush1.msra.mxu0 %v672
  %712 = vmatprep.subr.mxu0 %v677
  %713 = vmatpush1.msra.mxu0 %v676
  %714 = vmatprep.subr.mxu0 %v681
  %715 = vmatpush1.msra.mxu0 %v680
  %716 = vmatprep.subr.mxu0 0.0
  %717 = vmatpush1.msra.mxu0 0.0
  %718 = vmatprep.subr.mxu0 0.0
  %719 = vmatpush1.msra.mxu0 0.0
  %720 = vmatprep.subr.mxu0 0.0
  %721 = vmatpush1.msra.mxu0 0.0
  %722 = vmatprep.subr.mxu0 0.0
  %723 = vmatpush1.msra.mxu0 0.0
  %724 = vmatprep.subr.mxu0 0.0
  %725 = vmatpush1.msra.mxu0 0.0
  %726 = vmatprep.subr.mxu0 0.0
  %727 = vmatpush1.msra.mxu0 0.0
  %728 = vmatprep.subr.mxu0 0.0
  %729 = vmatpush1.msra.mxu0 0.0
  %730 = vmatprep.subr.mxu0 0.0
  %731 = vmatpush1.msra.mxu0 0.0
  %732 = vmatprep.subr.mxu0 0.0
  %733 = vmatpush1.msra.mxu0 0.0
  %734 = vmatprep.subr.mxu0 0.0
  %735 = vmatpush1.msra.mxu0 0.0
  %736 = vmatprep.subr.mxu0 0.0
  %737 = vmatpush1.msra.mxu0 0.0
  %738 = vmatprep.subr.mxu0 0.0
  %739 = vmatpush1.msra.mxu0 0.0
  %740 = vmatprep.subr.mxu0 0.0
  %741 = vmatpush1.msra.mxu0 0.0
  %742 = vmatprep.subr.mxu0 0.0
  %743 = vmatpush1.msra.mxu0 0.0
  %744 = vmatprep.subr.mxu0 0.0
  %745 = vmatpush1.msra.mxu0 0.0
  %746 = vmatprep.subr.mxu0 0.0
  %747 = vmatpush1.msra.mxu0 0.0
  %748 = vmatprep.mubr.f32.mxu0 0.0
  %749 = vmatmul.mubr.f32.gmra.mrb[0].mxu0 %v614
  %v750 = vpop.f32.mrb[0].mxu0
  %v751 = vadd.f32 0.0, %v750
  %v752 = vpop.f32.mrb[0].mxu0
  %v753 = vadd.f32 0.0, %v752
  %754 = vdwg.mxu0
  %755 = vmatprep.subr.mxu0 %v623
  %756 = vmatpush1.msra.mxu0 %v622
  %757 = vmatprep.subr.mxu0 %v627
  %758 = vmatpush1.msra.mxu0 %v626
  %759 = vmatprep.subr.mxu0 %v631
  %760 = vmatpush1.msra.mxu0 %v630
  %761 = vmatprep.subr.mxu0 %v635
  %762 = vmatpush1.msra.mxu0 %v634
  %763 = vmatprep.subr.mxu0 %v639
  %764 = vmatpush1.msra.mxu0 %v638
  %765 = vmatprep.subr.mxu0 %v643
  %766 = vmatpush1.msra.mxu0 %v642
  %767 = vmatprep.subr.mxu0 %v647
  %768 = vmatpush1.msra.mxu0 %v646
  %769 = vmatprep.subr.mxu0 %v651
  %770 = vmatpush1.msra.mxu0 %v650
  %771 = vmatprep.subr.mxu0 %v655
  %772 = vmatpush1.msra.mxu0 %v654
  %773 = vmatprep.subr.mxu0 %v659
  %774 = vmatpush1.msra.mxu0 %v658
  %775 = vmatprep.subr.mxu0 %v663
  %776 = vmatpush1.msra.mxu0 %v662
  %777 = vmatprep.subr.mxu0 %v667
  %778 = vmatpush1.msra.mxu0 %v666
  %779 = vmatprep.subr.mxu0 %v671
  %780 = vmatpush1.msra.mxu0 %v670
  %781 = vmatprep.subr.mxu0 %v675
  %782 = vmatpush1.msra.mxu0 %v674
  %783 = vmatprep.subr.mxu0 %v679
  %784 = vmatpush1.msra.mxu0 %v678
  %785 = vmatprep.subr.mxu0 %v683
  %786 = vmatpush1.msra.mxu0 %v682
  %787 = vmatprep.subr.mxu0 0.0
  %788 = vmatpush1.msra.mxu0 0.0
  %789 = vmatprep.subr.mxu0 0.0
  %790 = vmatpush1.msra.mxu0 0.0
  %791 = vmatprep.subr.mxu0 0.0
  %792 = vmatpush1.msra.mxu0 0.0
  %793 = vmatprep.subr.mxu0 0.0
  %794 = vmatpush1.msra.mxu0 0.0
  %795 = vmatprep.subr.mxu0 0.0
  %796 = vmatpush1.msra.mxu0 0.0
  %797 = vmatprep.subr.mxu0 0.0
  %798 = vmatpush1.msra.mxu0 0.0
  %799 = vmatprep.subr.mxu0 0.0
  %800 = vmatpush1.msra.mxu0 0.0
  %801 = vmatprep.subr.mxu0 0.0
  %802 = vmatpush1.msra.mxu0 0.0
  %803 = vmatprep.subr.mxu0 0.0
  %804 = vmatpush1.msra.mxu0 0.0
  %805 = vmatprep.subr.mxu0 0.0
  %806 = vmatpush1.msra.mxu0 0.0
  %807 = vmatprep.subr.mxu0 0.0
  %808 = vmatpush1.msra.mxu0 0.0
  %809 = vmatprep.subr.mxu0 0.0
  %810 = vmatpush1.msra.mxu0 0.0
  %811 = vmatprep.subr.mxu0 0.0
  %812 = vmatpush1.msra.mxu0 0.0
  %813 = vmatprep.subr.mxu0 0.0
  %814 = vmatpush1.msra.mxu0 0.0
  %815 = vmatprep.subr.mxu0 0.0
  %816 = vmatpush1.msra.mxu0 0.0
  %817 = vmatprep.subr.mxu0 0.0
  %818 = vmatpush1.msra.mxu0 0.0
  %819 = vmatprep.mubr.f32.mxu0 0.0
  %820 = vmatmul.mubr.f32.gmra.mrb[0].mxu0 %v614
  %v821 = vpop.f32.mrb[0].mxu0
  %v822 = vadd.f32 0.0, %v821
  %v823 = vpop.f32.mrb[0].mxu0
  %v824 = vadd.f32 0.0, %v823
  %825 = vdwg.mxu0
  %v826 = vadd.f32 %v616, %v751
  %v827 = vadd.f32 %v617, %v753
  %v828 = vadd.f32 %v618, %v822
  %v829 = vadd.f32 %v619, %v824
  %v830 = vxor.u32 %v826, 2147483648
  %v831 = vmul.f32 %v830, 1.442695
  %v832 = vpow.pop %v831
  %v833 = vadd.f32 %v832, 1.0
  %v834 = vrcp.pop %v833
  %v835 = vmul.f32 1.0, %v834
  %v836 = vxor.u32 %v827, 2147483648
  %v837 = vmul.f32 %v836, 1.442695
  %v838 = vpow.pop %v837
  %v839 = vadd.f32 %v838, 1.0
  %v840 = vrcp.pop %v839
  %v841 = vmul.f32 1.0, %v840
  %v842 = vtanh.pop %v828
  %v843 = vxor.u32 %v829, 2147483648
  %v844 = vmul.f32 %v843, 1.442695
  %v845 = vpow.pop %v844
  %v846 = vadd.f32 %v845, 1.0
  %v847 = vrcp.pop %v846
  %v848 = vmul.f32 1.0, %v847
  %v849 = vmul.f32 %v841, %v612
  %v850 = vmul.f32 %v835, %v842
  %v851 = vadd.f32 %v849, %v850
  %v852 = vtanh.pop %v851
  %v853 = vmul.f32 %v848, %v852
  %854 = vst [vmem:[%s4 + $0x8] sm:$0xff] %v853
  %v855 = vld [vmem:[#allocation4 + $0x40] sm:$0xff]
  %v856 = vld [vmem:[#allocation4 + $0x48] sm:$0xff]
  %v857 = vld [vmem:[#allocation4 + $0x50] sm:$0xff]
  %v858 = vld [vmem:[#allocation4 + $0x58] sm:$0xff]
  %v859 = vld [vmem:[%s2] sm:$0xff]
  %v860 = vld [vmem:[%s2 + $0x8] sm:$0xff]
  %v861 = vld [vmem:[%s2 + $0x10] sm:$0xff]
  %v862 = vld [vmem:[%s2 + $0x18] sm:$0xff]
  %v863 = vld [vmem:[%s2 + $0x20] sm:$0xff]
  %v864 = vld [vmem:[%s2 + $0x28] sm:$0xff]
  %v865 = vld [vmem:[%s2 + $0x30] sm:$0xff]
  %v866 = vld [vmem:[%s2 + $0x38] sm:$0xff]
  %v867 = vld [vmem:[%s2 + $0x40] sm:$0xff]
  %v868 = vld [vmem:[%s2 + $0x48] sm:$0xff]
  %v869 = vld [vmem:[%s2 + $0x50] sm:$0xff]
  %v870 = vld [vmem:[%s2 + $0x58] sm:$0xff]
  %v871 = vld [vmem:[%s2 + $0x60] sm:$0xff]
  %v872 = vld [vmem:[%s2 + $0x68] sm:$0xff]
  %v873 = vld [vmem:[%s2 + $0x70] sm:$0xff]
  %v874 = vld [vmem:[%s2 + $0x78] sm:$0xff]
  %v875 = vld [vmem:[%s2 + $0x80] sm:$0xff]
  %v876 = vld [vmem:[%s2 + $0x88] sm:$0xff]
  %v877 = vld [vmem:[%s2 + $0x90] sm:$0xff]
  %v878 = vld [vmem:[%s2 + $0x98] sm:$0xff]
  %v879 = vld [vmem:[%s2 + $0xa0] sm:$0xff]
  %v880 = vld [vmem:[%s2 + $0xa8] sm:$0xff]
  %v881 = vld [vmem:[%s2 + $0xb0] sm:$0xff]
  %v882 = vld [vmem:[%s2 + $0xb8] sm:$0xff]
  %v883 = vld [vmem:[%s2 + $0xc0] sm:$0xff]
  %v884 = vld [vmem:[%s2 + $0xc8] sm:$0xff]
  %v885 = vld [vmem:[%s2 + $0xd0] sm:$0xff]
  %v886 = vld [vmem:[%s2 + $0xd8] sm:$0xff]
  %v887 = vld [vmem:[%s2 + $0xe0] sm:$0xff]
  %v888 = vld [vmem:[%s2 + $0xe8] sm:$0xff]
  %v889 = vld [vmem:[%s2 + $0xf0] sm:$0xff]
  %v890 = vld [vmem:[%s2 + $0xf8] sm:$0xff]
  %v891 = vld [vmem:[%s2 + $0x100] sm:$0xff]
  %v892 = vld [vmem:[%s2 + $0x108] sm:$0xff]
  %v893 = vld [vmem:[%s2 + $0x110] sm:$0xff]
  %v894 = vld [vmem:[%s2 + $0x118] sm:$0xff]
  %v895 = vld [vmem:[%s2 + $0x120] sm:$0xff]
  %v896 = vld [vmem:[%s2 + $0x128] sm:$0xff]
  %v897 = vld [vmem:[%s2 + $0x130] sm:$0xff]
  %v898 = vld [vmem:[%s2 + $0x138] sm:$0xff]
  %v899 = vld [vmem:[%s2 + $0x140] sm:$0xff]
  %v900 = vld [vmem:[%s2 + $0x148] sm:$0xff]
  %v901 = vld [vmem:[%s2 + $0x150] sm:$0xff]
  %v902 = vld [vmem:[%s2 + $0x158] sm:$0xff]
  %v903 = vld [vmem:[%s2 + $0x160] sm:$0xff]
  %v904 = vld [vmem:[%s2 + $0x168] sm:$0xff]
  %v905 = vld [vmem:[%s2 + $0x170] sm:$0xff]
  %v906 = vld [vmem:[%s2 + $0x178] sm:$0xff]
  %v907 = vld [vmem:[%s2 + $0x180] sm:$0xff]
  %v908 = vld [vmem:[%s2 + $0x188] sm:$0xff]
  %v909 = vld [vmem:[%s2 + $0x190] sm:$0xff]
  %v910 = vld [vmem:[%s2 + $0x198] sm:$0xff]
  %v911 = vld [vmem:[%s2 + $0x1a0] sm:$0xff]
  %v912 = vld [vmem:[%s2 + $0x1a8] sm:$0xff]
  %v913 = vld [vmem:[%s2 + $0x1b0] sm:$0xff]
  %v914 = vld [vmem:[%s2 + $0x1b8] sm:$0xff]
  %v915 = vld [vmem:[%s2 + $0x1c0] sm:$0xff]
  %v916 = vld [vmem:[%s2 + $0x1c8] sm:$0xff]
  %v917 = vld [vmem:[%s2 + $0x1d0] sm:$0xff]
  %v918 = vld [vmem:[%s2 + $0x1d8] sm:$0xff]
  %v919 = vld [vmem:[%s2 + $0x1e0] sm:$0xff]
  %v920 = vld [vmem:[%s2 + $0x1e8] sm:$0xff]
  %v921 = vld [vmem:[%s2 + $0x1f0] sm:$0xff]
  %v922 = vld [vmem:[%s2 + $0x1f8] sm:$0xff]
  %923 = vmatprep.subr.mxu0 %v860
  %924 = vmatpush1.msra.mxu0 %v859
  %925 = vmatprep.subr.mxu0 %v864
  %926 = vmatpush1.msra.mxu0 %v863
  %927 = vmatprep.subr.mxu0 %v868
  %928 = vmatpush1.msra.mxu0 %v867
  %929 = vmatprep.subr.mxu0 %v872
  %930 = vmatpush1.msra.mxu0 %v871
  %931 = vmatprep.subr.mxu0 %v876
  %932 = vmatpush1.msra.mxu0 %v875
  %933 = vmatprep.subr.mxu0 %v880
  %934 = vmatpush1.msra.mxu0 %v879
  %935 = vmatprep.subr.mxu0 %v884
  %936 = vmatpush1.msra.mxu0 %v883
  %937 = vmatprep.subr.mxu0 %v888
  %938 = vmatpush1.msra.mxu0 %v887
  %939 = vmatprep.subr.mxu0 %v892
  %940 = vmatpush1.msra.mxu0 %v891
  %941 = vmatprep.subr.mxu0 %v896
  %942 = vmatpush1.msra.mxu0 %v895
  %943 = vmatprep.subr.mxu0 %v900
  %944 = vmatpush1.msra.mxu0 %v899
  %945 = vmatprep.subr.mxu0 %v904
  %946 = vmatpush1.msra.mxu0 %v903
  %947 = vmatprep.subr.mxu0 %v908
  %948 = vmatpush1.msra.mxu0 %v907
  %949 = vmatprep.subr.mxu0 %v912
  %950 = vmatpush1.msra.mxu0 %v911
  %951 = vmatprep.subr.mxu0 %v916
  %952 = vmatpush1.msra.mxu0 %v915
  %953 = vmatprep.subr.mxu0 %v920
  %954 = vmatpush1.msra.mxu0 %v919
  %955 = vmatprep.subr.mxu0 0.0
  %956 = vmatpush1.msra.mxu0 0.0
  %957 = vmatprep.subr.mxu0 0.0
  %958 = vmatpush1.msra.mxu0 0.0
  %959 = vmatprep.subr.mxu0 0.0
  %960 = vmatpush1.msra.mxu0 0.0
  %961 = vmatprep.subr.mxu0 0.0
  %962 = vmatpush1.msra.mxu0 0.0
  %963 = vmatprep.subr.mxu0 0.0
  %964 = vmatpush1.msra.mxu0 0.0
  %965 = vmatprep.subr.mxu0 0.0
  %966 = vmatpush1.msra.mxu0 0.0
  %967 = vmatprep.subr.mxu0 0.0
  %968 = vmatpush1.msra.mxu0 0.0
  %969 = vmatprep.subr.mxu0 0.0
  %970 = vmatpush1.msra.mxu0 0.0
  %971 = vmatprep.subr.mxu0 0.0
  %972 = vmatpush1.msra.mxu0 0.0
  %973 = vmatprep.subr.mxu0 0.0
  %974 = vmatpush1.msra.mxu0 0.0
  %975 = vmatprep.subr.mxu0 0.0
  %976 = vmatpush1.msra.mxu0 0.0
  %977 = vmatprep.subr.mxu0 0.0
  %978 = vmatpush1.msra.mxu0 0.0
  %979 = vmatprep.subr.mxu0 0.0
  %980 = vmatpush1.msra.mxu0 0.0
  %981 = vmatprep.subr.mxu0 0.0
  %982 = vmatpush1.msra.mxu0 0.0
  %983 = vmatprep.subr.mxu0 0.0
  %984 = vmatpush1.msra.mxu0 0.0
  %985 = vmatprep.subr.mxu0 0.0
  %986 = vmatpush1.msra.mxu0 0.0
  %987 = vmatprep.mubr.f32.mxu0 0.0
  %988 = vmatmul.mubr.f32.gmra.mrb[0].mxu0 %v853
  %v989 = vpop.f32.mrb[0].mxu0
  %v990 = vadd.f32 0.0, %v989
  %v991 = vpop.f32.mrb[0].mxu0
  %v992 = vadd.f32 0.0, %v991
  %993 = vdwg.mxu0
  %994 = vmatprep.subr.mxu0 %v862
  %995 = vmatpush1.msra.mxu0 %v861
  %996 = vmatprep.subr.mxu0 %v866
  %997 = vmatpush1.msra.mxu0 %v865
  %998 = vmatprep.subr.mxu0 %v870
  %999 = vmatpush1.msra.mxu0 %v869
  %1000 = vmatprep.subr.mxu0 %v874
  %1001 = vmatpush1.msra.mxu0 %v873
  %1002 = vmatprep.subr.mxu0 %v878
  %1003 = vmatpush1.msra.mxu0 %v877
  %1004 = vmatprep.subr.mxu0 %v882
  %1005 = vmatpush1.msra.mxu0 %v881
  %1006 = vmatprep.subr.mxu0 %v886
  %1007 = vmatpush1.msra.mxu0 %v885
  %1008 = vmatprep.subr.mxu0 %v890
  %1009 = vmatpush1.msra.mxu0 %v889
  %1010 = vmatprep.subr.mxu0 %v894
  %1011 = vmatpush1.msra.mxu0 %v893
  %1012 = vmatprep.subr.mxu0 %v898
  %1013 = vmatpush1.msra.mxu0 %v897
  %1014 = vmatprep.subr.mxu0 %v902
  %1015 = vmatpush1.msra.mxu0 %v901
  %1016 = vmatprep.subr.mxu0 %v906
  %1017 = vmatpush1.msra.mxu0 %v905
  %1018 = vmatprep.subr.mxu0 %v910
  %1019 = vmatpush1.msra.mxu0 %v909
  %1020 = vmatprep.subr.mxu0 %v914
  %1021 = vmatpush1.msra.mxu0 %v913
  %1022 = vmatprep.subr.mxu0 %v918
  %1023 = vmatpush1.msra.mxu0 %v917
  %1024 = vmatprep.subr.mxu0 %v922
  %1025 = vmatpush1.msra.mxu0 %v921
  %1026 = vmatprep.subr.mxu0 0.0
  %1027 = vmatpush1.msra.mxu0 0.0
  %1028 = vmatprep.subr.mxu0 0.0
  %1029 = vmatpush1.msra.mxu0 0.0
  %1030 = vmatprep.subr.mxu0 0.0
  %1031 = vmatpush1.msra.mxu0 0.0
  %1032 = vmatprep.subr.mxu0 0.0
  %1033 = vmatpush1.msra.mxu0 0.0
  %1034 = vmatprep.subr.mxu0 0.0
  %1035 = vmatpush1.msra.mxu0 0.0
  %1036 = vmatprep.subr.mxu0 0.0
  %1037 = vmatpush1.msra.mxu0 0.0
  %1038 = vmatprep.subr.mxu0 0.0
  %1039 = vmatpush1.msra.mxu0 0.0
  %1040 = vmatprep.subr.mxu0 0.0
  %1041 = vmatpush1.msra.mxu0 0.0
  %1042 = vmatprep.subr.mxu0 0.0
  %1043 = vmatpush1.msra.mxu0 0.0
  %1044 = vmatprep.subr.mxu0 0.0
  %1045 = vmatpush1.msra.mxu0 0.0
  %1046 = vmatprep.subr.mxu0 0.0
  %1047 = vmatpush1.msra.mxu0 0.0
  %1048 = vmatprep.subr.mxu0 0.0
  %1049 = vmatpush1.msra.mxu0 0.0
  %1050 = vmatprep.subr.mxu0 0.0
  %1051 = vmatpush1.msra.mxu0 0.0
  %1052 = vmatprep.subr.mxu0 0.0
  %1053 = vmatpush1.msra.mxu0 0.0
  %1054 = vmatprep.subr.mxu0 0.0
  %1055 = vmatpush1.msra.mxu0 0.0
  %1056 = vmatprep.subr.mxu0 0.0
  %1057 = vmatpush1.msra.mxu0 0.0
  %1058 = vmatprep.mubr.f32.mxu0 0.0
  %1059 = vmatmul.mubr.f32.gmra.mrb[0].mxu0 %v853
  %v1060 = vpop.f32.mrb[0].mxu0
  %v1061 = vadd.f32 0.0, %v1060
  %v1062 = vpop.f32.mrb[0].mxu0
  %v1063 = vadd.f32 0.0, %v1062
  %1064 = vdwg.mxu0
  %v1065 = vadd.f32 %v855, %v990
  %v1066 = vadd.f32 %v856, %v992
  %v1067 = vadd.f32 %v857, %v1061
  %v1068 = vadd.f32 %v858, %v1063
  %v1069 = vxor.u32 %v1065, 2147483648
  %v1070 = vmul.f32 %v1069, 1.442695
  %v1071 = vpow.pop %v1070
  %v1072 = vadd.f32 %v1071, 1.0
  %v1073 = vrcp.pop %v1072
  %v1074 = vmul.f32 1.0, %v1073
  %v1075 = vxor.u32 %v1066, 2147483648
  %v1076 = vmul.f32 %v1075, 1.442695
  %v1077 = vpow.pop %v1076
  %v1078 = vadd.f32 %v1077, 1.0
  %v1079 = vrcp.pop %v1078
  %v1080 = vmul.f32 1.0, %v1079
  %v1081 = vtanh.pop %v1067
  %v1082 = vxor.u32 %v1068, 2147483648
  %v1083 = vmul.f32 %v1082, 1.442695
  %v1084 = vpow.pop %v1083
  %v1085 = vadd.f32 %v1084, 1.0
  %v1086 = vrcp.pop %v1085
  %v1087 = vmul.f32 1.0, %v1086
  %v1088 = vmul.f32 %v1080, %v851
  %v1089 = vmul.f32 %v1074, %v1081
  %v1090 = vadd.f32 %v1088, %v1089
  %v1091 = vtanh.pop %v1090
  %v1092 = vmul.f32 %v1087, %v1091
  %1093 = vst [vmem:[%s4 + $0x10] sm:$0xff] %v1092
  %v1094 = vld [vmem:[#allocation4 + $0x60] sm:$0xff]
  %v1095 = vld [vmem:[#allocation4 + $0x68] sm:$0xff]
  %v1096 = vld [vmem:[#allocation4 + $0x70] sm:$0xff]
  %v1097 = vld [vmem:[#allocation4 + $0x78] sm:$0xff]
  %v1098 = vld [vmem:[%s2] sm:$0xff]
  %v1099 = vld [vmem:[%s2 + $0x8] sm:$0xff]
  %v1100 = vld [vmem:[%s2 + $0x10] sm:$0xff]
  %v1101 = vld [vmem:[%s2 + $0x18] sm:$0xff]
  %v1102 = vld [vmem:[%s2 + $0x20] sm:$0xff]
  %v1103 = vld [vmem:[%s2 + $0x28] sm:$0xff]
  %v1104 = vld [vmem:[%s2 + $0x30] sm:$0xff]
  %v1105 = vld [vmem:[%s2 + $0x38] sm:$0xff]
  %v1106 = vld [vmem:[%s2 + $0x40] sm:$0xff]
  %v1107 = vld [vmem:[%s2 + $0x48] sm:$0xff]
  %v1108 = vld [vmem:[%s2 + $0x50] sm:$0xff]
  %v1109 = vld [vmem:[%s2 + $0x58] sm:$0xff]
  %v1110 = vld [vmem:[%s2 + $0x60] sm:$0xff]
  %v1111 = vld [vmem:[%s2 + $0x68] sm:$0xff]
  %v1112 = vld [vmem:[%s2 + $0x70] sm:$0xff]
  %v1113 = vld [vmem:[%s2 + $0x78] sm:$0xff]
  %v1114 = vld [vmem:[%s2 + $0x80] sm:$0xff]
  %v1115 = vld [vmem:[%s2 + $0x88] sm:$0xff]
  %v1116 = vld [vmem:[%s2 + $0x90] sm:$0xff]
  %v1117 = vld [vmem:[%s2 + $0x98] sm:$0xff]
  %v1118 = vld [vmem:[%s2 + $0xa0] sm:$0xff]
  %v1119 = vld [vmem:[%s2 + $0xa8] sm:$0xff]
  %v1120 = vld [vmem:[%s2 + $0xb0] sm:$0xff]
  %v1121 = vld [vmem:[%s2 + $0xb8] sm:$0xff]
  %v1122 = vld [vmem:[%s2 + $0xc0] sm:$0xff]
  %v1123 = vld [vmem:[%s2 + $0xc8] sm:$0xff]
  %v1124 = vld [vmem:[%s2 + $0xd0] sm:$0xff]
  %v1125 = vld [vmem:[%s2 + $0xd8] sm:$0xff]
  %v1126 = vld [vmem:[%s2 + $0xe0] sm:$0xff]
  %v1127 = vld [vmem:[%s2 + $0xe8] sm:$0xff]
  %v1128 = vld [vmem:[%s2 + $0xf0] sm:$0xff]
  %v1129 = vld [vmem:[%s2 + $0xf8] sm:$0xff]
  %v1130 = vld [vmem:[%s2 + $0x100] sm:$0xff]
  %v1131 = vld [vmem:[%s2 + $0x108] sm:$0xff]
  %v1132 = vld [vmem:[%s2 + $0x110] sm:$0xff]
  %v1133 = vld [vmem:[%s2 + $0x118] sm:$0xff]
  %v1134 = vld [vmem:[%s2 + $0x120] sm:$0xff]
  %v1135 = vld [vmem:[%s2 + $0x128] sm:$0xff]
  %v1136 = vld [vmem:[%s2 + $0x130] sm:$0xff]
  %v1137 = vld [vmem:[%s2 + $0x138] sm:$0xff]
  %v1138 = vld [vmem:[%s2 + $0x140] sm:$0xff]
  %v1139 = vld [vmem:[%s2 + $0x148] sm:$0xff]
  %v1140 = vld [vmem:[%s2 + $0x150] sm:$0xff]
  %v1141 = vld [vmem:[%s2 + $0x158] sm:$0xff]
  %v1142 = vld [vmem:[%s2 + $0x160] sm:$0xff]
  %v1143 = vld [vmem:[%s2 + $0x168] sm:$0xff]
  %v1144 = vld [vmem:[%s2 + $0x170] sm:$0xff]
  %v1145 = vld [vmem:[%s2 + $0x178] sm:$0xff]
  %v1146 = vld [vmem:[%s2 + $0x180] sm:$0xff]
  %v1147 = vld [vmem:[%s2 + $0x188] sm:$0xff]
  %v1148 = vld [vmem:[%s2 + $0x190] sm:$0xff]
  %v1149 = vld [vmem:[%s2 + $0x198] sm:$0xff]
  %v1150 = vld [vmem:[%s2 + $0x1a0] sm:$0xff]
  %v1151 = vld [vmem:[%s2 + $0x1a8] sm:$0xff]
  %v1152 = vld [vmem:[%s2 + $0x1b0] sm:$0xff]
  %v1153 = vld [vmem:[%s2 + $0x1b8] sm:$0xff]
  %v1154 = vld [vmem:[%s2 + $0x1c0] sm:$0xff]
  %v1155 = vld [vmem:[%s2 + $0x1c8] sm:$0xff]
  %v1156 = vld [vmem:[%s2 + $0x1d0] sm:$0xff]
  %v1157 = vld [vmem:[%s2 + $0x1d8] sm:$0xff]
  %v1158 = vld [vmem:[%s2 + $0x1e0] sm:$0xff]
  %v1159 = vld [vmem:[%s2 + $0x1e8] sm:$0xff]
  %v1160 = vld [vmem:[%s2 + $0x1f0] sm:$0xff]
  %v1161 = vld [vmem:[%s2 + $0x1f8] sm:$0xff]
  %1162 = vmatprep.subr.mxu0 %v1099
  %1163 = vmatpush1.msra.mxu0 %v1098
  %1164 = vmatprep.subr.mxu0 %v1103
  %1165 = vmatpush1.msra.mxu0 %v1102
  %1166 = vmatprep.subr.mxu0 %v1107
  %1167 = vmatpush1.msra.mxu0 %v1106
  %1168 = vmatprep.subr.mxu0 %v1111
  %1169 = vmatpush1.msra.mxu0 %v1110
  %1170 = vmatprep.subr.mxu0 %v1115
  %1171 = vmatpush1.msra.mxu0 %v1114
  %1172 = vmatprep.subr.mxu0 %v1119
  %1173 = vmatpush1.msra.mxu0 %v1118
  %1174 = vmatprep.subr.mxu0 %v1123
  %1175 = vmatpush1.msra.mxu0 %v1122
  %1176 = vmatprep.subr.mxu0 %v1127
  %1177 = vmatpush1.msra.mxu0 %v1126
  %1178 = vmatprep.subr.mxu0 %v1131
  %1179 = vmatpush1.msra.mxu0 %v1130
  %1180 = vmatprep.subr.mxu0 %v1135
  %1181 = vmatpush1.msra.mxu0 %v1134
  %1182 = vmatprep.subr.mxu0 %v1139
  %1183 = vmatpush1.msra.mxu0 %v1138
  %1184 = vmatprep.subr.mxu0 %v1143
  %1185 = vmatpush1.msra.mxu0 %v1142
  %1186 = vmatprep.subr.mxu0 %v1147
  %1187 = vmatpush1.msra.mxu0 %v1146
  %1188 = vmatprep.subr.mxu0 %v1151
  %1189 = vmatpush1.msra.mxu0 %v1150
  %1190 = vmatprep.subr.mxu0 %v1155
  %1191 = vmatpush1.msra.mxu0 %v1154
  %1192 = vmatprep.subr.mxu0 %v1159
  %1193 = vmatpush1.msra.mxu0 %v1158
  %1194 = vmatprep.subr.mxu0 0.0
  %1195 = vmatpush1.msra.mxu0 0.0
  %1196 = vmatprep.subr.mxu0 0.0
  %1197 = vmatpush1.msra.mxu0 0.0
  %1198 = vmatprep.subr.mxu0 0.0
  %1199 = vmatpush1.msra.mxu0 0.0
  %1200 = vmatprep.subr.mxu0 0.0
  %1201 = vmatpush1.msra.mxu0 0.0
  %1202 = vmatprep.subr.mxu0 0.0
  %1203 = vmatpush1.msra.mxu0 0.0
  %1204 = vmatprep.subr.mxu0 0.0
  %1205 = vmatpush1.msra.mxu0 0.0
  %1206 = vmatprep.subr.mxu0 0.0
  %1207 = vmatpush1.msra.mxu0 0.0
  %1208 = vmatprep.subr.mxu0 0.0
  %1209 = vmatpush1.msra.mxu0 0.0
  %1210 = vmatprep.subr.mxu0 0.0
  %1211 = vmatpush1.msra.mxu0 0.0
  %1212 = vmatprep.subr.mxu0 0.0
  %1213 = vmatpush1.msra.mxu0 0.0
  %1214 = vmatprep.subr.mxu0 0.0
  %1215 = vmatpush1.msra.mxu0 0.0
  %1216 = vmatprep.subr.mxu0 0.0
  %1217 = vmatpush1.msra.mxu0 0.0
  %1218 = vmatprep.subr.mxu0 0.0
  %1219 = vmatpush1.msra.mxu0 0.0
  %1220 = vmatprep.subr.mxu0 0.0
  %1221 = vmatpush1.msra.mxu0 0.0
  %1222 = vmatprep.subr.mxu0 0.0
  %1223 = vmatpush1.msra.mxu0 0.0
  %1224 = vmatprep.subr.mxu0 0.0
  %1225 = vmatpush1.msra.mxu0 0.0
  %1226 = vmatprep.mubr.f32.mxu0 0.0
  %1227 = vmatmul.mubr.f32.gmra.mrb[0].mxu0 %v1092
  %v1228 = vpop.f32.mrb[0].mxu0
  %v1229 = vadd.f32 0.0, %v1228
  %v1230 = vpop.f32.mrb[0].mxu0
  %v1231 = vadd.f32 0.0, %v1230
  %1232 = vdwg.mxu0
  %1233 = vmatprep.subr.mxu0 %v1101
  %1234 = vmatpush1.msra.mxu0 %v1100
  %1235 = vmatprep.subr.mxu0 %v1105
  %1236 = vmatpush1.msra.mxu0 %v1104
  %1237 = vmatprep.subr.mxu0 %v1109
  %1238 = vmatpush1.msra.mxu0 %v1108
  %1239 = vmatprep.subr.mxu0 %v1113
  %1240 = vmatpush1.msra.mxu0 %v1112
  %1241 = vmatprep.subr.mxu0 %v1117
  %1242 = vmatpush1.msra.mxu0 %v1116
  %1243 = vmatprep.subr.mxu0 %v1121
  %1244 = vmatpush1.msra.mxu0 %v1120
  %1245 = vmatprep.subr.mxu0 %v1125
  %1246 = vmatpush1.msra.mxu0 %v1124
  %1247 = vmatprep.subr.mxu0 %v1129
  %1248 = vmatpush1.msra.mxu0 %v1128
  %1249 = vmatprep.subr.mxu0 %v1133
  %1250 = vmatpush1.msra.mxu0 %v1132
  %1251 = vmatprep.subr.mxu0 %v1137
  %1252 = vmatpush1.msra.mxu0 %v1136
  %1253 = vmatprep.subr.mxu0 %v1141
  %1254 = vmatpush1.msra.mxu0 %v1140
  %1255 = vmatprep.subr.mxu0 %v1145
  %1256 = vmatpush1.msra.mxu0 %v1144
  %1257 = vmatprep.subr.mxu0 %v1149
  %1258 = vmatpush1.msra.mxu0 %v1148
  %1259 = vmatprep.subr.mxu0 %v1153
  %1260 = vmatpush1.msra.mxu0 %v1152
  %1261 = vmatprep.subr.mxu0 %v1157
  %1262 = vmatpush1.msra.mxu0 %v1156
  %1263 = vmatprep.subr.mxu0 %v1161
  %1264 = vmatpush1.msra.mxu0 %v1160
  %1265 = vmatprep.subr.mxu0 0.0
  %1266 = vmatpush1.msra.mxu0 0.0
  %1267 = vmatprep.subr.mxu0 0.0
  %1268 = vmatpush1.msra.mxu0 0.0
  %1269 = vmatprep.subr.mxu0 0.0
  %1270 = vmatpush1.msra.mxu0 0.0
  %1271 = vmatprep.subr.mxu0 0.0
  %1272 = vmatpush1.msra.mxu0 0.0
  %1273 = vmatprep.subr.mxu0 0.0
  %1274 = vmatpush1.msra.mxu0 0.0
  %1275 = vmatprep.subr.mxu0 0.0
  %1276 = vmatpush1.msra.mxu0 0.0
  %1277 = vmatprep.subr.mxu0 0.0
  %1278 = vmatpush1.msra.mxu0 0.0
  %1279 = vmatprep.subr.mxu0 0.0
  %1280 = vmatpush1.msra.mxu0 0.0
  %1281 = vmatprep.subr.mxu0 0.0
  %1282 = vmatpush1.msra.mxu0 0.0
  %1283 = vmatprep.subr.mxu0 0.0
  %1284 = vmatpush1.msra.mxu0 0.0
  %1285 = vmatprep.subr.mxu0 0.0
  %1286 = vmatpush1.msra.mxu0 0.0
  %1287 = vmatprep.subr.mxu0 0.0
  %1288 = vmatpush1.msra.mxu0 0.0
  %1289 = vmatprep.subr.mxu0 0.0
  %1290 = vmatpush1.msra.mxu0 0.0
  %1291 = vmatprep.subr.mxu0 0.0
  %1292 = vmatpush1.msra.mxu0 0.0
  %1293 = vmatprep.subr.mxu0 0.0
  %1294 = vmatpush1.msra.mxu0 0.0
  %1295 = vmatprep.subr.mxu0 0.0
  %1296 = vmatpush1.msra.mxu0 0.0
  %1297 = vmatprep.mubr.f32.mxu0 0.0
  %1298 = vmatmul.mubr.f32.gmra.mrb[0].mxu0 %v1092
  %v1299 = vpop.f32.mrb[0].mxu0
  %v1300 = vadd.f32 0.0, %v1299
  %v1301 = vpop.f32.mrb[0].mxu0
  %v1302 = vadd.f32 0.0, %v1301
  %1303 = vdwg.mxu0
  %v1304 = vadd.f32 %v1094, %v1229
  %v1305 = vadd.f32 %v1095, %v1231
  %v1306 = vadd.f32 %v1096, %v1300
  %v1307 = vadd.f32 %v1097, %v1302
  %v1308 = vxor.u32 %v1304, 2147483648
  %v1309 = vmul.f32 %v1308, 1.442695
  %v1310 = vpow.pop %v1309
  %v1311 = vadd.f32 %v1310, 1.0
  %v1312 = vrcp.pop %v1311
  %v1313 = vmul.f32 1.0, %v1312
  %v1314 = vxor.u32 %v1305, 2147483648
  %v1315 = vmul.f32 %v1314, 1.442695
  %v1316 = vpow.pop %v1315
  %v1317 = vadd.f32 %v1316, 1.0
  %v1318 = vrcp.pop %v1317
  %v1319 = vmul.f32 1.0, %v1318
  %v1320 = vtanh.pop %v1306
  %v1321 = vxor.u32 %v1307, 2147483648
  %v1322 = vmul.f32 %v1321, 1.442695
  %v1323 = vpow.pop %v1322
  %v1324 = vadd.f32 %v1323, 1.0
  %v1325 = vrcp.pop %v1324
  %v1326 = vmul.f32 1.0, %v1325
  %v1327 = vmul.f32 %v1319, %v1090
  %v1328 = vmul.f32 %v1313, %v1320
  %v1329 = vadd.f32 %v1327, %v1328
  %v1330 = vtanh.pop %v1329
  %v1331 = vmul.f32 %v1326, %v1330
  %1332 = vst [vmem:[%s4 + $0x18] sm:$0xff] %v1331
  %v1333 = vld [vmem:[#allocation4 + $0x80] sm:$0xff]
  %v1334 = vld [vmem:[#allocation4 + $0x88] sm:$0xff]
  %v1335 = vld [vmem:[#allocation4 + $0x90] sm:$0xff]
  %v1336 = vld [vmem:[#allocation4 + $0x98] sm:$0xff]
  %v1337 = vld [vmem:[%s2] sm:$0xff]
  %v1338 = vld [vmem:[%s2 + $0x8] sm:$0xff]
  %v1339 = vld [vmem:[%s2 + $0x10] sm:$0xff]
  %v1340 = vld [vmem:[%s2 + $0x18] sm:$0xff]
  %v1341 = vld [vmem:[%s2 + $0x20] sm:$0xff]
  %v1342 = vld [vmem:[%s2 + $0x28] sm:$0xff]
  %v1343 = vld [vmem:[%s2 + $0x30] sm:$0xff]
  %v1344 = vld [vmem:[%s2 + $0x38] sm:$0xff]
  %v1345 = vld [vmem:[%s2 + $0x40] sm:$0xff]
  %v1346 = vld [vmem:[%s2 + $0x48] sm:$0xff]
  %v1347 = vld [vmem:[%s2 + $0x50] sm:$0xff]
  %v1348 = vld [vmem:[%s2 + $0x58] sm:$0xff]
  %v1349 = vld [vmem:[%s2 + $0x60] sm:$0xff]
  %v1350 = vld [vmem:[%s2 + $0x68] sm:$0xff]
  %v1351 = vld [vmem:[%s2 + $0x70] sm:$0xff]
  %v1352 = vld [vmem:[%s2 + $0x78] sm:$0xff]
  %v1353 = vld [vmem:[%s2 + $0x80] sm:$0xff]
  %v1354 = vld [vmem:[%s2 + $0x88] sm:$0xff]
  %v1355 = vld [vmem:[%s2 + $0x90] sm:$0xff]
  %v1356 = vld [vmem:[%s2 + $0x98] sm:$0xff]
  %v1357 = vld [vmem:[%s2 + $0xa0] sm:$0xff]
  %v1358 = vld [vmem:[%s2 + $0xa8] sm:$0xff]
  %v1359 = vld [vmem:[%s2 + $0xb0] sm:$0xff]
  %v1360 = vld [vmem:[%s2 + $0xb8] sm:$0xff]
  %v1361 = vld [vmem:[%s2 + $0xc0] sm:$0xff]
  %v1362 = vld [vmem:[%s2 + $0xc8] sm:$0xff]
  %v1363 = vld [vmem:[%s2 + $0xd0] sm:$0xff]
  %v1364 = vld [vmem:[%s2 + $0xd8] sm:$0xff]
  %v1365 = vld [vmem:[%s2 + $0xe0] sm:$0xff]
  %v1366 = vld [vmem:[%s2 + $0xe8] sm:$0xff]
  %v1367 = vld [vmem:[%s2 + $0xf0] sm:$0xff]
  %v1368 = vld [vmem:[%s2 + $0xf8] sm:$0xff]
  %v1369 = vld [vmem:[%s2 + $0x100] sm:$0xff]
  %v1370 = vld [vmem:[%s2 + $0x108] sm:$0xff]
  %v1371 = vld [vmem:[%s2 + $0x110] sm:$0xff]
  %v1372 = vld [vmem:[%s2 + $0x118] sm:$0xff]
  %v1373 = vld [vmem:[%s2 + $0x120] sm:$0xff]
  %v1374 = vld [vmem:[%s2 + $0x128] sm:$0xff]
  %v1375 = vld [vmem:[%s2 + $0x130] sm:$0xff]
  %v1376 = vld [vmem:[%s2 + $0x138] sm:$0xff]
  %v1377 = vld [vmem:[%s2 + $0x140] sm:$0xff]
  %v1378 = vld [vmem:[%s2 + $0x148] sm:$0xff]
  %v1379 = vld [vmem:[%s2 + $0x150] sm:$0xff]
  %v1380 = vld [vmem:[%s2 + $0x158] sm:$0xff]
  %v1381 = vld [vmem:[%s2 + $0x160] sm:$0xff]
  %v1382 = vld [vmem:[%s2 + $0x168] sm:$0xff]
  %v1383 = vld [vmem:[%s2 + $0x170] sm:$0xff]
  %v1384 = vld [vmem:[%s2 + $0x178] sm:$0xff]
  %v1385 = vld [vmem:[%s2 + $0x180] sm:$0xff]
  %v1386 = vld [vmem:[%s2 + $0x188] sm:$0xff]
  %v1387 = vld [vmem:[%s2 + $0x190] sm:$0xff]
  %v1388 = vld [vmem:[%s2 + $0x198] sm:$0xff]
  %v1389 = vld [vmem:[%s2 + $0x1a0] sm:$0xff]
  %v1390 = vld [vmem:[%s2 + $0x1a8] sm:$0xff]
  %v1391 = vld [vmem:[%s2 + $0x1b0] sm:$0xff]
  %v1392 = vld [vmem:[%s2 + $0x1b8] sm:$0xff]
  %v1393 = vld [vmem:[%s2 + $0x1c0] sm:$0xff]
  %v1394 = vld [vmem:[%s2 + $0x1c8] sm:$0xff]
  %v1395 = vld [vmem:[%s2 + $0x1d0] sm:$0xff]
  %v1396 = vld [vmem:[%s2 + $0x1d8] sm:$0xff]
  %v1397 = vld [vmem:[%s2 + $0x1e0] sm:$0xff]
  %v1398 = vld [vmem:[%s2 + $0x1e8] sm:$0xff]
  %v1399 = vld [vmem:[%s2 + $0x1f0] sm:$0xff]
  %v1400 = vld [vmem:[%s2 + $0x1f8] sm:$0xff]
  %1401 = vmatprep.subr.mxu0 %v1338
  %1402 = vmatpush1.msra.mxu0 %v1337
  %1403 = vmatprep.subr.mxu0 %v1342
  %1404 = vmatpush1.msra.mxu0 %v1341
  %1405 = vmatprep.subr.mxu0 %v1346
  %1406 = vmatpush1.msra.mxu0 %v1345
  %1407 = vmatprep.subr.mxu0 %v1350
  %1408 = vmatpush1.msra.mxu0 %v1349
  %1409 = vmatprep.subr.mxu0 %v1354
  %1410 = vmatpush1.msra.mxu0 %v1353
  %1411 = vmatprep.subr.mxu0 %v1358
  %1412 = vmatpush1.msra.mxu0 %v1357
  %1413 = vmatprep.subr.mxu0 %v1362
  %1414 = vmatpush1.msra.mxu0 %v1361
  %1415 = vmatprep.subr.mxu0 %v1366
  %1416 = vmatpush1.msra.mxu0 %v1365
  %1417 = vmatprep.subr.mxu0 %v1370
  %1418 = vmatpush1.msra.mxu0 %v1369
  %1419 = vmatprep.subr.mxu0 %v1374
  %1420 = vmatpush1.msra.mxu0 %v1373
  %1421 = vmatprep.subr.mxu0 %v1378
  %1422 = vmatpush1.msra.mxu0 %v1377
  %1423 = vmatprep.subr.mxu0 %v1382
  %1424 = vmatpush1.msra.mxu0 %v1381
  %1425 = vmatprep.subr.mxu0 %v1386
  %1426 = vmatpush1.msra.mxu0 %v1385
  %1427 = vmatprep.subr.mxu0 %v1390
  %1428 = vmatpush1.msra.mxu0 %v1389
  %1429 = vmatprep.subr.mxu0 %v1394
  %1430 = vmatpush1.msra.mxu0 %v1393
  %1431 = vmatprep.subr.mxu0 %v1398
  %1432 = vmatpush1.msra.mxu0 %v1397
  %1433 = vmatprep.subr.mxu0 0.0
  %1434 = vmatpush1.msra.mxu0 0.0
  %1435 = vmatprep.subr.mxu0 0.0
  %1436 = vmatpush1.msra.mxu0 0.0
  %1437 = vmatprep.subr.mxu0 0.0
  %1438 = vmatpush1.msra.mxu0 0.0
  %1439 = vmatprep.subr.mxu0 0.0
  %1440 = vmatpush1.msra.mxu0 0.0
  %1441 = vmatprep.subr.mxu0 0.0
  %1442 = vmatpush1.msra.mxu0 0.0
  %1443 = vmatprep.subr.mxu0 0.0
  %1444 = vmatpush1.msra.mxu0 0.0
  %1445 = vmatprep.subr.mxu0 0.0
  %1446 = vmatpush1.msra.mxu0 0.0
  %1447 = vmatprep.subr.mxu0 0.0
  %1448 = vmatpush1.msra.mxu0 0.0
  %1449 = vmatprep.subr.mxu0 0.0
  %1450 = vmatpush1.msra.mxu0 0.0
  %1451 = vmatprep.subr.mxu0 0.0
  %1452 = vmatpush1.msra.mxu0 0.0
  %1453 = vmatprep.subr.mxu0 0.0
  %1454 = vmatpush1.msra.mxu0 0.0
  %1455 = vmatprep.subr.mxu0 0.0
  %1456 = vmatpush1.msra.mxu0 0.0
  %1457 = vmatprep.subr.mxu0 0.0
  %1458 = vmatpush1.msra.mxu0 0.0
  %1459 = vmatprep.subr.mxu0 0.0
  %1460 = vmatpush1.msra.mxu0 0.0
  %1461 = vmatprep.subr.mxu0 0.0
  %1462 = vmatpush1.msra.mxu0 0.0
  %1463 = vmatprep.subr.mxu0 0.0
  %1464 = vmatpush1.msra.mxu0 0.0
  %1465 = vmatprep.mubr.f32.mxu0 0.0
  %1466 = vmatmul.mubr.f32.gmra.mrb[0].mxu0 %v1331
  %v1467 = vpop.f32.mrb[0].mxu0
  %v1468 = vadd.f32 0.0, %v1467
  %v1469 = vpop.f32.mrb[0].mxu0
  %v1470 = vadd.f32 0.0, %v1469
  %1471 = vdwg.mxu0
  %1472 = vmatprep.subr.mxu0 %v1340
  %1473 = vmatpush1.msra.mxu0 %v1339
  %1474 = vmatprep.subr.mxu0 %v1344
  %1475 = vmatpush1.msra.mxu0 %v1343
  %1476 = vmatprep.subr.mxu0 %v1348
  %1477 = vmatpush1.msra.mxu0 %v1347
  %1478 = vmatprep.subr.mxu0 %v1352
  %1479 = vmatpush1.msra.mxu0 %v1351
  %1480 = vmatprep.subr.mxu0 %v1356
  %1481 = vmatpush1.msra.mxu0 %v1355
  %1482 = vmatprep.subr.mxu0 %v1360
  %1483 = vmatpush1.msra.mxu0 %v1359
  %1484 = vmatprep.subr.mxu0 %v1364
  %1485 = vmatpush1.msra.mxu0 %v1363
  %1486 = vmatprep.subr.mxu0 %v1368
  %1487 = vmatpush1.msra.mxu0 %v1367
  %1488 = vmatprep.subr.mxu0 %v1372
  %1489 = vmatpush1.msra.mxu0 %v1371
  %1490 = vmatprep.subr.mxu0 %v1376
  %1491 = vmatpush1.msra.mxu0 %v1375
  %1492 = vmatprep.subr.mxu0 %v1380
  %1493 = vmatpush1.msra.mxu0 %v1379
  %1494 = vmatprep.subr.mxu0 %v1384
  %1495 = vmatpush1.msra.mxu0 %v1383
  %1496 = vmatprep.subr.mxu0 %v1388
  %1497 = vmatpush1.msra.mxu0 %v1387
  %1498 = vmatprep.subr.mxu0 %v1392
  %1499 = vmatpush1.msra.mxu0 %v1391
  %1500 = vmatprep.subr.mxu0 %v1396
  %1501 = vmatpush1.msra.mxu0 %v1395
  %1502 = vmatprep.subr.mxu0 %v1400
  %1503 = vmatpush1.msra.mxu0 %v1399
  %1504 = vmatprep.subr.mxu0 0.0
  %1505 = vmatpush1.msra.mxu0 0.0
  %1506 = vmatprep.subr.mxu0 0.0
  %1507 = vmatpush1.msra.mxu0 0.0
  %1508 = vmatprep.subr.mxu0 0.0
  %1509 = vmatpush1.msra.mxu0 0.0
  %1510 = vmatprep.subr.mxu0 0.0
  %1511 = vmatpush1.msra.mxu0 0.0
  %1512 = vmatprep.subr.mxu0 0.0
  %1513 = vmatpush1.msra.mxu0 0.0
  %1514 = vmatprep.subr.mxu0 0.0
  %1515 = vmatpush1.msra.mxu0 0.0
  %1516 = vmatprep.subr.mxu0 0.0
  %1517 = vmatpush1.msra.mxu0 0.0
  %1518 = vmatprep.subr.mxu0 0.0
  %1519 = vmatpush1.msra.mxu0 0.0
  %1520 = vmatprep.subr.mxu0 0.0
  %1521 = vmatpush1.msra.mxu0 0.0
  %1522 = vmatprep.subr.mxu0 0.0
  %1523 = vmatpush1.msra.mxu0 0.0
  %1524 = vmatprep.subr.mxu0 0.0
  %1525 = vmatpush1.msra.mxu0 0.0
  %1526 = vmatprep.subr.mxu0 0.0
  %1527 = vmatpush1.msra.mxu0 0.0
  %1528 = vmatprep.subr.mxu0 0.0
  %1529 = vmatpush1.msra.mxu0 0.0
  %1530 = vmatprep.subr.mxu0 0.0
  %1531 = vmatpush1.msra.mxu0 0.0
  %1532 = vmatprep.subr.mxu0 0.0
  %1533 = vmatpush1.msra.mxu0 0.0
  %1534 = vmatprep.subr.mxu0 0.0
  %1535 = vmatpush1.msra.mxu0 0.0
  %1536 = vmatprep.mubr.f32.mxu0 0.0
  %1537 = vmatmul.mubr.f32.gmra.mrb[0].mxu0 %v1331
  %v1538 = vpop.f32.mrb[0].mxu0
  %v1539 = vadd.f32 0.0, %v1538
  %v1540 = vpop.f32.mrb[0].mxu0
  %v1541 = vadd.f32 0.0, %v1540
  %1542 = vdwg.mxu0
  %v1543 = vadd.f32 %v1333, %v1468
  %v1544 = vadd.f32 %v1334, %v1470
  %v1545 = vadd.f32 %v1335, %v1539
  %v1546 = vadd.f32 %v1336, %v1541
  %v1547 = vxor.u32 %v1543, 2147483648
  %v1548 = vmul.f32 %v1547, 1.442695
  %v1549 = vpow.pop %v1548
  %v1550 = vadd.f32 %v1549, 1.0
  %v1551 = vrcp.pop %v1550
  %v1552 = vmul.f32 1.0, %v1551
  %v1553 = vxor.u32 %v1544, 2147483648
  %v1554 = vmul.f32 %v1553, 1.442695
  %v1555 = vpow.pop %v1554
  %v1556 = vadd.f32 %v1555, 1.0
  %v1557 = vrcp.pop %v1556
  %v1558 = vmul.f32 1.0, %v1557
  %v1559 = vtanh.pop %v1545
  %v1560 = vxor.u32 %v1546, 2147483648
  %v1561 = vmul.f32 %v1560, 1.442695
  %v1562 = vpow.pop %v1561
  %v1563 = vadd.f32 %v1562, 1.0
  %v1564 = vrcp.pop %v1563
  %v1565 = vmul.f32 1.0, %v1564
  %v1566 = vmul.f32 %v1558, %v1329
  %v1567 = vmul.f32 %v1552, %v1559
  %v1568 = vadd.f32 %v1566, %v1567
  %v1569 = vtanh.pop %v1568
  %v1570 = vmul.f32 %v1565, %v1569
  %1571 = vst [vmem:[%s4 + $0x20] sm:$0xff] %v1570
  %v1572 = vld [vmem:[#allocation4 + $0xa0] sm:$0xff]
  %v1573 = vld [vmem:[#allocation4 + $0xa8] sm:$0xff]
  %v1574 = vld [vmem:[#allocation4 + $0xb0] sm:$0xff]
  %v1575 = vld [vmem:[#allocation4 + $0xb8] sm:$0xff]
  %v1576 = vld [vmem:[%s2] sm:$0xff]
  %v1577 = vld [vmem:[%s2 + $0x8] sm:$0xff]
  %v1578 = vld [vmem:[%s2 + $0x10] sm:$0xff]
  %v1579 = vld [vmem:[%s2 + $0x18] sm:$0xff]
  %v1580 = vld [vmem:[%s2 + $0x20] sm:$0xff]
  %v1581 = vld [vmem:[%s2 + $0x28] sm:$0xff]
  %v1582 = vld [vmem:[%s2 + $0x30] sm:$0xff]
  %v1583 = vld [vmem:[%s2 + $0x38] sm:$0xff]
  %v1584 = vld [vmem:[%s2 + $0x40] sm:$0xff]
  %v1585 = vld [vmem:[%s2 + $0x48] sm:$0xff]
  %v1586 = vld [vmem:[%s2 + $0x50] sm:$0xff]
  %v1587 = vld [vmem:[%s2 + $0x58] sm:$0xff]
  %v1588 = vld [vmem:[%s2 + $0x60] sm:$0xff]
  %v1589 = vld [vmem:[%s2 + $0x68] sm:$0xff]
  %v1590 = vld [vmem:[%s2 + $0x70] sm:$0xff]
  %v1591 = vld [vmem:[%s2 + $0x78] sm:$0xff]
  %v1592 = vld [vmem:[%s2 + $0x80] sm:$0xff]
  %v1593 = vld [vmem:[%s2 + $0x88] sm:$0xff]
  %v1594 = vld [vmem:[%s2 + $0x90] sm:$0xff]
  %v1595 = vld [vmem:[%s2 + $0x98] sm:$0xff]
  %v1596 = vld [vmem:[%s2 + $0xa0] sm:$0xff]
  %v1597 = vld [vmem:[%s2 + $0xa8] sm:$0xff]
  %v1598 = vld [vmem:[%s2 + $0xb0] sm:$0xff]
  %v1599 = vld [vmem:[%s2 + $0xb8] sm:$0xff]
  %v1600 = vld [vmem:[%s2 + $0xc0] sm:$0xff]
  %v1601 = vld [vmem:[%s2 + $0xc8] sm:$0xff]
  %v1602 = vld [vmem:[%s2 + $0xd0] sm:$0xff]
  %v1603 = vld [vmem:[%s2 + $0xd8] sm:$0xff]
  %v1604 = vld [vmem:[%s2 + $0xe0] sm:$0xff]
  %v1605 = vld [vmem:[%s2 + $0xe8] sm:$0xff]
  %v1606 = vld [vmem:[%s2 + $0xf0] sm:$0xff]
  %v1607 = vld [vmem:[%s2 + $0xf8] sm:$0xff]
  %v1608 = vld [vmem:[%s2 + $0x100] sm:$0xff]
  %v1609 = vld [vmem:[%s2 + $0x108] sm:$0xff]
  %v1610 = vld [vmem:[%s2 + $0x110] sm:$0xff]
  %v1611 = vld [vmem:[%s2 + $0x118] sm:$0xff]
  %v1612 = vld [vmem:[%s2 + $0x120] sm:$0xff]
  %v1613 = vld [vmem:[%s2 + $0x128] sm:$0xff]
  %v1614 = vld [vmem:[%s2 + $0x130] sm:$0xff]
  %v1615 = vld [vmem:[%s2 + $0x138] sm:$0xff]
  %v1616 = vld [vmem:[%s2 + $0x140] sm:$0xff]
  %v1617 = vld [vmem:[%s2 + $0x148] sm:$0xff]
  %v1618 = vld [vmem:[%s2 + $0x150] sm:$0xff]
  %v1619 = vld [vmem:[%s2 + $0x158] sm:$0xff]
  %v1620 = vld [vmem:[%s2 + $0x160] sm:$0xff]
  %v1621 = vld [vmem:[%s2 + $0x168] sm:$0xff]
  %v1622 = vld [vmem:[%s2 + $0x170] sm:$0xff]
  %v1623 = vld [vmem:[%s2 + $0x178] sm:$0xff]
  %v1624 = vld [vmem:[%s2 + $0x180] sm:$0xff]
  %v1625 = vld [vmem:[%s2 + $0x188] sm:$0xff]
  %v1626 = vld [vmem:[%s2 + $0x190] sm:$0xff]
  %v1627 = vld [vmem:[%s2 + $0x198] sm:$0xff]
  %v1628 = vld [vmem:[%s2 + $0x1a0] sm:$0xff]
  %v1629 = vld [vmem:[%s2 + $0x1a8] sm:$0xff]
  %v1630 = vld [vmem:[%s2 + $0x1b0] sm:$0xff]
  %v1631 = vld [vmem:[%s2 + $0x1b8] sm:$0xff]
  %v1632 = vld [vmem:[%s2 + $0x1c0] sm:$0xff]
  %v1633 = vld [vmem:[%s2 + $0x1c8] sm:$0xff]
  %v1634 = vld [vmem:[%s2 + $0x1d0] sm:$0xff]
  %v1635 = vld [vmem:[%s2 + $0x1d8] sm:$0xff]
  %v1636 = vld [vmem:[%s2 + $0x1e0] sm:$0xff]
  %v1637 = vld [vmem:[%s2 + $0x1e8] sm:$0xff]
  %v1638 = vld [vmem:[%s2 + $0x1f0] sm:$0xff]
  %v1639 = vld [vmem:[%s2 + $0x1f8] sm:$0xff]
  %1640 = vmatprep.subr.mxu0 %v1577
  %1641 = vmatpush1.msra.mxu0 %v1576
  %1642 = vmatprep.subr.mxu0 %v1581
  %1643 = vmatpush1.msra.mxu0 %v1580
  %1644 = vmatprep.subr.mxu0 %v1585
  %1645 = vmatpush1.msra.mxu0 %v1584
  %1646 = vmatprep.subr.mxu0 %v1589
  %1647 = vmatpush1.msra.mxu0 %v1588
  %1648 = vmatprep.subr.mxu0 %v1593
  %1649 = vmatpush1.msra.mxu0 %v1592
  %1650 = vmatprep.subr.mxu0 %v1597
  %1651 = vmatpush1.msra.mxu0 %v1596
  %1652 = vmatprep.subr.mxu0 %v1601
  %1653 = vmatpush1.msra.mxu0 %v1600
  %1654 = vmatprep.subr.mxu0 %v1605
  %1655 = vmatpush1.msra.mxu0 %v1604
  %1656 = vmatprep.subr.mxu0 %v1609
  %1657 = vmatpush1.msra.mxu0 %v1608
  %1658 = vmatprep.subr.mxu0 %v1613
  %1659 = vmatpush1.msra.mxu0 %v1612
  %1660 = vmatprep.subr.mxu0 %v1617
  %1661 = vmatpush1.msra.mxu0 %v1616
  %1662 = vmatprep.subr.mxu0 %v1621
  %1663 = vmatpush1.msra.mxu0 %v1620
  %1664 = vmatprep.subr.mxu0 %v1625
  %1665 = vmatpush1.msra.mxu0 %v1624
  %1666 = vmatprep.subr.mxu0 %v1629
  %1667 = vmatpush1.msra.mxu0 %v1628
  %1668 = vmatprep.subr.mxu0 %v1633
  %1669 = vmatpush1.msra.mxu0 %v1632
  %1670 = vmatprep.subr.mxu0 %v1637
  %1671 = vmatpush1.msra.mxu0 %v1636
  %1672 = vmatprep.subr.mxu0 0.0
  %1673 = vmatpush1.msra.mxu0 0.0
  %1674 = vmatprep.subr.mxu0 0.0
  %1675 = vmatpush1.msra.mxu0 0.0
  %1676 = vmatprep.subr.mxu0 0.0
  %1677 = vmatpush1.msra.mxu0 0.0
  %1678 = vmatprep.subr.mxu0 0.0
  %1679 = vmatpush1.msra.mxu0 0.0
  %1680 = vmatprep.subr.mxu0 0.0
  %1681 = vmatpush1.msra.mxu0 0.0
  %1682 = vmatprep.subr.mxu0 0.0
  %1683 = vmatpush1.msra.mxu0 0.0
  %1684 = vmatprep.subr.mxu0 0.0
  %1685 = vmatpush1.msra.mxu0 0.0
  %1686 = vmatprep.subr.mxu0 0.0
  %1687 = vmatpush1.msra.mxu0 0.0
  %1688 = vmatprep.subr.mxu0 0.0
  %1689 = vmatpush1.msra.mxu0 0.0
  %1690 = vmatprep.subr.mxu0 0.0
  %1691 = vmatpush1.msra.mxu0 0.0
  %1692 = vmatprep.subr.mxu0 0.0
  %1693 = vmatpush1.msra.mxu0 0.0
  %1694 = vmatprep.subr.mxu0 0.0
  %1695 = vmatpush1.msra.mxu0 0.0
  %1696 = vmatprep.subr.mxu0 0.0
  %1697 = vmatpush1.msra.mxu0 0.0
  %1698 = vmatprep.subr.mxu0 0.0
  %1699 = vmatpush1.msra.mxu0 0.0
  %1700 = vmatprep.subr.mxu0 0.0
  %1701 = vmatpush1.msra.mxu0 0.0
  %1702 = vmatprep.subr.mxu0 0.0
  %1703 = vmatpush1.msra.mxu0 0.0
  %1704 = vmatprep.mubr.f32.mxu0 0.0
  %1705 = vmatmul.mubr.f32.gmra.mrb[0].mxu0 %v1570
  %v1706 = vpop.f32.mrb[0].mxu0
  %v1707 = vadd.f32 0.0, %v1706
  %v1708 = vpop.f32.mrb[0].mxu0
  %v1709 = vadd.f32 0.0, %v1708
  %1710 = vdwg.mxu0
  %1711 = vmatprep.subr.mxu0 %v1579
  %1712 = vmatpush1.msra.mxu0 %v1578
  %1713 = vmatprep.subr.mxu0 %v1583
  %1714 = vmatpush1.msra.mxu0 %v1582
  %1715 = vmatprep.subr.mxu0 %v1587
  %1716 = vmatpush1.msra.mxu0 %v1586
  %1717 = vmatprep.subr.mxu0 %v1591
  %1718 = vmatpush1.msra.mxu0 %v1590
  %1719 = vmatprep.subr.mxu0 %v1595
  %1720 = vmatpush1.msra.mxu0 %v1594
  %1721 = vmatprep.subr.mxu0 %v1599
  %1722 = vmatpush1.msra.mxu0 %v1598
  %1723 = vmatprep.subr.mxu0 %v1603
  %1724 = vmatpush1.msra.mxu0 %v1602
  %1725 = vmatprep.subr.mxu0 %v1607
  %1726 = vmatpush1.msra.mxu0 %v1606
  %1727 = vmatprep.subr.mxu0 %v1611
  %1728 = vmatpush1.msra.mxu0 %v1610
  %1729 = vmatprep.subr.mxu0 %v1615
  %1730 = vmatpush1.msra.mxu0 %v1614
  %1731 = vmatprep.subr.mxu0 %v1619
  %1732 = vmatpush1.msra.mxu0 %v1618
  %1733 = vmatprep.subr.mxu0 %v1623
  %1734 = vmatpush1.msra.mxu0 %v1622
  %1735 = vmatprep.subr.mxu0 %v1627
  %1736 = vmatpush1.msra.mxu0 %v1626
  %1737 = vmatprep.subr.mxu0 %v1631
  %1738 = vmatpush1.msra.mxu0 %v1630
  %1739 = vmatprep.subr.mxu0 %v1635
  %1740 = vmatpush1.msra.mxu0 %v1634
  %1741 = vmatprep.subr.mxu0 %v1639
  %1742 = vmatpush1.msra.mxu0 %v1638
  %1743 = vmatprep.subr.mxu0 0.0
  %1744 = vmatpush1.msra.mxu0 0.0
  %1745 = vmatprep.subr.mxu0 0.0
  %1746 = vmatpush1.msra.mxu0 0.0
  %1747 = vmatprep.subr.mxu0 0.0
  %1748 = vmatpush1.msra.mxu0 0.0
  %1749 = vmatprep.subr.mxu0 0.0
  %1750 = vmatpush1.msra.mxu0 0.0
  %1751 = vmatprep.subr.mxu0 0.0
  %1752 = vmatpush1.msra.mxu0 0.0
  %1753 = vmatprep.subr.mxu0 0.0
  %1754 = vmatpush1.msra.mxu0 0.0
  %1755 = vmatprep.subr.mxu0 0.0
  %1756 = vmatpush1.msra.mxu0 0.0
  %1757 = vmatprep.subr.mxu0 0.0
  %1758 = vmatpush1.msra.mxu0 0.0
  %1759 = vmatprep.subr.mxu0 0.0
  %1760 = vmatpush1.msra.mxu0 0.0
  %1761 = vmatprep.subr.mxu0 0.0
  %1762 = vmatpush1.msra.mxu0 0.0
  %1763 = vmatprep.subr.mxu0 0.0
  %1764 = vmatpush1.msra.mxu0 0.0
  %1765 = vmatprep.subr.mxu0 0.0
  %1766 = vmatpush1.msra.mxu0 0.0
  %1767 = vmatprep.subr.mxu0 0.0
  %1768 = vmatpush1.msra.mxu0 0.0
  %1769 = vmatprep.subr.mxu0 0.0
  %1770 = vmatpush1.msra.mxu0 0.0
  %1771 = vmatprep.subr.mxu0 0.0
  %1772 = vmatpush1.msra.mxu0 0.0
  %1773 = vmatprep.subr.mxu0 0.0
  %1774 = vmatpush1.msra.mxu0 0.0
  %1775 = vmatprep.mubr.f32.mxu0 0.0
  %1776 = vmatmul.mubr.f32.gmra.mrb[0].mxu0 %v1570
  %v1777 = vpop.f32.mrb[0].mxu0
  %v1778 = vadd.f32 0.0, %v1777
  %v1779 = vpop.f32.mrb[0].mxu0
  %v1780 = vadd.f32 0.0, %v1779
  %1781 = vdwg.mxu0
  %v1782 = vadd.f32 %v1572, %v1707
  %v1783 = vadd.f32 %v1573, %v1709
  %v1784 = vadd.f32 %v1574, %v1778
  %v1785 = vadd.f32 %v1575, %v1780
  %v1786 = vxor.u32 %v1782, 2147483648
  %v1787 = vmul.f32 %v1786, 1.442695
  %v1788 = vpow.pop %v1787
  %v1789 = vadd.f32 %v1788, 1.0
  %v1790 = vrcp.pop %v1789
  %v1791 = vmul.f32 1.0, %v1790
  %v1792 = vxor.u32 %v1783, 2147483648
  %v1793 = vmul.f32 %v1792, 1.442695
  %v1794 = vpow.pop %v1793
  %v1795 = vadd.f32 %v1794, 1.0
  %v1796 = vrcp.pop %v1795
  %v1797 = vmul.f32 1.0, %v1796
  %v1798 = vtanh.pop %v1784
  %v1799 = vxor.u32 %v1785, 2147483648
  %v1800 = vmul.f32 %v1799, 1.442695
  %v1801 = vpow.pop %v1800
  %v1802 = vadd.f32 %v1801, 1.0
  %v1803 = vrcp.pop %v1802
  %v1804 = vmul.f32 1.0, %v1803
  %v1805 = vmul.f32 %v1797, %v1568
  %v1806 = vmul.f32 %v1791, %v1798
  %v1807 = vadd.f32 %v1805, %v1806
  %v1808 = vtanh.pop %v1807
  %v1809 = vmul.f32 %v1804, %v1808
  %1810 = vst [vmem:[%s4 + $0x28] sm:$0xff] %v1809
  %v1811 = vld [vmem:[#allocation4 + $0xc0] sm:$0xff]
  %v1812 = vld [vmem:[#allocation4 + $0xc8] sm:$0xff]
  %v1813 = vld [vmem:[#allocation4 + $0xd0] sm:$0xff]
  %v1814 = vld [vmem:[#allocation4 + $0xd8] sm:$0xff]
  %v1815 = vld [vmem:[%s2] sm:$0xff]
  %v1816 = vld [vmem:[%s2 + $0x8] sm:$0xff]
  %v1817 = vld [vmem:[%s2 + $0x10] sm:$0xff]
  %v1818 = vld [vmem:[%s2 + $0x18] sm:$0xff]
  %v1819 = vld [vmem:[%s2 + $0x20] sm:$0xff]
  %v1820 = vld [vmem:[%s2 + $0x28] sm:$0xff]
  %v1821 = vld [vmem:[%s2 + $0x30] sm:$0xff]
  %v1822 = vld [vmem:[%s2 + $0x38] sm:$0xff]
  %v1823 = vld [vmem:[%s2 + $0x40] sm:$0xff]
  %v1824 = vld [vmem:[%s2 + $0x48] sm:$0xff]
  %v1825 = vld [vmem:[%s2 + $0x50] sm:$0xff]
  %v1826 = vld [vmem:[%s2 + $0x58] sm:$0xff]
  %v1827 = vld [vmem:[%s2 + $0x60] sm:$0xff]
  %v1828 = vld [vmem:[%s2 + $0x68] sm:$0xff]
  %v1829 = vld [vmem:[%s2 + $0x70] sm:$0xff]
  %v1830 = vld [vmem:[%s2 + $0x78] sm:$0xff]
  %v1831 = vld [vmem:[%s2 + $0x80] sm:$0xff]
  %v1832 = vld [vmem:[%s2 + $0x88] sm:$0xff]
  %v1833 = vld [vmem:[%s2 + $0x90] sm:$0xff]
  %v1834 = vld [vmem:[%s2 + $0x98] sm:$0xff]
  %v1835 = vld [vmem:[%s2 + $0xa0] sm:$0xff]
  %v1836 = vld [vmem:[%s2 + $0xa8] sm:$0xff]
  %v1837 = vld [vmem:[%s2 + $0xb0] sm:$0xff]
  %v1838 = vld [vmem:[%s2 + $0xb8] sm:$0xff]
  %v1839 = vld [vmem:[%s2 + $0xc0] sm:$0xff]
  %v1840 = vld [vmem:[%s2 + $0xc8] sm:$0xff]
  %v1841 = vld [vmem:[%s2 + $0xd0] sm:$0xff]
  %v1842 = vld [vmem:[%s2 + $0xd8] sm:$0xff]
  %v1843 = vld [vmem:[%s2 + $0xe0] sm:$0xff]
  %v1844 = vld [vmem:[%s2 + $0xe8] sm:$0xff]
  %v1845 = vld [vmem:[%s2 + $0xf0] sm:$0xff]
  %v1846 = vld [vmem:[%s2 + $0xf8] sm:$0xff]
  %v1847 = vld [vmem:[%s2 + $0x100] sm:$0xff]
  %v1848 = vld [vmem:[%s2 + $0x108] sm:$0xff]
  %v1849 = vld [vmem:[%s2 + $0x110] sm:$0xff]
  %v1850 = vld [vmem:[%s2 + $0x118] sm:$0xff]
  %v1851 = vld [vmem:[%s2 + $0x120] sm:$0xff]
  %v1852 = vld [vmem:[%s2 + $0x128] sm:$0xff]
  %v1853 = vld [vmem:[%s2 + $0x130] sm:$0xff]
  %v1854 = vld [vmem:[%s2 + $0x138] sm:$0xff]
  %v1855 = vld [vmem:[%s2 + $0x140] sm:$0xff]
  %v1856 = vld [vmem:[%s2 + $0x148] sm:$0xff]
  %v1857 = vld [vmem:[%s2 + $0x150] sm:$0xff]
  %v1858 = vld [vmem:[%s2 + $0x158] sm:$0xff]
  %v1859 = vld [vmem:[%s2 + $0x160] sm:$0xff]
  %v1860 = vld [vmem:[%s2 + $0x168] sm:$0xff]
  %v1861 = vld [vmem:[%s2 + $0x170] sm:$0xff]
  %v1862 = vld [vmem:[%s2 + $0x178] sm:$0xff]
  %v1863 = vld [vmem:[%s2 + $0x180] sm:$0xff]
  %v1864 = vld [vmem:[%s2 + $0x188] sm:$0xff]
  %v1865 = vld [vmem:[%s2 + $0x190] sm:$0xff]
  %v1866 = vld [vmem:[%s2 + $0x198] sm:$0xff]
  %v1867 = vld [vmem:[%s2 + $0x1a0] sm:$0xff]
  %v1868 = vld [vmem:[%s2 + $0x1a8] sm:$0xff]
  %v1869 = vld [vmem:[%s2 + $0x1b0] sm:$0xff]
  %v1870 = vld [vmem:[%s2 + $0x1b8] sm:$0xff]
  %v1871 = vld [vmem:[%s2 + $0x1c0] sm:$0xff]
  %v1872 = vld [vmem:[%s2 + $0x1c8] sm:$0xff]
  %v1873 = vld [vmem:[%s2 + $0x1d0] sm:$0xff]
  %v1874 = vld [vmem:[%s2 + $0x1d8] sm:$0xff]
  %v1875 = vld [vmem:[%s2 + $0x1e0] sm:$0xff]
  %v1876 = vld [vmem:[%s2 + $0x1e8] sm:$0xff]
  %v1877 = vld [vmem:[%s2 + $0x1f0] sm:$0xff]
  %v1878 = vld [vmem:[%s2 + $0x1f8] sm:$0xff]
  %1879 = vmatprep.subr.mxu0 %v1816
  %1880 = vmatpush1.msra.mxu0 %v1815
  %1881 = vmatprep.subr.mxu0 %v1820
  %1882 = vmatpush1.msra.mxu0 %v1819
  %1883 = vmatprep.subr.mxu0 %v1824
  %1884 = vmatpush1.msra.mxu0 %v1823
  %1885 = vmatprep.subr.mxu0 %v1828
  %1886 = vmatpush1.msra.mxu0 %v1827
  %1887 = vmatprep.subr.mxu0 %v1832
  %1888 = vmatpush1.msra.mxu0 %v1831
  %1889 = vmatprep.subr.mxu0 %v1836
  %1890 = vmatpush1.msra.mxu0 %v1835
  %1891 = vmatprep.subr.mxu0 %v1840
  %1892 = vmatpush1.msra.mxu0 %v1839
  %1893 = vmatprep.subr.mxu0 %v1844
  %1894 = vmatpush1.msra.mxu0 %v1843
  %1895 = vmatprep.subr.mxu0 %v1848
  %1896 = vmatpush1.msra.mxu0 %v1847
  %1897 = vmatprep.subr.mxu0 %v1852
  %1898 = vmatpush1.msra.mxu0 %v1851
  %1899 = vmatprep.subr.mxu0 %v1856
  %1900 = vmatpush1.msra.mxu0 %v1855
  %1901 = vmatprep.subr.mxu0 %v1860
  %1902 = vmatpush1.msra.mxu0 %v1859
  %1903 = vmatprep.subr.mxu0 %v1864
  %1904 = vmatpush1.msra.mxu0 %v1863
  %1905 = vmatprep.subr.mxu0 %v1868
  %1906 = vmatpush1.msra.mxu0 %v1867
  %1907 = vmatprep.subr.mxu0 %v1872
  %1908 = vmatpush1.msra.mxu0 %v1871
  %1909 = vmatprep.subr.mxu0 %v1876
  %1910 = vmatpush1.msra.mxu0 %v1875
  %1911 = vmatprep.subr.mxu0 0.0
  %1912 = vmatpush1.msra.mxu0 0.0
  %1913 = vmatprep.subr.mxu0 0.0
  %1914 = vmatpush1.msra.mxu0 0.0
  %1915 = vmatprep.subr.mxu0 0.0
  %1916 = vmatpush1.msra.mxu0 0.0
  %1917 = vmatprep.subr.mxu0 0.0
  %1918 = vmatpush1.msra.mxu0 0.0
  %1919 = vmatprep.subr.mxu0 0.0
  %1920 = vmatpush1.msra.mxu0 0.0
  %1921 = vmatprep.subr.mxu0 0.0
  %1922 = vmatpush1.msra.mxu0 0.0
  %1923 = vmatprep.subr.mxu0 0.0
  %1924 = vmatpush1.msra.mxu0 0.0
  %1925 = vmatprep.subr.mxu0 0.0
  %1926 = vmatpush1.msra.mxu0 0.0
  %1927 = vmatprep.subr.mxu0 0.0
  %1928 = vmatpush1.msra.mxu0 0.0
  %1929 = vmatprep.subr.mxu0 0.0
  %1930 = vmatpush1.msra.mxu0 0.0
  %1931 = vmatprep.subr.mxu0 0.0
  %1932 = vmatpush1.msra.mxu0 0.0
  %1933 = vmatprep.subr.mxu0 0.0
  %1934 = vmatpush1.msra.mxu0 0.0
  %1935 = vmatprep.subr.mxu0 0.0
  %1936 = vmatpush1.msra.mxu0 0.0
  %1937 = vmatprep.subr.mxu0 0.0
  %1938 = vmatpush1.msra.mxu0 0.0
  %1939 = vmatprep.subr.mxu0 0.0
  %1940 = vmatpush1.msra.mxu0 0.0
  %1941 = vmatprep.subr.mxu0 0.0
  %1942 = vmatpush1.msra.mxu0 0.0
  %1943 = vmatprep.mubr.f32.mxu0 0.0
  %1944 = vmatmul.mubr.f32.gmra.mrb[0].mxu0 %v1809
  %v1945 = vpop.f32.mrb[0].mxu0
  %v1946 = vadd.f32 0.0, %v1945
  %v1947 = vpop.f32.mrb[0].mxu0
  %v1948 = vadd.f32 0.0, %v1947
  %1949 = vdwg.mxu0
  %1950 = vmatprep.subr.mxu0 %v1818
  %1951 = vmatpush1.msra.mxu0 %v1817
  %1952 = vmatprep.subr.mxu0 %v1822
  %1953 = vmatpush1.msra.mxu0 %v1821
  %1954 = vmatprep.subr.mxu0 %v1826
  %1955 = vmatpush1.msra.mxu0 %v1825
  %1956 = vmatprep.subr.mxu0 %v1830
  %1957 = vmatpush1.msra.mxu0 %v1829
  %1958 = vmatprep.subr.mxu0 %v1834
  %1959 = vmatpush1.msra.mxu0 %v1833
  %1960 = vmatprep.subr.mxu0 %v1838
  %1961 = vmatpush1.msra.mxu0 %v1837
  %1962 = vmatprep.subr.mxu0 %v1842
  %1963 = vmatpush1.msra.mxu0 %v1841
  %1964 = vmatprep.subr.mxu0 %v1846
  %1965 = vmatpush1.msra.mxu0 %v1845
  %1966 = vmatprep.subr.mxu0 %v1850
  %1967 = vmatpush1.msra.mxu0 %v1849
  %1968 = vmatprep.subr.mxu0 %v1854
  %1969 = vmatpush1.msra.mxu0 %v1853
  %1970 = vmatprep.subr.mxu0 %v1858
  %1971 = vmatpush1.msra.mxu0 %v1857
  %1972 = vmatprep.subr.mxu0 %v1862
  %1973 = vmatpush1.msra.mxu0 %v1861
  %1974 = vmatprep.subr.mxu0 %v1866
  %1975 = vmatpush1.msra.mxu0 %v1865
  %1976 = vmatprep.subr.mxu0 %v1870
  %1977 = vmatpush1.msra.mxu0 %v1869
  %1978 = vmatprep.subr.mxu0 %v1874
  %1979 = vmatpush1.msra.mxu0 %v1873
  %1980 = vmatprep.subr.mxu0 %v1878
  %1981 = vmatpush1.msra.mxu0 %v1877
  %1982 = vmatprep.subr.mxu0 0.0
  %1983 = vmatpush1.msra.mxu0 0.0
  %1984 = vmatprep.subr.mxu0 0.0
  %1985 = vmatpush1.msra.mxu0 0.0
  %1986 = vmatprep.subr.mxu0 0.0
  %1987 = vmatpush1.msra.mxu0 0.0
  %1988 = vmatprep.subr.mxu0 0.0
  %1989 = vmatpush1.msra.mxu0 0.0
  %1990 = vmatprep.subr.mxu0 0.0
  %1991 = vmatpush1.msra.mxu0 0.0
  %1992 = vmatprep.subr.mxu0 0.0
  %1993 = vmatpush1.msra.mxu0 0.0
  %1994 = vmatprep.subr.mxu0 0.0
  %1995 = vmatpush1.msra.mxu0 0.0
  %1996 = vmatprep.subr.mxu0 0.0
  %1997 = vmatpush1.msra.mxu0 0.0
  %1998 = vmatprep.subr.mxu0 0.0
  %1999 = vmatpush1.msra.mxu0 0.0
  %2000 = vmatprep.subr.mxu0 0.0
  %2001 = vmatpush1.msra.mxu0 0.0
  %2002 = vmatprep.subr.mxu0 0.0
  %2003 = vmatpush1.msra.mxu0 0.0
  %2004 = vmatprep.subr.mxu0 0.0
  %2005 = vmatpush1.msra.mxu0 0.0
  %2006 = vmatprep.subr.mxu0 0.0
  %2007 = vmatpush1.msra.mxu0 0.0
  %2008 = vmatprep.subr.mxu0 0.0
  %2009 = vmatpush1.msra.mxu0 0.0
  %2010 = vmatprep.subr.mxu0 0.0
  %2011 = vmatpush1.msra.mxu0 0.0
  %2012 = vmatprep.subr.mxu0 0.0
  %2013 = vmatpush1.msra.mxu0 0.0
  %2014 = vmatprep.mubr.f32.mxu0 0.0
  %2015 = vmatmul.mubr.f32.gmra.mrb[0].mxu0 %v1809
  %v2016 = vpop.f32.mrb[0].mxu0
  %v2017 = vadd.f32 0.0, %v2016
  %v2018 = vpop.f32.mrb[0].mxu0
  %v2019 = vadd.f32 0.0, %v2018
  %2020 = vdwg.mxu0
  %v2021 = vadd.f32 %v1811, %v1946
  %v2022 = vadd.f32 %v1812, %v1948
  %v2023 = vadd.f32 %v1813, %v2017
  %v2024 = vadd.f32 %v1814, %v2019
  %v2025 = vxor.u32 %v2021, 2147483648
  %v2026 = vmul.f32 %v2025, 1.442695
  %v2027 = vpow.pop %v2026
  %v2028 = vadd.f32 %v2027, 1.0
  %v2029 = vrcp.pop %v2028
  %v2030 = vmul.f32 1.0, %v2029
  %v2031 = vxor.u32 %v2022, 2147483648
  %v2032 = vmul.f32 %v2031, 1.442695
  %v2033 = vpow.pop %v2032
  %v2034 = vadd.f32 %v2033, 1.0
  %v2035 = vrcp.pop %v2034
  %v2036 = vmul.f32 1.0, %v2035
  %v2037 = vtanh.pop %v2023
  %v2038 = vxor.u32 %v2024, 2147483648
  %v2039 = vmul.f32 %v2038, 1.442695
  %v2040 = vpow.pop %v2039
  %v2041 = vadd.f32 %v2040, 1.0
  %v2042 = vrcp.pop %v2041
  %v2043 = vmul.f32 1.0, %v2042
  %v2044 = vmul.f32 %v2036, %v1807
  %v2045 = vmul.f32 %v2030, %v2037
  %v2046 = vadd.f32 %v2044, %v2045
  %v2047 = vtanh.pop %v2046
  %v2048 = vmul.f32 %v2043, %v2047
  %2049 = vst [vmem:[%s4 + $0x30] sm:$0xff] %v2048
  %v2050 = vld [vmem:[#allocation4 + $0xe0] sm:$0xff]
  %v2051 = vld [vmem:[#allocation4 + $0xe8] sm:$0xff]
  %v2052 = vld [vmem:[#allocation4 + $0xf0] sm:$0xff]
  %v2053 = vld [vmem:[#allocation4 + $0xf8] sm:$0xff]
  %v2054 = vld [vmem:[%s2] sm:$0xff]
  %v2055 = vld [vmem:[%s2 + $0x8] sm:$0xff]
  %v2056 = vld [vmem:[%s2 + $0x10] sm:$0xff]
  %v2057 = vld [vmem:[%s2 + $0x18] sm:$0xff]
  %v2058 = vld [vmem:[%s2 + $0x20] sm:$0xff]
  %v2059 = vld [vmem:[%s2 + $0x28] sm:$0xff]
  %v2060 = vld [vmem:[%s2 + $0x30] sm:$0xff]
  %v2061 = vld [vmem:[%s2 + $0x38] sm:$0xff]
  %v2062 = vld [vmem:[%s2 + $0x40] sm:$0xff]
  %v2063 = vld [vmem:[%s2 + $0x48] sm:$0xff]
  %v2064 = vld [vmem:[%s2 + $0x50] sm:$0xff]
  %v2065 = vld [vmem:[%s2 + $0x58] sm:$0xff]
  %v2066 = vld [vmem:[%s2 + $0x60] sm:$0xff]
  %v2067 = vld [vmem:[%s2 + $0x68] sm:$0xff]
  %v2068 = vld [vmem:[%s2 + $0x70] sm:$0xff]
  %v2069 = vld [vmem:[%s2 + $0x78] sm:$0xff]
  %v2070 = vld [vmem:[%s2 + $0x80] sm:$0xff]
  %v2071 = vld [vmem:[%s2 + $0x88] sm:$0xff]
  %v2072 = vld [vmem:[%s2 + $0x90] sm:$0xff]
  %v2073 = vld [vmem:[%s2 + $0x98] sm:$0xff]
  %v2074 = vld [vmem:[%s2 + $0xa0] sm:$0xff]
  %v2075 = vld [vmem:[%s2 + $0xa8] sm:$0xff]
  %v2076 = vld [vmem:[%s2 + $0xb0] sm:$0xff]
  %v2077 = vld [vmem:[%s2 + $0xb8] sm:$0xff]
  %v2078 = vld [vmem:[%s2 + $0xc0] sm:$0xff]
  %v2079 = vld [vmem:[%s2 + $0xc8] sm:$0xff]
  %v2080 = vld [vmem:[%s2 + $0xd0] sm:$0xff]
  %v2081 = vld [vmem:[%s2 + $0xd8] sm:$0xff]
  %v2082 = vld [vmem:[%s2 + $0xe0] sm:$0xff]
  %v2083 = vld [vmem:[%s2 + $0xe8] sm:$0xff]
  %v2084 = vld [vmem:[%s2 + $0xf0] sm:$0xff]
  %v2085 = vld [vmem:[%s2 + $0xf8] sm:$0xff]
  %v2086 = vld [vmem:[%s2 + $0x100] sm:$0xff]
  %v2087 = vld [vmem:[%s2 + $0x108] sm:$0xff]
  %v2088 = vld [vmem:[%s2 + $0x110] sm:$0xff]
  %v2089 = vld [vmem:[%s2 + $0x118] sm:$0xff]
  %v2090 = vld [vmem:[%s2 + $0x120] sm:$0xff]
  %v2091 = vld [vmem:[%s2 + $0x128] sm:$0xff]
  %v2092 = vld [vmem:[%s2 + $0x130] sm:$0xff]
  %v2093 = vld [vmem:[%s2 + $0x138] sm:$0xff]
  %v2094 = vld [vmem:[%s2 + $0x140] sm:$0xff]
  %v2095 = vld [vmem:[%s2 + $0x148] sm:$0xff]
  %v2096 = vld [vmem:[%s2 + $0x150] sm:$0xff]
  %v2097 = vld [vmem:[%s2 + $0x158] sm:$0xff]
  %v2098 = vld [vmem:[%s2 + $0x160] sm:$0xff]
  %v2099 = vld [vmem:[%s2 + $0x168] sm:$0xff]
  %v2100 = vld [vmem:[%s2 + $0x170] sm:$0xff]
  %v2101 = vld [vmem:[%s2 + $0x178] sm:$0xff]
  %v2102 = vld [vmem:[%s2 + $0x180] sm:$0xff]
  %v2103 = vld [vmem:[%s2 + $0x188] sm:$0xff]
  %v2104 = vld [vmem:[%s2 + $0x190] sm:$0xff]
  %v2105 = vld [vmem:[%s2 + $0x198] sm:$0xff]
  %v2106 = vld [vmem:[%s2 + $0x1a0] sm:$0xff]
  %v2107 = vld [vmem:[%s2 + $0x1a8] sm:$0xff]
  %v2108 = vld [vmem:[%s2 + $0x1b0] sm:$0xff]
  %v2109 = vld [vmem:[%s2 + $0x1b8] sm:$0xff]
  %v2110 = vld [vmem:[%s2 + $0x1c0] sm:$0xff]
  %v2111 = vld [vmem:[%s2 + $0x1c8] sm:$0xff]
  %v2112 = vld [vmem:[%s2 + $0x1d0] sm:$0xff]
  %v2113 = vld [vmem:[%s2 + $0x1d8] sm:$0xff]
  %v2114 = vld [vmem:[%s2 + $0x1e0] sm:$0xff]
  %v2115 = vld [vmem:[%s2 + $0x1e8] sm:$0xff]
  %v2116 = vld [vmem:[%s2 + $0x1f0] sm:$0xff]
  %v2117 = vld [vmem:[%s2 + $0x1f8] sm:$0xff]
  %2118 = vmatprep.subr.mxu0 %v2055
  %2119 = vmatpush1.msra.mxu0 %v2054
  %2120 = vmatprep.subr.mxu0 %v2059
  %2121 = vmatpush1.msra.mxu0 %v2058
  %2122 = vmatprep.subr.mxu0 %v2063
  %2123 = vmatpush1.msra.mxu0 %v2062
  %2124 = vmatprep.subr.mxu0 %v2067
  %2125 = vmatpush1.msra.mxu0 %v2066
  %2126 = vmatprep.subr.mxu0 %v2071
  %2127 = vmatpush1.msra.mxu0 %v2070
  %2128 = vmatprep.subr.mxu0 %v2075
  %2129 = vmatpush1.msra.mxu0 %v2074
  %2130 = vmatprep.subr.mxu0 %v2079
  %2131 = vmatpush1.msra.mxu0 %v2078
  %2132 = vmatprep.subr.mxu0 %v2083
  %2133 = vmatpush1.msra.mxu0 %v2082
  %2134 = vmatprep.subr.mxu0 %v2087
  %2135 = vmatpush1.msra.mxu0 %v2086
  %2136 = vmatprep.subr.mxu0 %v2091
  %2137 = vmatpush1.msra.mxu0 %v2090
  %2138 = vmatprep.subr.mxu0 %v2095
  %2139 = vmatpush1.msra.mxu0 %v2094
  %2140 = vmatprep.subr.mxu0 %v2099
  %2141 = vmatpush1.msra.mxu0 %v2098
  %2142 = vmatprep.subr.mxu0 %v2103
  %2143 = vmatpush1.msra.mxu0 %v2102
  %2144 = vmatprep.subr.mxu0 %v2107
  %2145 = vmatpush1.msra.mxu0 %v2106
  %2146 = vmatprep.subr.mxu0 %v2111
  %2147 = vmatpush1.msra.mxu0 %v2110
  %2148 = vmatprep.subr.mxu0 %v2115
  %2149 = vmatpush1.msra.mxu0 %v2114
  %2150 = vmatprep.subr.mxu0 0.0
  %2151 = vmatpush1.msra.mxu0 0.0
  %2152 = vmatprep.subr.mxu0 0.0
  %2153 = vmatpush1.msra.mxu0 0.0
  %2154 = vmatprep.subr.mxu0 0.0
  %2155 = vmatpush1.msra.mxu0 0.0
  %2156 = vmatprep.subr.mxu0 0.0
  %2157 = vmatpush1.msra.mxu0 0.0
  %2158 = vmatprep.subr.mxu0 0.0
  %2159 = vmatpush1.msra.mxu0 0.0
  %2160 = vmatprep.subr.mxu0 0.0
  %2161 = vmatpush1.msra.mxu0 0.0
  %2162 = vmatprep.subr.mxu0 0.0
  %2163 = vmatpush1.msra.mxu0 0.0
  %2164 = vmatprep.subr.mxu0 0.0
  %2165 = vmatpush1.msra.mxu0 0.0
  %2166 = vmatprep.subr.mxu0 0.0
  %2167 = vmatpush1.msra.mxu0 0.0
  %2168 = vmatprep.subr.mxu0 0.0
  %2169 = vmatpush1.msra.mxu0 0.0
  %2170 = vmatprep.subr.mxu0 0.0
  %2171 = vmatpush1.msra.mxu0 0.0
  %2172 = vmatprep.subr.mxu0 0.0
  %2173 = vmatpush1.msra.mxu0 0.0
  %2174 = vmatprep.subr.mxu0 0.0
  %2175 = vmatpush1.msra.mxu0 0.0
  %2176 = vmatprep.subr.mxu0 0.0
  %2177 = vmatpush1.msra.mxu0 0.0
  %2178 = vmatprep.subr.mxu0 0.0
  %2179 = vmatpush1.msra.mxu0 0.0
  %2180 = vmatprep.subr.mxu0 0.0
  %2181 = vmatpush1.msra.mxu0 0.0
  %2182 = vmatprep.mubr.f32.mxu0 0.0
  %2183 = vmatmul.mubr.f32.gmra.mrb[0].mxu0 %v2048
  %v2184 = vpop.f32.mrb[0].mxu0
  %v2185 = vadd.f32 0.0, %v2184
  %v2186 = vpop.f32.mrb[0].mxu0
  %v2187 = vadd.f32 0.0, %v2186
  %2188 = vdwg.mxu0
  %2189 = vmatprep.subr.mxu0 %v2057
  %2190 = vmatpush1.msra.mxu0 %v2056
  %2191 = vmatprep.subr.mxu0 %v2061
  %2192 = vmatpush1.msra.mxu0 %v2060
  %2193 = vmatprep.subr.mxu0 %v2065
  %2194 = vmatpush1.msra.mxu0 %v2064
  %2195 = vmatprep.subr.mxu0 %v2069
  %2196 = vmatpush1.msra.mxu0 %v2068
  %2197 = vmatprep.subr.mxu0 %v2073
  %2198 = vmatpush1.msra.mxu0 %v2072
  %2199 = vmatprep.subr.mxu0 %v2077
  %2200 = vmatpush1.msra.mxu0 %v2076
  %2201 = vmatprep.subr.mxu0 %v2081
  %2202 = vmatpush1.msra.mxu0 %v2080
  %2203 = vmatprep.subr.mxu0 %v2085
  %2204 = vmatpush1.msra.mxu0 %v2084
  %2205 = vmatprep.subr.mxu0 %v2089
  %2206 = vmatpush1.msra.mxu0 %v2088
  %2207 = vmatprep.subr.mxu0 %v2093
  %2208 = vmatpush1.msra.mxu0 %v2092
  %2209 = vmatprep.subr.mxu0 %v2097
  %2210 = vmatpush1.msra.mxu0 %v2096
  %2211 = vmatprep.subr.mxu0 %v2101
  %2212 = vmatpush1.msra.mxu0 %v2100
  %2213 = vmatprep.subr.mxu0 %v2105
  %2214 = vmatpush1.msra.mxu0 %v2104
  %2215 = vmatprep.subr.mxu0 %v2109
  %2216 = vmatpush1.msra.mxu0 %v2108
  %2217 = vmatprep.subr.mxu0 %v2113
  %2218 = vmatpush1.msra.mxu0 %v2112
  %2219 = vmatprep.subr.mxu0 %v2117
  %2220 = vmatpush1.msra.mxu0 %v2116
  %2221 = vmatprep.subr.mxu0 0.0
  %2222 = vmatpush1.msra.mxu0 0.0
  %2223 = vmatprep.subr.mxu0 0.0
  %2224 = vmatpush1.msra.mxu0 0.0
  %2225 = vmatprep.subr.mxu0 0.0
  %2226 = vmatpush1.msra.mxu0 0.0
  %2227 = vmatprep.subr.mxu0 0.0
  %2228 = vmatpush1.msra.mxu0 0.0
  %2229 = vmatprep.subr.mxu0 0.0
  %2230 = vmatpush1.msra.mxu0 0.0
  %2231 = vmatprep.subr.mxu0 0.0
  %2232 = vmatpush1.msra.mxu0 0.0
  %2233 = vmatprep.subr.mxu0 0.0
  %2234 = vmatpush1.msra.mxu0 0.0
  %2235 = vmatprep.subr.mxu0 0.0
  %2236 = vmatpush1.msra.mxu0 0.0
  %2237 = vmatprep.subr.mxu0 0.0
  %2238 = vmatpush1.msra.mxu0 0.0
  %2239 = vmatprep.subr.mxu0 0.0
  %2240 = vmatpush1.msra.mxu0 0.0
  %2241 = vmatprep.subr.mxu0 0.0
  %2242 = vmatpush1.msra.mxu0 0.0
  %2243 = vmatprep.subr.mxu0 0.0
  %2244 = vmatpush1.msra.mxu0 0.0
  %2245 = vmatprep.subr.mxu0 0.0
  %2246 = vmatpush1.msra.mxu0 0.0
  %2247 = vmatprep.subr.mxu0 0.0
  %2248 = vmatpush1.msra.mxu0 0.0
  %2249 = vmatprep.subr.mxu0 0.0
  %2250 = vmatpush1.msra.mxu0 0.0
  %2251 = vmatprep.subr.mxu0 0.0
  %2252 = vmatpush1.msra.mxu0 0.0
  %2253 = vmatprep.mubr.f32.mxu0 0.0
  %2254 = vmatmul.mubr.f32.gmra.mrb[0].mxu0 %v2048
  %v2255 = vpop.f32.mrb[0].mxu0
  %v2256 = vadd.f32 0.0, %v2255
  %v2257 = vpop.f32.mrb[0].mxu0
  %v2258 = vadd.f32 0.0, %v2257
  %2259 = vdwg.mxu0
  %v2260 = vadd.f32 %v2050, %v2185
  %v2261 = vadd.f32 %v2051, %v2187
  %v2262 = vadd.f32 %v2052, %v2256
  %v2263 = vadd.f32 %v2053, %v2258
  %v2264 = vxor.u32 %v2260, 2147483648
  %v2265 = vmul.f32 %v2264, 1.442695
  %v2266 = vpow.pop %v2265
  %v2267 = vadd.f32 %v2266, 1.0
  %v2268 = vrcp.pop %v2267
  %v2269 = vmul.f32 1.0, %v2268
  %v2270 = vxor.u32 %v2261, 2147483648
  %v2271 = vmul.f32 %v2270, 1.442695
  %v2272 = vpow.pop %v2271
  %v2273 = vadd.f32 %v2272, 1.0
  %v2274 = vrcp.pop %v2273
  %v2275 = vmul.f32 1.0, %v2274
  %v2276 = vtanh.pop %v2262
  %v2277 = vxor.u32 %v2263, 2147483648
  %v2278 = vmul.f32 %v2277, 1.442695
  %v2279 = vpow.pop %v2278
  %v2280 = vadd.f32 %v2279, 1.0
  %v2281 = vrcp.pop %v2280
  %v2282 = vmul.f32 1.0, %v2281
  %v2283 = vmul.f32 %v2275, %v2046
  %v2284 = vmul.f32 %v2269, %v2276
  %v2285 = vadd.f32 %v2283, %v2284
  %v2286 = vtanh.pop %v2285
  %v2287 = vmul.f32 %v2282, %v2286
  %2288 = vst [vmem:[%s4 + $0x38] sm:$0xff] %v2287
  %2289 = vst [vmem:[#allocation2] sm:$0xff] %v2287
  %2290 = vst [vmem:[#allocation3] sm:$0xff] %v2285
  // Predicated region
  $region22: #{lstm_model_forward.2} parent=0 // pred_check
    _
  $region23: #{lstm_model_forward.2} parent=0 // pred_check_branch
    %2292 = sbr.rel (0) target = $region25
  $region24: #{lstm_model_forward.2} parent=0 // pred_region
    _
  $region25: #{lstm_model_forward.2} parent=0 // pred_fallthru
    _
  // Predicated region
  $region26: #{lstm_model_forward.2} parent=0 // pred_check
    _
  $region27: #{lstm_model_forward.2} parent=0 // pred_check_branch
    %2294 = sbr.rel (0) target = $region29
  $region28: #{lstm_model_forward.2} parent=0 // pred_region
    _
  $region29: #{lstm_model_forward.2} parent=0 // pred_fallthru
    _

</llo_original>
